<compile_context>
chip_gen: v5e
topology: v5e:2x2
jax: 0.10.0
libtpu: 0.0.40
codegen_flags: <defaults>
</compile_context>

<pallas_src>
import functools
import math

import jax
import jax.numpy as jnp
from jax.experimental import pallas as pl
from jax.experimental.pallas import tpu as pltpu


CFG = dict(img=16, patch=4, in_ch=3, embed=32,
           depths=(2, 2), heads=(2, 4), window=2, mlp_ratio=2)

_F32 = jnp.float32
_BF16 = jnp.bfloat16
# Explicit scoped-VMEM headroom; far above this kernel's needs and within the
# v7x 64 MiB / v5e-v6e 128 MiB physical budgets even with double buffering.
_VMEM_LIMIT = 32 * 1024 * 1024


# ----------------------------- in-kernel helpers ----------------------------

def _ln(x, g, b, eps=1e-5):
    mu = jnp.mean(x, axis=-1, keepdims=True)
    xc = x - mu
    var = jnp.mean(xc * xc, axis=-1, keepdims=True)
    return xc * jax.lax.rsqrt(var + eps) * g + b


def _gelu_tanh(x):
    # TODO(synk): PyTorch nn.GELU defaults to exact erf; tanh approximation is
    # used for guaranteed Mosaic lowering (~1e-3 relative difference).
    c = math.sqrt(2.0 / math.pi)
    return 0.5 * x * (1.0 + jnp.tanh(c * (x + 0.044715 * x * x * x)))


# ------------------------------ Pallas kernels ------------------------------

def _patch_embed_kernel(x_ref, w_ref, b_ref, g_ref, bb_ref, o_ref):
    """Fused patch-embedding matmul (bf16 weights, f32 accumulate) + LayerNorm."""
    y = jnp.dot(x_ref[...].astype(_BF16), w_ref[...],
                preferred_element_type=_F32) + b_ref[...]
    o_ref[...] = _ln(y, g_ref[...], bb_ref[...])


def _patch_merge_kernel(x_ref, g_ref, b_ref, w_ref, o_ref):
    """Fused patch-merging LayerNorm + channel reduction (no bias)."""
    xn = _ln(x_ref[...], g_ref[...], b_ref[...])
    o_ref[...] = jnp.dot(xn.astype(_BF16), w_ref[...],
                         preferred_element_type=_F32)


def _swin_block_kernel(x_ref, bias_ref, ln1g_ref, ln1b_ref,
                       qw_ref, qb_ref, kw_ref, kb_ref, vw_ref, vb_ref,
                       pw_ref, pb_ref, ln2g_ref, ln2b_ref,
                       f1w_ref, f1b_ref, f2w_ref, f2b_ref, o_ref):
    """One full Swin block for ONE window (grid point = (batch, window)).

    Heads are processed with batched dot_general (leading batch dim = head)
    instead of 16-wide lane slices; the per-window bias already combines the
    relative-position table and the shift mask, so no cross-window masking or
    dense block-diagonal scores are needed.  Weights arrive pre-cast to bf16;
    all accumulation is f32 via preferred_element_type.
    """
    nh, C, hd = qw_ref.shape
    T = x_ref.shape[2]
    scale = 1.0 / math.sqrt(hd)
    # batched dims: contract last (lane) dim of lhs with dim 1 of rhs, batch on head
    dn = (((2,), (1,)), ((0,), (0,)))
    dn_qk = (((2,), (2,)), ((0,), (0,)))

    x = x_ref[...].reshape(T, C)                        # [T, C] f32
    bias = bias_ref[...].reshape(nh, T, T)              # [nh, T, T] f32

    # ---------------- attention branch ----------------
    xn = _ln(x, ln1g_ref[...], ln1b_ref[...])
    xb = jnp.broadcast_to(xn.astype(_BF16)[None], (nh, T, C))   # head-batched lhs
    q = jax.lax.dot_general(xb, qw_ref[...], dn,
                            preferred_element_type=_F32) + qb_ref[...]
    k = jax.lax.dot_general(xb, kw_ref[...], dn,
                            preferred_element_type=_F32) + kb_ref[...]
    v = jax.lax.dot_general(xb, vw_ref[...], dn,
                            preferred_element_type=_F32) + vb_ref[...]

    s = jax.lax.dot_general(q.astype(_BF16), k.astype(_BF16), dn_qk,
                            preferred_element_type=_F32)        # [nh, T, T]
    s = s * scale + bias
    m = jnp.max(s, axis=-1, keepdims=True)
    e = jnp.exp(s - m)
    # approx=False: keeps softmax normalization bit-closer to the f32 reference.
    p = e * pl.reciprocal(jnp.sum(e, axis=-1, keepdims=True), approx=False)

    o = jax.lax.dot_general(p.astype(_BF16), v.astype(_BF16), dn,
                            preferred_element_type=_F32)        # [nh, T, hd]
    attn = jax.lax.dot_general(o.astype(_BF16), pw_ref[...], dn,
                               preferred_element_type=_F32)     # [nh, T, C]
    x2 = x + jnp.sum(attn, axis=0) + pb_ref[...]                # residual 1

    # ------------------- MLP branch --------------------
    xn2 = _ln(x2, ln2g_ref[...], ln2b_ref[...])
    h1 = jnp.dot(xn2.astype(_BF16), f1w_ref[...],
                 preferred_element_type=_F32) + f1b_ref[...]
    h1 = _gelu_tanh(h1)
    h2 = jnp.dot(h1.astype(_BF16), f2w_ref[...],
                 preferred_element_type=_F32) + f2b_ref[...]
    o_ref[...] = (x2 + h2).reshape(1, 1, T, C)                  # residual 2


# ----------------------------- pallas_call glue ------------------------------

def _no_grid_call(kernel, args, out_shape):
    """Single-shot pallas_call; operands are tiny and fully VMEM-resident."""
    return pl.pallas_call(
        kernel, out_shape=out_shape,
        compiler_params=pltpu.CompilerParams(vmem_limit_bytes=_VMEM_LIMIT),
    )(*args)


# --------------------------------- JAX glue ----------------------------------

def window_partition(x, ws):
    B, H, W, C = x.shape
    x = x.reshape(B, H // ws, ws, W // ws, ws, C)
    x = x.transpose(0, 1, 3, 2, 4, 5)
    return x.reshape(B, (H // ws) * (W // ws), ws * ws, C)


def window_reverse(win, ws, H, W):
    B = win.shape[0]
    C = win.shape[-1]
    x = win.reshape(B, H // ws, W // ws, ws, ws, C)
    x = x.transpose(0, 1, 3, 2, 4, 5)
    return x.reshape(B, H, W, C)


def make_rel_pos_index(ws):
    coords = jnp.stack(
        jnp.meshgrid(jnp.arange(ws), jnp.arange(ws), indexing="ij"), axis=0)
    flat = coords.reshape(2, -1)                   # [2, T]
    rel = flat[:, :, None] - flat[:, None, :]      # [2, T, T]
    rel = rel.transpose(1, 2, 0) + (ws - 1)        # [T, T, 2]
    return rel[..., 0] * (2 * ws - 1) + rel[..., 1]


def make_shift_mask(H, W, ws, shift):
    img = jnp.zeros((1, H, W, 1), jnp.float32)
    cnt = 0
    slices = (slice(0, -ws), slice(-ws, -shift), slice(-shift, None))
    for hs in slices:
        for wsl in slices:
            img = img.at[:, hs, wsl, :].set(float(cnt))
            cnt += 1
    win = window_partition(img, ws).reshape(-1, ws * ws)      # [nW, T]
    diff = win[:, None, :] - win[:, :, None]
    return jnp.where(diff != 0, -100.0, 0.0)                   # [nW, T, T]


def swin_block(x, H, W, p, ws, shift):
    """One Swin block = one fused pallas_call over a (batch, window) grid."""
    B, L, C = x.shape
    T = ws * ws

    xs = x.reshape(B, H, W, C)
    if shift > 0:
        xs = jnp.roll(xs, (-shift, -shift), axis=(1, 2))
    win = window_partition(xs, ws)                    # [B, nW, T, C]
    nW = win.shape[1]
    nh = p["q_w"].shape[0]

    def _wspec(a):
        nd = a.ndim
        return pl.BlockSpec(a.shape, lambda b, w, _nd=nd: (0,) * _nd)

    weights = [p["ln1_g"], p["ln1_b"],
               p["q_w"], p["q_b"], p["k_w"], p["k_b"], p["v_w"], p["v_b"],
               p["proj_w"], p["proj_b"], p["ln2_g"], p["ln2_b"],
               p["fc1_w"], p["fc1_b"], p["fc2_w"], p["fc2_b"]]

    out = pl.pallas_call(
        _swin_block_kernel,
        out_shape=jax.ShapeDtypeStruct((B, nW, T, C), _F32),
        grid=(B, nW),
        in_specs=[pl.BlockSpec((1, 1, T, C), lambda b, w: (b, w, 0, 0)),
                  pl.BlockSpec((1, nh, T, T), lambda b, w: (w, 0, 0, 0))]
                 + [_wspec(a) for a in weights],
        out_specs=pl.BlockSpec((1, 1, T, C), lambda b, w: (b, w, 0, 0)),
        compiler_params=pltpu.CompilerParams(
            dimension_semantics=("parallel", "parallel"),
            vmem_limit_bytes=_VMEM_LIMIT),
    )(win, p["attn_bias"], *weights)

    xw = window_reverse(out, ws, H, W)
    if shift > 0:
        xw = jnp.roll(xw, (shift, shift), axis=(1, 2))
    return xw.reshape(B, L, C)


def patch_merging(x, H, W, p):
    B, L, C = x.shape
    x = x.reshape(B, H, W, C)
    x0 = x[:, 0::2, 0::2, :]
    x1 = x[:, 1::2, 0::2, :]
    x2 = x[:, 0::2, 1::2, :]
    x3 = x[:, 1::2, 1::2, :]
    xcat = jnp.concatenate([x0, x1, x2, x3], axis=-1)
    M = B * (H // 2) * (W // 2)
    xcat = xcat.reshape(M, 4 * C)
    out = _no_grid_call(_patch_merge_kernel,
                        [xcat, p["norm_g"], p["norm_b"], p["red_w"]],
                        jax.ShapeDtypeStruct((M, 2 * C), _F32))
    return out.reshape(B, (H // 2) * (W // 2), 2 * C)


def swin_forward(x_nchw, params, cfg):
    B = x_nchw.shape[0]
    P, ws = cfg["patch"], cfg["window"]
    x = x_nchw.transpose(0, 2, 3, 1)                 # NCHW -> NHWC
    Himg, Wimg, Cin = x.shape[1], x.shape[2], x.shape[3]
    Hp, Wp = Himg // P, Wimg // P
    E = cfg["embed"]

    # Patch embedding (4x4 stride-4 conv == patch flatten + matmul) + LN, fused.
    patches = x.reshape(B, Hp, P, Wp, P, Cin).transpose(0, 1, 3, 2, 4, 5)
    patches = patches.reshape(B * Hp * Wp, P * P * Cin)
    x = _no_grid_call(_patch_embed_kernel,
                      [patches, params["patch_w"], params["patch_b"],
                       params["patch_ln_g"], params["patch_ln_b"]],
                      jax.ShapeDtypeStruct((B * Hp * Wp, E), _F32))

    H, W, C = Hp, Wp, E
    x = x.reshape(B, H * W, C)

    feats = []
    # TODO(synk): fuse all blocks of a stage into one pallas_call (depth grid
    # axis + in-kernel shift permutation) to keep activations VMEM-resident
    # across depth; kept per-block here to preserve the simple per-window
    # parallel grid.
    for s, stage in enumerate(params["stages"]):
        for b, blk in enumerate(stage["blocks"]):
            shift = 0 if (b % 2 == 0 or min(H, W) <= ws) else ws // 2
            x = swin_block(x, H, W, blk, ws, shift)
        feats.append(x.reshape(B, H, W, C))          # NHWC stage feature
        if stage["downsample"] is not None:
            x = patch_merging(x, H, W, stage["downsample"])
            H, W, C = H // 2, W // 2, C * 2

    low, high = feats[0], feats[-1]
    # module semantics: NHWC -> NCHW permute when last dim != channel dim
    return low.transpose(0, 3, 1, 2), high.transpose(0, 3, 1, 2)


# ---------------------------- deterministic params ---------------------------

def init_params(key, cfg):
    keys = jax.random.split(key, 256)
    cnt = [0]

    def w(shape):
        k = keys[cnt[0]]
        cnt[0] += 1
        return jax.random.normal(k, shape, _F32) * 0.02

    P, ws = cfg["patch"], cfg["window"]
    pin = P * P * cfg["in_ch"]
    E = cfg["embed"]
    params = dict(
        patch_w=w((pin, E)).astype(_BF16),           # pre-cast weight -> bf16
        patch_b=jnp.zeros((1, E), _F32),
        patch_ln_g=jnp.ones((1, E), _F32),
        patch_ln_b=jnp.zeros((1, E), _F32),
    )

    stages = []
    C = E
    H = Wsp = cfg["img"] // P
    T = ws * ws
    T2 = (2 * ws - 1) ** 2
    rel_idx = make_rel_pos_index(ws)

    for s, depth in enumerate(cfg["depths"]):
        nh = cfg["heads"][s]
        hd = C // nh
        nW = (H // ws) * (Wsp // ws)
        blocks = []
        for b in range(depth):
            shift = 0 if (b % 2 == 0 or min(H, Wsp) <= ws) else ws // 2
            qkv_w = w((C, 3 * C))
            proj_w = w((C, C))
            rel_tab = w((T2, nh))
            # Combined per-window attention bias (rel-pos gather + shift mask),
            # precomputed ONCE here so the forward pass never rebuilds it.
            rpb = rel_tab[rel_idx].transpose(2, 0, 1)            # [nh, T, T]
            bias = jnp.broadcast_to(rpb[None], (nW, nh, T, T))
            if shift > 0:
                bias = bias + make_shift_mask(H, Wsp, ws, shift)[:, None, :, :]
            blocks.append(dict(
                ln1_g=jnp.ones((1, C), _F32), ln1_b=jnp.zeros((1, C), _F32),
                # per-head bf16 weight layouts for the batched dot_generals
                q_w=qkv_w[:, :C].reshape(C, nh, hd).transpose(1, 0, 2).astype(_BF16),
                k_w=qkv_w[:, C:2 * C].reshape(C, nh, hd).transpose(1, 0, 2).astype(_BF16),
                v_w=qkv_w[:, 2 * C:].reshape(C, nh, hd).transpose(1, 0, 2).astype(_BF16),
                q_b=jnp.zeros((nh, 1, hd), _F32),
                k_b=jnp.zeros((nh, 1, hd), _F32),
                v_b=jnp.zeros((nh, 1, hd), _F32),
                proj_w=proj_w.reshape(nh, hd, C).astype(_BF16),
                proj_b=jnp.zeros((1, C), _F32),
                ln2_g=jnp.ones((1, C), _F32), ln2_b=jnp.zeros((1, C), _F32),
                fc1_w=w((C, cfg["mlp_ratio"] * C)).astype(_BF16),
                fc1_b=jnp.zeros((1, cfg["mlp_ratio"] * C), _F32),
                fc2_w=w((cfg["mlp_ratio"] * C, C)).astype(_BF16),
                fc2_b=jnp.zeros((1, C), _F32),
                attn_bias=jnp.asarray(bias, _F32),               # [nW, nh, T, T]
            ))
        if s < len(cfg["depths"]) - 1:
            down = dict(
                norm_g=jnp.ones((1, 4 * C), _F32),
                norm_b=jnp.zeros((1, 4 * C), _F32),
                red_w=w((4 * C, 2 * C)).astype(_BF16),
            )
            stages.append(dict(blocks=blocks, downsample=down))
            C *= 2
            H //= 2
            Wsp //= 2
        else:
            stages.append(dict(blocks=blocks, downsample=None))
    params["stages"] = stages
    return params


# ------------------------------------ main -----------------------------------

if __name__ == "__main__":
    key = jax.random.PRNGKey(0)
    pkey, xkey = jax.random.split(key)

    params = init_params(pkey, CFG)
    x = jax.random.normal(xkey, (2, CFG["in_ch"], CFG["img"], CFG["img"]),
                          _F32)                      # PyTorch-style NCHW input

    fwd = jax.jit(functools.partial(swin_forward, cfg=CFG))
    low, high = fwd(x, params)
    jax.block_until_ready(low)
    jax.block_until_ready(high)

    assert low.shape == (2, CFG["embed"], 4, 4), low.shape
    assert high.shape == (2, 2 * CFG["embed"], 2, 2), high.shape
    assert jnp.all(jnp.isfinite(low)) and jnp.all(jnp.isfinite(high))

    print("KERNEL_OK")
</pallas_src>

<mosaic_0001>
module attributes {stable_mosaic.version = 11 : i64} {
  func.func @_patch_embed_kernel(%arg0: memref<32x48xf32, #tpu.memory_space<vmem>>, %arg1: memref<48x32xbf16, #tpu.memory_space<vmem>>, %arg2: memref<1x32xf32, #tpu.memory_space<vmem>>, %arg3: memref<1x32xf32, #tpu.memory_space<vmem>>, %arg4: memref<1x32xf32, #tpu.memory_space<vmem>>, %arg5: memref<32x32xf32, #tpu.memory_space<vmem>>) attributes {dimension_semantics = [], scalar_prefetch = 0 : i64, scratch_operands = 0 : i64, tpu.core_type = #tpu.core_type<tc>} {
    %c0 = arith.constant 0 : index
    %c0_0 = arith.constant 0 : index
    %0 = vector.load %arg0[%c0, %c0_0] : memref<32x48xf32, #tpu.memory_space<vmem>>, vector<32x48xf32>
    %1 = arith.truncf %0 : vector<32x48xf32> to vector<32x48xbf16>
    %c0_1 = arith.constant 0 : index
    %c0_2 = arith.constant 0 : index
    %2 = vector.load %arg1[%c0_1, %c0_2] : memref<48x32xbf16, #tpu.memory_space<vmem>>, vector<48x32xbf16>
    %cst = arith.constant dense<0.000000e+00> : vector<32x32xf32>
    %3 = tpu.matmul %1, %2, %cst {dimension_numbers = #tpu.dot_dimension_numbers<[1], [0], [0], [1], [0, 0, 1, 1], [], []>} : vector<32x48xbf16>, vector<48x32xbf16>, vector<32x32xf32> -> vector<32x32xf32>
    %c0_3 = arith.constant 0 : index
    %c0_4 = arith.constant 0 : index
    %4 = vector.load %arg2[%c0_3, %c0_4] : memref<1x32xf32, #tpu.memory_space<vmem>>, vector<1x32xf32>
    %5 = vector.broadcast %4 : vector<1x32xf32> to vector<32x32xf32>
    %6 = arith.addf %3, %5 : vector<32x32xf32>
    %c0_5 = arith.constant 0 : index
    %c0_6 = arith.constant 0 : index
    %7 = vector.load %arg3[%c0_5, %c0_6] : memref<1x32xf32, #tpu.memory_space<vmem>>, vector<1x32xf32>
    %c0_7 = arith.constant 0 : index
    %c0_8 = arith.constant 0 : index
    %8 = vector.load %arg4[%c0_7, %c0_8] : memref<1x32xf32, #tpu.memory_space<vmem>>, vector<1x32xf32>
    %cst_9 = arith.constant dense<0.000000e+00> : vector<32xf32>
    %9 = vector.multi_reduction <add>, %6, %cst_9 [1] : vector<32x32xf32> to vector<32xf32>
    %10 = vector.shape_cast %9 : vector<32xf32> to vector<32x1xf32>
    %cst_10 = arith.constant 3.200000e+01 : f32
    %11 = vector.broadcast %cst_10 : f32 to vector<32x1xf32>
    %12 = arith.divf %10, %11 : vector<32x1xf32>
    %13 = vector.broadcast %12 : vector<32x1xf32> to vector<32x32xf32>
    %14 = arith.subf %6, %13 : vector<32x32xf32>
    %15 = arith.mulf %14, %14 : vector<32x32xf32>
    %cst_11 = arith.constant dense<0.000000e+00> : vector<32xf32>
    %16 = vector.multi_reduction <add>, %15, %cst_11 [1] : vector<32x32xf32> to vector<32xf32>
    %17 = vector.shape_cast %16 : vector<32xf32> to vector<32x1xf32>
    %cst_12 = arith.constant 3.200000e+01 : f32
    %18 = vector.broadcast %cst_12 : f32 to vector<32x1xf32>
    %19 = arith.divf %17, %18 : vector<32x1xf32>
    %cst_13 = arith.constant 9.99999974E-6 : f32
    %20 = vector.broadcast %cst_13 : f32 to vector<32x1xf32>
    %21 = arith.addf %19, %20 : vector<32x1xf32>
    %22 = math.rsqrt %21 : vector<32x1xf32>
    %23 = vector.broadcast %22 : vector<32x1xf32> to vector<32x32xf32>
    %24 = arith.mulf %14, %23 : vector<32x32xf32>
    %25 = vector.broadcast %7 : vector<1x32xf32> to vector<32x32xf32>
    %26 = arith.mulf %24, %25 : vector<32x32xf32>
    %27 = vector.broadcast %8 : vector<1x32xf32> to vector<32x32xf32>
    %28 = arith.addf %26, %27 : vector<32x32xf32>
    %c0_14 = arith.constant 0 : index
    %c0_15 = arith.constant 0 : index
    %29 = vector.load %arg5[%c0_14, %c0_15] : memref<32x32xf32, #tpu.memory_space<vmem>>, vector<32x32xf32>
    tpu.vector_store %arg5[%c0_14, %c0_15], %28 {strides = array<i32>} : memref<32x32xf32, #tpu.memory_space<vmem>>, vector<32x32xf32>,
    return
  }
}

module attributes {stable_mosaic.version = 11 : i64} {
  func.func @_swin_block_kernel(%arg0: i32, %arg1: i32, %arg2: memref<1x1x4x32xf32, #tpu.memory_space<vmem>>, %arg3: memref<1x2x4x4xf32, #tpu.memory_space<vmem>>, %arg4: memref<1x32xf32, #tpu.memory_space<vmem>>, %arg5: memref<1x32xf32, #tpu.memory_space<vmem>>, %arg6: memref<2x32x16xbf16, #tpu.memory_space<vmem>>, %arg7: memref<2x1x16xf32, #tpu.memory_space<vmem>>, %arg8: memref<2x32x16xbf16, #tpu.memory_space<vmem>>, %arg9: memref<2x1x16xf32, #tpu.memory_space<vmem>>, %arg10: memref<2x32x16xbf16, #tpu.memory_space<vmem>>, %arg11: memref<2x1x16xf32, #tpu.memory_space<vmem>>, %arg12: memref<2x16x32xbf16, #tpu.memory_space<vmem>>, %arg13: memref<1x32xf32, #tpu.memory_space<vmem>>, %arg14: memref<1x32xf32, #tpu.memory_space<vmem>>, %arg15: memref<1x32xf32, #tpu.memory_space<vmem>>, %arg16: memref<32x64xbf16, #tpu.memory_space<vmem>>, %arg17: memref<1x64xf32, #tpu.memory_space<vmem>>, %arg18: memref<64x32xbf16, #tpu.memory_space<vmem>>, %arg19: memref<1x32xf32, #tpu.memory_space<vmem>>, %arg20: memref<1x1x4x32xf32, #tpu.memory_space<vmem>>) attributes {dimension_semantics = [#tpu.dimension_semantics<parallel>, #tpu.dimension_semantics<parallel>], iteration_bounds = array<i64: 2, 4>, scalar_prefetch = 0 : i64, scratch_operands = 0 : i64, tpu.core_type = #tpu.core_type<tc>, window_params = [{transform_indices = @transform_0, window_bounds = array<i64: 1, 1, 4, 32>}, {transform_indices = @transform_1, window_bounds = array<i64: 1, 2, 4, 4>}, {pipeline_mode = #tpu.pipeline_mode<synchronous>, transform_indices = @transform_2, window_bounds = array<i64: 1, 32>}, {pipeline_mode = #tpu.pipeline_mode<synchronous>, transform_indices = @transform_3, window_bounds = array<i64: 1, 32>}, {pipeline_mode = #tpu.pipeline_mode<synchronous>, transform_indices = @transform_4, window_bounds = array<i64: 2, 32, 16>}, {pipeline_mode = #tpu.pipeline_mode<synchronous>, transform_indices = @transform_5, window_bounds = array<i64: 2, 1, 16>}, {pipeline_mode = #tpu.pipeline_mode<synchronous>, transform_indices = @transform_6, window_bounds = array<i64: 2, 32, 16>}, {pipeline_mode = #tpu.pipeline_mode<synchronous>, transform_indices = @transform_7, window_bounds = array<i64: 2, 1, 16>}, {pipeline_mode = #tpu.pipeline_mode<synchronous>, transform_indices = @transform_8, window_bounds = array<i64: 2, 32, 16>}, {pipeline_mode = #tpu.pipeline_mode<synchronous>, transform_indices = @transform_9, window_bounds = array<i64: 2, 1, 16>}, {pipeline_mode = #tpu.pipeline_mode<synchronous>, transform_indices = @transform_10, window_bounds = array<i64: 2, 16, 32>}, {pipeline_mode = #tpu.pipeline_mode<synchronous>, transform_indices = @transform_11, window_bounds = array<i64: 1, 32>}, {pipeline_mode = #tpu.pipeline_mode<synchronous>, transform_indices = @transform_12, window_bounds = array<i64: 1, 32>}, {pipeline_mode = #tpu.pipeline_mode<synchronous>, transform_indices = @transform_13, window_bounds = array<i64: 1, 32>}, {pipeline_mode = #tpu.pipeline_mode<synchronous>, transform_indices = @transform_14, window_bounds = array<i64: 32, 64>}, {pipeline_mode = #tpu.pipeline_mode<synchronous>, transform_indices = @transform_15, window_bounds = array<i64: 1, 64>}, {pipeline_mode = #tpu.pipeline_mode<synchronous>, transform_indices = @transform_16, window_bounds = array<i64: 64, 32>}, {pipeline_mode = #tpu.pipeline_mode<synchronous>, transform_indices = @transform_17, window_bounds = array<i64: 1, 32>}, {transform_indices = @transform_18, window_bounds = array<i64: 1, 1, 4, 32>}]} {
    %c0 = arith.constant 0 : index
    %c0_0 = arith.constant 0 : index
    %c0_1 = arith.constant 0 : index
    %c0_2 = arith.constant 0 : index
    %0 = vector.load %arg2[%c0, %c0_0, %c0_1, %c0_2] : memref<1x1x4x32xf32, #tpu.memory_space<vmem>>, vector<1x1x4x32xf32>
    %1 = vector.shape_cast %0 : vector<1x1x4x32xf32> to vector<4x32xf32>
    %c0_3 = arith.constant 0 : index
    %c0_4 = arith.constant 0 : index
    %c0_5 = arith.constant 0 : index
    %c0_6 = arith.constant 0 : index
    %2 = vector.load %arg3[%c0_3, %c0_4, %c0_5, %c0_6] : memref<1x2x4x4xf32, #tpu.memory_space<vmem>>, vector<1x2x4x4xf32>
    %3 = vector.shape_cast %2 : vector<1x2x4x4xf32> to vector<2x4x4xf32>
    %c0_7 = arith.constant 0 : index
    %c0_8 = arith.constant 0 : index
    %4 = vector.load %arg4[%c0_7, %c0_8] : memref<1x32xf32, #tpu.memory_space<vmem>>, vector<1x32xf32>
    %c0_9 = arith.constant 0 : index
    %c0_10 = arith.constant 0 : index
    %5 = vector.load %arg5[%c0_9, %c0_10] : memref<1x32xf32, #tpu.memory_space<vmem>>, vector<1x32xf32>
    %cst = arith.constant dense<0.000000e+00> : vector<4xf32>
    %6 = vector.multi_reduction <add>, %1, %cst [1] : vector<4x32xf32> to vector<4xf32>
    %7 = vector.shape_cast %6 : vector<4xf32> to vector<4x1xf32>
    %cst_11 = arith.constant 3.200000e+01 : f32
    %8 = vector.broadcast %cst_11 : f32 to vector<4x1xf32>
    %9 = arith.divf %7, %8 : vector<4x1xf32>
    %10 = vector.broadcast %9 : vector<4x1xf32> to vector<4x32xf32>
    %11 = arith.subf %1, %10 : vector<4x32xf32>
    %12 = arith.mulf %11, %11 : vector<4x32xf32>
    %cst_12 = arith.constant dense<0.000000e+00> : vector<4xf32>
    %13 = vector.multi_reduction <add>, %12, %cst_12 [1] : vector<4x32xf32> to vector<4xf32>
    %14 = vector.shape_cast %13 : vector<4xf32> to vector<4x1xf32>
    %cst_13 = arith.constant 3.200000e+01 : f32
    %15 = vector.broadcast %cst_13 : f32 to vector<4x1xf32>
    %16 = arith.divf %14, %15 : vector<4x1xf32>
    %cst_14 = arith.constant 9.99999974E-6 : f32
    %17 = vector.broadcast %cst_14 : f32 to vector<4x1xf32>
    %18 = arith.addf %16, %17 : vector<4x1xf32>
    %19 = math.rsqrt %18 : vector<4x1xf32>
    %20 = vector.broadcast %19 : vector<4x1xf32> to vector<4x32xf32>
    %21 = arith.mulf %11, %20 : vector<4x32xf32>
    %22 = vector.broadcast %4 : vector<1x32xf32> to vector<4x32xf32>
    %23 = arith.mulf %21, %22 : vector<4x32xf32>
    %24 = vector.broadcast %5 : vector<1x32xf32> to vector<4x32xf32>
    %25 = arith.addf %23, %24 : vector<4x32xf32>
    %26 = arith.truncf %25 : vector<4x32xf32> to vector<4x32xbf16>
    %27 = vector.shape_cast %26 : vector<4x32xbf16> to vector<1x4x32xbf16>
    %28 = vector.shape_cast %27 : vector<1x4x32xbf16> to vector<1x4x32xbf16>
    %29 = vector.broadcast %28 : vector<1x4x32xbf16> to vector<2x4x32xbf16>
    %c0_15 = arith.constant 0 : index
    %c0_16 = arith.constant 0 : index
    %c0_17 = arith.constant 0 : index
    %30 = vector.load %arg6[%c0_15, %c0_16, %c0_17] : memref<2x32x16xbf16, #tpu.memory_space<vmem>>, vector<2x32x16xbf16>
    %cst_18 = arith.constant dense<0.000000e+00> : vector<2x4x16xf32>
    %31 = tpu.matmul %29, %30, %cst_18 {dimension_numbers = #tpu.dot_dimension_numbers<[2], [1], [1], [2], [0, 0, 0, 1, 1, 2], [0], [0]>} : vector<2x4x32xbf16>, vector<2x32x16xbf16>, vector<2x4x16xf32> -> vector<2x4x16xf32>
    %c0_19 = arith.constant 0 : index
    %c0_20 = arith.constant 0 : index
    %c0_21 = arith.constant 0 : index
    %32 = vector.load %arg7[%c0_19, %c0_20, %c0_21] : memref<2x1x16xf32, #tpu.memory_space<vmem>>, vector<2x1x16xf32>
    %33 = vector.broadcast %32 : vector<2x1x16xf32> to vector<2x4x16xf32>
    %34 = arith.addf %31, %33 : vector<2x4x16xf32>
    %c0_22 = arith.constant 0 : index
    %c0_23 = arith.constant 0 : index
    %c0_24 = arith.constant 0 : index
    %35 = vector.load %arg8[%c0_22, %c0_23, %c0_24] : memref<2x32x16xbf16, #tpu.memory_space<vmem>>, vector<2x32x16xbf16>
    %cst_25 = arith.constant dense<0.000000e+00> : vector<2x4x16xf32>
    %36 = tpu.matmul %29, %35, %cst_25 {dimension_numbers = #tpu.dot_dimension_numbers<[2], [1], [1], [2], [0, 0, 0, 1, 1, 2], [0], [0]>} : vector<2x4x32xbf16>, vector<2x32x16xbf16>, vector<2x4x16xf32> -> vector<2x4x16xf32>
    %c0_26 = arith.constant 0 : index
    %c0_27 = arith.constant 0 : index
    %c0_28 = arith.constant 0 : index
    %37 = vector.load %arg9[%c0_26, %c0_27, %c0_28] : memref<2x1x16xf32, #tpu.memory_space<vmem>>, vector<2x1x16xf32>
    %38 = vector.broadcast %37 : vector<2x1x16xf32> to vector<2x4x16xf32>
    %39 = arith.addf %36, %38 : vector<2x4x16xf32>
    %c0_29 = arith.constant 0 : index
    %c0_30 = arith.constant 0 : index
    %c0_31 = arith.constant 0 : index
    %40 = vector.load %arg10[%c0_29, %c0_30, %c0_31] : memref<2x32x16xbf16, #tpu.memory_space<vmem>>, vector<2x32x16xbf16>
    %cst_32 = arith.constant dense<0.000000e+00> : vector<2x4x16xf32>
    %41 = tpu.matmul %29, %40, %cst_32 {dimension_numbers = #tpu.dot_dimension_numbers<[2], [1], [1], [2], [0, 0, 0, 1, 1, 2], [0], [0]>} : vector<2x4x32xbf16>, vector<2x32x16xbf16>, vector<2x4x16xf32> -> vector<2x4x16xf32>
    %c0_33 = arith.constant 0 : index
    %c0_34 = arith.constant 0 : index
    %c0_35 = arith.constant 0 : index
    %42 = vector.load %arg11[%c0_33, %c0_34, %c0_35] : memref<2x1x16xf32, #tpu.memory_space<vmem>>, vector<2x1x16xf32>
    %43 = vector.broadcast %42 : vector<2x1x16xf32> to vector<2x4x16xf32>
    %44 = arith.addf %41, %43 : vector<2x4x16xf32>
    %45 = arith.truncf %34 : vector<2x4x16xf32> to vector<2x4x16xbf16>
    %46 = arith.truncf %39 : vector<2x4x16xf32> to vector<2x4x16xbf16>
    %cst_36 = arith.constant dense<0.000000e+00> : vector<2x4x4xf32>
    %47 = tpu.matmul %45, %46, %cst_36 {dimension_numbers = #tpu.dot_dimension_numbers<[2], [2], [1], [1], [0, 0, 0, 1, 1, 1], [0], [0]>} : vector<2x4x16xbf16>, vector<2x4x16xbf16>, vector<2x4x4xf32> -> vector<2x4x4xf32>
    %cst_37 = arith.constant 2.500000e-01 : f32
    %48 = vector.broadcast %cst_37 : f32 to vector<2x4x4xf32>
    %49 = arith.mulf %47, %48 : vector<2x4x4xf32>
    %50 = arith.addf %49, %3 : vector<2x4x4xf32>
    %cst_38 = arith.constant dense<0xFF800000> : vector<2x4xf32>
    %51 = vector.multi_reduction <maximumf>, %50, %cst_38 [2] : vector<2x4x4xf32> to vector<2x4xf32>
    %52 = vector.shape_cast %51 : vector<2x4xf32> to vector<2x4x1xf32>
    %53 = vector.broadcast %52 : vector<2x4x1xf32> to vector<2x4x4xf32>
    %54 = arith.subf %50, %53 : vector<2x4x4xf32>
    %55 = math.exp %54 : vector<2x4x4xf32>
    %cst_39 = arith.constant dense<0.000000e+00> : vector<2x4xf32>
    %56 = vector.multi_reduction <add>, %55, %cst_39 [2] : vector<2x4x4xf32> to vector<2x4xf32>
    %57 = vector.shape_cast %56 : vector<2x4xf32> to vector<2x4x1xf32>
    %58 = tpu.reciprocal %57 : vector<2x4x1xf32> -> vector<2x4x1xf32>
    %59 = vector.broadcast %58 : vector<2x4x1xf32> to vector<2x4x4xf32>
    %60 = arith.mulf %55, %59 : vector<2x4x4xf32>
    %61 = arith.truncf %60 : vector<2x4x4xf32> to vector<2x4x4xbf16>
    %62 = arith.truncf %44 : vector<2x4x16xf32> to vector<2x4x16xbf16>
    %cst_40 = arith.constant dense<0.000000e+00> : vector<2x4x16xf32>
    %63 = tpu.matmul %61, %62, %cst_40 {dimension_numbers = #tpu.dot_dimension_numbers<[2], [1], [1], [2], [0, 0, 0, 1, 1, 2], [0], [0]>} : vector<2x4x4xbf16>, vector<2x4x16xbf16>, vector<2x4x16xf32> -> vector<2x4x16xf32>
    %64 = arith.truncf %63 : vector<2x4x16xf32> to vector<2x4x16xbf16>
    %c0_41 = arith.constant 0 : index
    %c0_42 = arith.constant 0 : index
    %c0_43 = arith.constant 0 : index
    %65 = vector.load %arg12[%c0_41, %c0_42, %c0_43] : memref<2x16x32xbf16, #tpu.memory_space<vmem>>, vector<2x16x32xbf16>
    %cst_44 = arith.constant dense<0.000000e+00> : vector<2x4x32xf32>
    %66 = tpu.matmul %64, %65, %cst_44 {dimension_numbers = #tpu.dot_dimension_numbers<[2], [1], [1], [2], [0, 0, 0, 1, 1, 2], [0], [0]>} : vector<2x4x16xbf16>, vector<2x16x32xbf16>, vector<2x4x32xf32> -> vector<2x4x32xf32>
    %cst_45 = arith.constant dense<0.000000e+00> : vector<4x32xf32>
    %67 = vector.multi_reduction <add>, %66, %cst_45 [0] : vector<2x4x32xf32> to vector<4x32xf32>
    %68 = arith.addf %1, %67 : vector<4x32xf32>
    %c0_46 = arith.constant 0 : index
    %c0_47 = arith.constant 0 : index
    %69 = vector.load %arg13[%c0_46, %c0_47] : memref<1x32xf32, #tpu.memory_space<vmem>>, vector<1x32xf32>
    %70 = vector.broadcast %69 : vector<1x32xf32> to vector<4x32xf32>
    %71 = arith.addf %68, %70 : vector<4x32xf32>
    %c0_48 = arith.constant 0 : index
    %c0_49 = arith.constant 0 : index
    %72 = vector.load %arg14[%c0_48, %c0_49] : memref<1x32xf32, #tpu.memory_space<vmem>>, vector<1x32xf32>
    %c0_50 = arith.constant 0 : index
    %c0_51 = arith.constant 0 : index
    %73 = vector.load %arg15[%c0_50, %c0_51] : memref<1x32xf32, #tpu.memory_space<vmem>>, vector<1x32xf32>
    %cst_52 = arith.constant dense<0.000000e+00> : vector<4xf32>
    %74 = vector.multi_reduction <add>, %71, %cst_52 [1] : vector<4x32xf32> to vector<4xf32>
    %75 = vector.shape_cast %74 : vector<4xf32> to vector<4x1xf32>
    %cst_53 = arith.constant 3.200000e+01 : f32
    %76 = vector.broadcast %cst_53 : f32 to vector<4x1xf32>
    %77 = arith.divf %75, %76 : vector<4x1xf32>
    %78 = vector.broadcast %77 : vector<4x1xf32> to vector<4x32xf32>
    %79 = arith.subf %71, %78 : vector<4x32xf32>
    %80 = arith.mulf %79, %79 : vector<4x32xf32>
    %cst_54 = arith.constant dense<0.000000e+00> : vector<4xf32>
    %81 = vector.multi_reduction <add>, %80, %cst_54 [1] : vector<4x32xf32> to vector<4xf32>
    %82 = vector.shape_cast %81 : vector<4xf32> to vector<4x1xf32>
    %cst_55 = arith.constant 3.200000e+01 : f32
    %83 = vector.broadcast %cst_55 : f32 to vector<4x1xf32>
    %84 = arith.divf %82, %83 : vector<4x1xf32>
    %cst_56 = arith.constant 9.99999974E-6 : f32
    %85 = vector.broadcast %cst_56 : f32 to vector<4x1xf32>
    %86 = arith.addf %84, %85 : vector<4x1xf32>
    %87 = math.rsqrt %86 : vector<4x1xf32>
    %88 = vector.broadcast %87 : vector<4x1xf32> to vector<4x32xf32>
    %89 = arith.mulf %79, %88 : vector<4x32xf32>
    %90 = vector.broadcast %72 : vector<1x32xf32> to vector<4x32xf32>
    %91 = arith.mulf %89, %90 : vector<4x32xf32>
    %92 = vector.broadcast %73 : vector<1x32xf32> to vector<4x32xf32>
    %93 = arith.addf %91, %92 : vector<4x32xf32>
    %94 = arith.truncf %93 : vector<4x32xf32> to vector<4x32xbf16>
    %c0_57 = arith.constant 0 : index
    %c0_58 = arith.constant 0 : index
    %95 = vector.load %arg16[%c0_57, %c0_58] : memref<32x64xbf16, #tpu.memory_space<vmem>>, vector<32x64xbf16>
    %cst_59 = arith.constant dense<0.000000e+00> : vector<4x64xf32>
    %96 = tpu.matmul %94, %95, %cst_59 {dimension_numbers = #tpu.dot_dimension_numbers<[1], [0], [0], [1], [0, 0, 1, 1], [], []>} : vector<4x32xbf16>, vector<32x64xbf16>, vector<4x64xf32> -> vector<4x64xf32>
    %c0_60 = arith.constant 0 : index
    %c0_61 = arith.constant 0 : index
    %97 = vector.load %arg17[%c0_60, %c0_61] : memref<1x64xf32, #tpu.memory_space<vmem>>, vector<1x64xf32>
    %98 = vector.broadcast %97 : vector<1x64xf32> to vector<4x64xf32>
    %99 = arith.addf %96, %98 : vector<4x64xf32>
    %cst_62 = arith.constant 5.000000e-01 : f32
    %100 = vector.broadcast %cst_62 : f32 to vector<4x64xf32>
    %101 = arith.mulf %100, %99 : vector<4x64xf32>
    %cst_63 = arith.constant 4.471500e-02 : f32
    %102 = vector.broadcast %cst_63 : f32 to vector<4x64xf32>
    %103 = arith.mulf %102, %99 : vector<4x64xf32>
    %104 = arith.mulf %103, %99 : vector<4x64xf32>
    %105 = arith.mulf %104, %99 : vector<4x64xf32>
    %106 = arith.addf %99, %105 : vector<4x64xf32>
    %cst_64 = arith.constant 0.797884583 : f32
    %107 = vector.broadcast %cst_64 : f32 to vector<4x64xf32>
    %108 = arith.mulf %107, %106 : vector<4x64xf32>
    %109 = math.tanh %108 : vector<4x64xf32>
    %cst_65 = arith.constant 1.000000e+00 : f32
    %110 = vector.broadcast %cst_65 : f32 to vector<4x64xf32>
    %111 = arith.addf %110, %109 : vector<4x64xf32>
    %112 = arith.mulf %101, %111 : vector<4x64xf32>
    %113 = arith.truncf %112 : vector<4x64xf32> to vector<4x64xbf16>
    %c0_66 = arith.constant 0 : index
    %c0_67 = arith.constant 0 : index
    %114 = vector.load %arg18[%c0_66, %c0_67] : memref<64x32xbf16, #tpu.memory_space<vmem>>, vector<64x32xbf16>
    %cst_68 = arith.constant dense<0.000000e+00> : vector<4x32xf32>
    %115 = tpu.matmul %113, %114, %cst_68 {dimension_numbers = #tpu.dot_dimension_numbers<[1], [0], [0], [1], [0, 0, 1, 1], [], []>} : vector<4x64xbf16>, vector<64x32xbf16>, vector<4x32xf32> -> vector<4x32xf32>
    %c0_69 = arith.constant 0 : index
    %c0_70 = arith.constant 0 : index
    %116 = vector.load %arg19[%c0_69, %c0_70] : memref<1x32xf32, #tpu.memory_space<vmem>>, vector<1x32xf32>
    %117 = vector.broadcast %116 : vector<1x32xf32> to vector<4x32xf32>
    %118 = arith.addf %115, %117 : vector<4x32xf32>
    %119 = arith.addf %71, %118 : vector<4x32xf32>
    %120 = vector.shape_cast %119 : vector<4x32xf32> to vector<1x1x4x32xf32>
    %c0_71 = arith.constant 0 : index
    %c0_72 = arith.constant 0 : index
    %c0_73 = arith.constant 0 : index
    %c0_74 = arith.constant 0 : index
    %121 = vector.load %arg20[%c0_71, %c0_72, %c0_73, %c0_74] : memref<1x1x4x32xf32, #tpu.memory_space<vmem>>, vector<1x1x4x32xf32>
    tpu.vector_store %arg20[%c0_71, %c0_72, %c0_73, %c0_74], %120 {strides = array<i32>} : memref<1x1x4x32xf32, #tpu.memory_space<vmem>>, vector<1x1x4x32xf32>,
    return
  }
  func.func @transform_0(%arg0: i32, %arg1: i32) -> (i32, i32, i32, i32) {
    %c0_i32 = arith.constant 0 : i32
    %c0_i32_0 = arith.constant 0 : i32
    %c0_i32_1 = arith.constant 0 : i32
    return %arg0, %arg1, %c0_i32, %c0_i32_0 : i32, i32, i32, i32
  }
  func.func @transform_1(%arg0: i32, %arg1: i32) -> (i32, i32, i32, i32) {
    %c0_i32 = arith.constant 0 : i32
    %c0_i32_0 = arith.constant 0 : i32
    %c0_i32_1 = arith.constant 0 : i32
    %c0_i32_2 = arith.constant 0 : i32
    return %arg1, %c0_i32, %c0_i32_0, %c0_i32_1 : i32, i32, i32, i32
  }
  func.func @transform_2(%arg0: i32, %arg1: i32) -> (i32, i32) {
    %c0_i32 = arith.constant 0 : i32
    %c0_i32_0 = arith.constant 0 : i32
    %c0_i32_1 = arith.constant 0 : i32
    return %c0_i32, %c0_i32_0 : i32, i32
  }
  func.func @transform_3(%arg0: i32, %arg1: i32) -> (i32, i32) {
    %c0_i32 = arith.constant 0 : i32
    %c0_i32_0 = arith.constant 0 : i32
    %c0_i32_1 = arith.constant 0 : i32
    return %c0_i32, %c0_i32_0 : i32, i32
  }
  func.func @transform_4(%arg0: i32, %arg1: i32) -> (i32, i32, i32) {
    %c0_i32 = arith.constant 0 : i32
    %c0_i32_0 = arith.constant 0 : i32
    %c0_i32_1 = arith.constant 0 : i32
    %c0_i32_2 = arith.constant 0 : i32
    return %c0_i32, %c0_i32_0, %c0_i32_1 : i32, i32, i32
  }
  func.func @transform_5(%arg0: i32, %arg1: i32) -> (i32, i32, i32) {
    %c0_i32 = arith.constant 0 : i32
    %c0_i32_0 = arith.constant 0 : i32
    %c0_i32_1 = arith.constant 0 : i32
    %c0_i32_2 = arith.constant 0 : i32
    return %c0_i32, %c0_i32_0, %c0_i32_1 : i32, i32, i32
  }
  func.func @transform_6(%arg0: i32, %arg1: i32) -> (i32, i32, i32) {
    %c0_i32 = arith.constant 0 : i32
    %c0_i32_0 = arith.constant 0 : i32
    %c0_i32_1 = arith.constant 0 : i32
    %c0_i32_2 = arith.constant 0 : i32
    return %c0_i32, %c0_i32_0, %c0_i32_1 : i32, i32, i32
  }
  func.func @transform_7(%arg0: i32, %arg1: i32) -> (i32, i32, i32) {
    %c0_i32 = arith.constant 0 : i32
    %c0_i32_0 = arith.constant 0 : i32
    %c0_i32_1 = arith.constant 0 : i32
    %c0_i32_2 = arith.constant 0 : i32
    return %c0_i32, %c0_i32_0, %c0_i32_1 : i32, i32, i32
  }
  func.func @transform_8(%arg0: i32, %arg1: i32) -> (i32, i32, i32) {
    %c0_i32 = arith.constant 0 : i32
    %c0_i32_0 = arith.constant 0 : i32
    %c0_i32_1 = arith.constant 0 : i32
    %c0_i32_2 = arith.constant 0 : i32
    return %c0_i32, %c0_i32_0, %c0_i32_1 : i32, i32, i32
  }
  func.func @transform_9(%arg0: i32, %arg1: i32) -> (i32, i32, i32) {
    %c0_i32 = arith.constant 0 : i32
    %c0_i32_0 = arith.constant 0 : i32
    %c0_i32_1 = arith.constant 0 : i32
    %c0_i32_2 = arith.constant 0 : i32
    return %c0_i32, %c0_i32_0, %c0_i32_1 : i32, i32, i32
  }
  func.func @transform_10(%arg0: i32, %arg1: i32) -> (i32, i32, i32) {
    %c0_i32 = arith.constant 0 : i32
    %c0_i32_0 = arith.constant 0 : i32
    %c0_i32_1 = arith.constant 0 : i32
    %c0_i32_2 = arith.constant 0 : i32
    return %c0_i32, %c0_i32_0, %c0_i32_1 : i32, i32, i32
  }
  func.func @transform_11(%arg0: i32, %arg1: i32) -> (i32, i32) {
    %c0_i32 = arith.constant 0 : i32
    %c0_i32_0 = arith.constant 0 : i32
    %c0_i32_1 = arith.constant 0 : i32
    return %c0_i32, %c0_i32_0 : i32, i32
  }
  func.func @transform_12(%arg0: i32, %arg1: i32) -> (i32, i32) {
    %c0_i32 = arith.constant 0 : i32
    %c0_i32_0 = arith.constant 0 : i32
    %c0_i32_1 = arith.constant 0 : i32
    return %c0_i32, %c0_i32_0 : i32, i32
  }
  func.func @transform_13(%arg0: i32, %arg1: i32) -> (i32, i32) {
    %c0_i32 = arith.constant 0 : i32
    %c0_i32_0 = arith.constant 0 : i32
    %c0_i32_1 = arith.constant 0 : i32
    return %c0_i32, %c0_i32_0 : i32, i32
  }
  func.func @transform_14(%arg0: i32, %arg1: i32) -> (i32, i32) {
    %c0_i32 = arith.constant 0 : i32
    %c0_i32_0 = arith.constant 0 : i32
    %c0_i32_1 = arith.constant 0 : i32
    return %c0_i32, %c0_i32_0 : i32, i32
  }
  func.func @transform_15(%arg0: i32, %arg1: i32) -> (i32, i32) {
    %c0_i32 = arith.constant 0 : i32
    %c0_i32_0 = arith.constant 0 : i32
    %c0_i32_1 = arith.constant 0 : i32
    return %c0_i32, %c0_i32_0 : i32, i32
  }
  func.func @transform_16(%arg0: i32, %arg1: i32) -> (i32, i32) {
    %c0_i32 = arith.constant 0 : i32
    %c0_i32_0 = arith.constant 0 : i32
    %c0_i32_1 = arith.constant 0 : i32
    return %c0_i32, %c0_i32_0 : i32, i32
  }
  func.func @transform_17(%arg0: i32, %arg1: i32) -> (i32, i32) {
    %c0_i32 = arith.constant 0 : i32
    %c0_i32_0 = arith.constant 0 : i32
    %c0_i32_1 = arith.constant 0 : i32
    return %c0_i32, %c0_i32_0 : i32, i32
  }
  func.func @transform_18(%arg0: i32, %arg1: i32) -> (i32, i32, i32, i32) {
    %c0_i32 = arith.constant 0 : i32
    %c0_i32_0 = arith.constant 0 : i32
    %c0_i32_1 = arith.constant 0 : i32
    return %arg0, %arg1, %c0_i32, %c0_i32_0 : i32, i32, i32, i32
  }
}

module attributes {stable_mosaic.version = 11 : i64} {
  func.func @_patch_merge_kernel(%arg0: memref<8x128xf32, #tpu.memory_space<vmem>>, %arg1: memref<1x128xf32, #tpu.memory_space<vmem>>, %arg2: memref<1x128xf32, #tpu.memory_space<vmem>>, %arg3: memref<128x64xbf16, #tpu.memory_space<vmem>>, %arg4: memref<8x64xf32, #tpu.memory_space<vmem>>) attributes {dimension_semantics = [], scalar_prefetch = 0 : i64, scratch_operands = 0 : i64, tpu.core_type = #tpu.core_type<tc>} {
    %c0 = arith.constant 0 : index
    %c0_0 = arith.constant 0 : index
    %0 = vector.load %arg0[%c0, %c0_0] : memref<8x128xf32, #tpu.memory_space<vmem>>, vector<8x128xf32>
    %c0_1 = arith.constant 0 : index
    %c0_2 = arith.constant 0 : index
    %1 = vector.load %arg1[%c0_1, %c0_2] : memref<1x128xf32, #tpu.memory_space<vmem>>, vector<1x128xf32>
    %c0_3 = arith.constant 0 : index
    %c0_4 = arith.constant 0 : index
    %2 = vector.load %arg2[%c0_3, %c0_4] : memref<1x128xf32, #tpu.memory_space<vmem>>, vector<1x128xf32>
    %cst = arith.constant dense<0.000000e+00> : vector<8xf32>
    %3 = vector.multi_reduction <add>, %0, %cst [1] : vector<8x128xf32> to vector<8xf32>
    %4 = vector.shape_cast %3 : vector<8xf32> to vector<8x1xf32>
    %cst_5 = arith.constant 1.280000e+02 : f32
    %5 = vector.broadcast %cst_5 : f32 to vector<8x1xf32>
    %6 = arith.divf %4, %5 : vector<8x1xf32>
    %7 = vector.broadcast %6 : vector<8x1xf32> to vector<8x128xf32>
    %8 = arith.subf %0, %7 : vector<8x128xf32>
    %9 = arith.mulf %8, %8 : vector<8x128xf32>
    %cst_6 = arith.constant dense<0.000000e+00> : vector<8xf32>
    %10 = vector.multi_reduction <add>, %9, %cst_6 [1] : vector<8x128xf32> to vector<8xf32>
    %11 = vector.shape_cast %10 : vector<8xf32> to vector<8x1xf32>
    %cst_7 = arith.constant 1.280000e+02 : f32
    %12 = vector.broadcast %cst_7 : f32 to vector<8x1xf32>
    %13 = arith.divf %11, %12 : vector<8x1xf32>
    %cst_8 = arith.constant 9.99999974E-6 : f32
    %14 = vector.broadcast %cst_8 : f32 to vector<8x1xf32>
    %15 = arith.addf %13, %14 : vector<8x1xf32>
    %16 = math.rsqrt %15 : vector<8x1xf32>
    %17 = vector.broadcast %16 : vector<8x1xf32> to vector<8x128xf32>
    %18 = arith.mulf %8, %17 : vector<8x128xf32>
    %19 = vector.broadcast %1 : vector<1x128xf32> to vector<8x128xf32>
    %20 = arith.mulf %18, %19 : vector<8x128xf32>
    %21 = vector.broadcast %2 : vector<1x128xf32> to vector<8x128xf32>
    %22 = arith.addf %20, %21 : vector<8x128xf32>
    %23 = arith.truncf %22 : vector<8x128xf32> to vector<8x128xbf16>
    %c0_9 = arith.constant 0 : index
    %c0_10 = arith.constant 0 : index
    %24 = vector.load %arg3[%c0_9, %c0_10] : memref<128x64xbf16, #tpu.memory_space<vmem>>, vector<128x64xbf16>
    %cst_11 = arith.constant dense<0.000000e+00> : vector<8x64xf32>
    %25 = tpu.matmul %23, %24, %cst_11 {dimension_numbers = #tpu.dot_dimension_numbers<[1], [0], [0], [1], [0, 0, 1, 1], [], []>} : vector<8x128xbf16>, vector<128x64xbf16>, vector<8x64xf32> -> vector<8x64xf32>
    %c0_12 = arith.constant 0 : index
    %c0_13 = arith.constant 0 : index
    %26 = vector.load %arg4[%c0_12, %c0_13] : memref<8x64xf32, #tpu.memory_space<vmem>>, vector<8x64xf32>
    tpu.vector_store %arg4[%c0_12, %c0_13], %25 {strides = array<i32>} : memref<8x64xf32, #tpu.memory_space<vmem>>, vector<8x64xf32>,
    return
  }
}

module attributes {stable_mosaic.version = 11 : i64} {
  func.func @_swin_block_kernel(%arg0: i32, %arg1: i32, %arg2: memref<1x1x4x64xf32, #tpu.memory_space<vmem>>, %arg3: memref<1x4x4x4xf32, #tpu.memory_space<vmem>>, %arg4: memref<1x64xf32, #tpu.memory_space<vmem>>, %arg5: memref<1x64xf32, #tpu.memory_space<vmem>>, %arg6: memref<4x64x16xbf16, #tpu.memory_space<vmem>>, %arg7: memref<4x1x16xf32, #tpu.memory_space<vmem>>, %arg8: memref<4x64x16xbf16, #tpu.memory_space<vmem>>, %arg9: memref<4x1x16xf32, #tpu.memory_space<vmem>>, %arg10: memref<4x64x16xbf16, #tpu.memory_space<vmem>>, %arg11: memref<4x1x16xf32, #tpu.memory_space<vmem>>, %arg12: memref<4x16x64xbf16, #tpu.memory_space<vmem>>, %arg13: memref<1x64xf32, #tpu.memory_space<vmem>>, %arg14: memref<1x64xf32, #tpu.memory_space<vmem>>, %arg15: memref<1x64xf32, #tpu.memory_space<vmem>>, %arg16: memref<64x128xbf16, #tpu.memory_space<vmem>>, %arg17: memref<1x128xf32, #tpu.memory_space<vmem>>, %arg18: memref<128x64xbf16, #tpu.memory_space<vmem>>, %arg19: memref<1x64xf32, #tpu.memory_space<vmem>>, %arg20: memref<1x1x4x64xf32, #tpu.memory_space<vmem>>) attributes {dimension_semantics = [#tpu.dimension_semantics<parallel>, #tpu.dimension_semantics<parallel>], iteration_bounds = array<i64: 2, 1>, scalar_prefetch = 0 : i64, scratch_operands = 0 : i64, tpu.core_type = #tpu.core_type<tc>, window_params = [{transform_indices = @transform_0, window_bounds = array<i64: 1, 1, 4, 64>}, {transform_indices = @transform_1, window_bounds = array<i64: 1, 4, 4, 4>}, {pipeline_mode = #tpu.pipeline_mode<synchronous>, transform_indices = @transform_2, window_bounds = array<i64: 1, 64>}, {pipeline_mode = #tpu.pipeline_mode<synchronous>, transform_indices = @transform_3, window_bounds = array<i64: 1, 64>}, {pipeline_mode = #tpu.pipeline_mode<synchronous>, transform_indices = @transform_4, window_bounds = array<i64: 4, 64, 16>}, {pipeline_mode = #tpu.pipeline_mode<synchronous>, transform_indices = @transform_5, window_bounds = array<i64: 4, 1, 16>}, {pipeline_mode = #tpu.pipeline_mode<synchronous>, transform_indices = @transform_6, window_bounds = array<i64: 4, 64, 16>}, {pipeline_mode = #tpu.pipeline_mode<synchronous>, transform_indices = @transform_7, window_bounds = array<i64: 4, 1, 16>}, {pipeline_mode = #tpu.pipeline_mode<synchronous>, transform_indices = @transform_8, window_bounds = array<i64: 4, 64, 16>}, {pipeline_mode = #tpu.pipeline_mode<synchronous>, transform_indices = @transform_9, window_bounds = array<i64: 4, 1, 16>}, {pipeline_mode = #tpu.pipeline_mode<synchronous>, transform_indices = @transform_10, window_bounds = array<i64: 4, 16, 64>}, {pipeline_mode = #tpu.pipeline_mode<synchronous>, transform_indices = @transform_11, window_bounds = array<i64: 1, 64>}, {pipeline_mode = #tpu.pipeline_mode<synchronous>, transform_indices = @transform_12, window_bounds = array<i64: 1, 64>}, {pipeline_mode = #tpu.pipeline_mode<synchronous>, transform_indices = @transform_13, window_bounds = array<i64: 1, 64>}, {pipeline_mode = #tpu.pipeline_mode<synchronous>, transform_indices = @transform_14, window_bounds = array<i64: 64, 128>}, {pipeline_mode = #tpu.pipeline_mode<synchronous>, transform_indices = @transform_15, window_bounds = array<i64: 1, 128>}, {pipeline_mode = #tpu.pipeline_mode<synchronous>, transform_indices = @transform_16, window_bounds = array<i64: 128, 64>}, {pipeline_mode = #tpu.pipeline_mode<synchronous>, transform_indices = @transform_17, window_bounds = array<i64: 1, 64>}, {transform_indices = @transform_18, window_bounds = array<i64: 1, 1, 4, 64>}]} {
    %c0 = arith.constant 0 : index
    %c0_0 = arith.constant 0 : index
    %c0_1 = arith.constant 0 : index
    %c0_2 = arith.constant 0 : index
    %0 = vector.load %arg2[%c0, %c0_0, %c0_1, %c0_2] : memref<1x1x4x64xf32, #tpu.memory_space<vmem>>, vector<1x1x4x64xf32>
    %1 = vector.shape_cast %0 : vector<1x1x4x64xf32> to vector<4x64xf32>
    %c0_3 = arith.constant 0 : index
    %c0_4 = arith.constant 0 : index
    %c0_5 = arith.constant 0 : index
    %c0_6 = arith.constant 0 : index
    %2 = vector.load %arg3[%c0_3, %c0_4, %c0_5, %c0_6] : memref<1x4x4x4xf32, #tpu.memory_space<vmem>>, vector<1x4x4x4xf32>
    %3 = vector.shape_cast %2 : vector<1x4x4x4xf32> to vector<4x4x4xf32>
    %c0_7 = arith.constant 0 : index
    %c0_8 = arith.constant 0 : index
    %4 = vector.load %arg4[%c0_7, %c0_8] : memref<1x64xf32, #tpu.memory_space<vmem>>, vector<1x64xf32>
    %c0_9 = arith.constant 0 : index
    %c0_10 = arith.constant 0 : index
    %5 = vector.load %arg5[%c0_9, %c0_10] : memref<1x64xf32, #tpu.memory_space<vmem>>, vector<1x64xf32>
    %cst = arith.constant dense<0.000000e+00> : vector<4xf32>
    %6 = vector.multi_reduction <add>, %1, %cst [1] : vector<4x64xf32> to vector<4xf32>
    %7 = vector.shape_cast %6 : vector<4xf32> to vector<4x1xf32>
    %cst_11 = arith.constant 6.400000e+01 : f32
    %8 = vector.broadcast %cst_11 : f32 to vector<4x1xf32>
    %9 = arith.divf %7, %8 : vector<4x1xf32>
    %10 = vector.broadcast %9 : vector<4x1xf32> to vector<4x64xf32>
    %11 = arith.subf %1, %10 : vector<4x64xf32>
    %12 = arith.mulf %11, %11 : vector<4x64xf32>
    %cst_12 = arith.constant dense<0.000000e+00> : vector<4xf32>
    %13 = vector.multi_reduction <add>, %12, %cst_12 [1] : vector<4x64xf32> to vector<4xf32>
    %14 = vector.shape_cast %13 : vector<4xf32> to vector<4x1xf32>
    %cst_13 = arith.constant 6.400000e+01 : f32
    %15 = vector.broadcast %cst_13 : f32 to vector<4x1xf32>
    %16 = arith.divf %14, %15 : vector<4x1xf32>
    %cst_14 = arith.constant 9.99999974E-6 : f32
    %17 = vector.broadcast %cst_14 : f32 to vector<4x1xf32>
    %18 = arith.addf %16, %17 : vector<4x1xf32>
    %19 = math.rsqrt %18 : vector<4x1xf32>
    %20 = vector.broadcast %19 : vector<4x1xf32> to vector<4x64xf32>
    %21 = arith.mulf %11, %20 : vector<4x64xf32>
    %22 = vector.broadcast %4 : vector<1x64xf32> to vector<4x64xf32>
    %23 = arith.mulf %21, %22 : vector<4x64xf32>
    %24 = vector.broadcast %5 : vector<1x64xf32> to vector<4x64xf32>
    %25 = arith.addf %23, %24 : vector<4x64xf32>
    %26 = arith.truncf %25 : vector<4x64xf32> to vector<4x64xbf16>
    %27 = vector.shape_cast %26 : vector<4x64xbf16> to vector<1x4x64xbf16>
    %28 = vector.shape_cast %27 : vector<1x4x64xbf16> to vector<1x4x64xbf16>
    %29 = vector.broadcast %28 : vector<1x4x64xbf16> to vector<4x4x64xbf16>
    %c0_15 = arith.constant 0 : index
    %c0_16 = arith.constant 0 : index
    %c0_17 = arith.constant 0 : index
    %30 = vector.load %arg6[%c0_15, %c0_16, %c0_17] : memref<4x64x16xbf16, #tpu.memory_space<vmem>>, vector<4x64x16xbf16>
    %cst_18 = arith.constant dense<0.000000e+00> : vector<4x4x16xf32>
    %31 = tpu.matmul %29, %30, %cst_18 {dimension_numbers = #tpu.dot_dimension_numbers<[2], [1], [1], [2], [0, 0, 0, 1, 1, 2], [0], [0]>} : vector<4x4x64xbf16>, vector<4x64x16xbf16>, vector<4x4x16xf32> -> vector<4x4x16xf32>
    %c0_19 = arith.constant 0 : index
    %c0_20 = arith.constant 0 : index
    %c0_21 = arith.constant 0 : index
    %32 = vector.load %arg7[%c0_19, %c0_20, %c0_21] : memref<4x1x16xf32, #tpu.memory_space<vmem>>, vector<4x1x16xf32>
    %33 = vector.broadcast %32 : vector<4x1x16xf32> to vector<4x4x16xf32>
    %34 = arith.addf %31, %33 : vector<4x4x16xf32>
    %c0_22 = arith.constant 0 : index
    %c0_23 = arith.constant 0 : index
    %c0_24 = arith.constant 0 : index
    %35 = vector.load %arg8[%c0_22, %c0_23, %c0_24] : memref<4x64x16xbf16, #tpu.memory_space<vmem>>, vector<4x64x16xbf16>
    %cst_25 = arith.constant dense<0.000000e+00> : vector<4x4x16xf32>
    %36 = tpu.matmul %29, %35, %cst_25 {dimension_numbers = #tpu.dot_dimension_numbers<[2], [1], [1], [2], [0, 0, 0, 1, 1, 2], [0], [0]>} : vector<4x4x64xbf16>, vector<4x64x16xbf16>, vector<4x4x16xf32> -> vector<4x4x16xf32>
    %c0_26 = arith.constant 0 : index
    %c0_27 = arith.constant 0 : index
    %c0_28 = arith.constant 0 : index
    %37 = vector.load %arg9[%c0_26, %c0_27, %c0_28] : memref<4x1x16xf32, #tpu.memory_space<vmem>>, vector<4x1x16xf32>
    %38 = vector.broadcast %37 : vector<4x1x16xf32> to vector<4x4x16xf32>
    %39 = arith.addf %36, %38 : vector<4x4x16xf32>
    %c0_29 = arith.constant 0 : index
    %c0_30 = arith.constant 0 : index
    %c0_31 = arith.constant 0 : index
    %40 = vector.load %arg10[%c0_29, %c0_30, %c0_31] : memref<4x64x16xbf16, #tpu.memory_space<vmem>>, vector<4x64x16xbf16>
    %cst_32 = arith.constant dense<0.000000e+00> : vector<4x4x16xf32>
    %41 = tpu.matmul %29, %40, %cst_32 {dimension_numbers = #tpu.dot_dimension_numbers<[2], [1], [1], [2], [0, 0, 0, 1, 1, 2], [0], [0]>} : vector<4x4x64xbf16>, vector<4x64x16xbf16>, vector<4x4x16xf32> -> vector<4x4x16xf32>
    %c0_33 = arith.constant 0 : index
    %c0_34 = arith.constant 0 : index
    %c0_35 = arith.constant 0 : index
    %42 = vector.load %arg11[%c0_33, %c0_34, %c0_35] : memref<4x1x16xf32, #tpu.memory_space<vmem>>, vector<4x1x16xf32>
    %43 = vector.broadcast %42 : vector<4x1x16xf32> to vector<4x4x16xf32>
    %44 = arith.addf %41, %43 : vector<4x4x16xf32>
    %45 = arith.truncf %34 : vector<4x4x16xf32> to vector<4x4x16xbf16>
    %46 = arith.truncf %39 : vector<4x4x16xf32> to vector<4x4x16xbf16>
    %cst_36 = arith.constant dense<0.000000e+00> : vector<4x4x4xf32>
    %47 = tpu.matmul %45, %46, %cst_36 {dimension_numbers = #tpu.dot_dimension_numbers<[2], [2], [1], [1], [0, 0, 0, 1, 1, 1], [0], [0]>} : vector<4x4x16xbf16>, vector<4x4x16xbf16>, vector<4x4x4xf32> -> vector<4x4x4xf32>
    %cst_37 = arith.constant 2.500000e-01 : f32
    %48 = vector.broadcast %cst_37 : f32 to vector<4x4x4xf32>
    %49 = arith.mulf %47, %48 : vector<4x4x4xf32>
    %50 = arith.addf %49, %3 : vector<4x4x4xf32>
    %cst_38 = arith.constant dense<0xFF800000> : vector<4x4xf32>
    %51 = vector.multi_reduction <maximumf>, %50, %cst_38 [2] : vector<4x4x4xf32> to vector<4x4xf32>
    %52 = vector.shape_cast %51 : vector<4x4xf32> to vector<4x4x1xf32>
    %53 = vector.broadcast %52 : vector<4x4x1xf32> to vector<4x4x4xf32>
    %54 = arith.subf %50, %53 : vector<4x4x4xf32>
    %55 = math.exp %54 : vector<4x4x4xf32>
    %cst_39 = arith.constant dense<0.000000e+00> : vector<4x4xf32>
    %56 = vector.multi_reduction <add>, %55, %cst_39 [2] : vector<4x4x4xf32> to vector<4x4xf32>
    %57 = vector.shape_cast %56 : vector<4x4xf32> to vector<4x4x1xf32>
    %58 = tpu.reciprocal %57 : vector<4x4x1xf32> -> vector<4x4x1xf32>
    %59 = vector.broadcast %58 : vector<4x4x1xf32> to vector<4x4x4xf32>
    %60 = arith.mulf %55, %59 : vector<4x4x4xf32>
    %61 = arith.truncf %60 : vector<4x4x4xf32> to vector<4x4x4xbf16>
    %62 = arith.truncf %44 : vector<4x4x16xf32> to vector<4x4x16xbf16>
    %cst_40 = arith.constant dense<0.000000e+00> : vector<4x4x16xf32>
    %63 = tpu.matmul %61, %62, %cst_40 {dimension_numbers = #tpu.dot_dimension_numbers<[2], [1], [1], [2], [0, 0, 0, 1, 1, 2], [0], [0]>} : vector<4x4x4xbf16>, vector<4x4x16xbf16>, vector<4x4x16xf32> -> vector<4x4x16xf32>
    %64 = arith.truncf %63 : vector<4x4x16xf32> to vector<4x4x16xbf16>
    %c0_41 = arith.constant 0 : index
    %c0_42 = arith.constant 0 : index
    %c0_43 = arith.constant 0 : index
    %65 = vector.load %arg12[%c0_41, %c0_42, %c0_43] : memref<4x16x64xbf16, #tpu.memory_space<vmem>>, vector<4x16x64xbf16>
    %cst_44 = arith.constant dense<0.000000e+00> : vector<4x4x64xf32>
    %66 = tpu.matmul %64, %65, %cst_44 {dimension_numbers = #tpu.dot_dimension_numbers<[2], [1], [1], [2], [0, 0, 0, 1, 1, 2], [0], [0]>} : vector<4x4x16xbf16>, vector<4x16x64xbf16>, vector<4x4x64xf32> -> vector<4x4x64xf32>
    %cst_45 = arith.constant dense<0.000000e+00> : vector<4x64xf32>
    %67 = vector.multi_reduction <add>, %66, %cst_45 [0] : vector<4x4x64xf32> to vector<4x64xf32>
    %68 = arith.addf %1, %67 : vector<4x64xf32>
    %c0_46 = arith.constant 0 : index
    %c0_47 = arith.constant 0 : index
    %69 = vector.load %arg13[%c0_46, %c0_47] : memref<1x64xf32, #tpu.memory_space<vmem>>, vector<1x64xf32>
    %70 = vector.broadcast %69 : vector<1x64xf32> to vector<4x64xf32>
    %71 = arith.addf %68, %70 : vector<4x64xf32>
    %c0_48 = arith.constant 0 : index
    %c0_49 = arith.constant 0 : index
    %72 = vector.load %arg14[%c0_48, %c0_49] : memref<1x64xf32, #tpu.memory_space<vmem>>, vector<1x64xf32>
    %c0_50 = arith.constant 0 : index
    %c0_51 = arith.constant 0 : index
    %73 = vector.load %arg15[%c0_50, %c0_51] : memref<1x64xf32, #tpu.memory_space<vmem>>, vector<1x64xf32>
    %cst_52 = arith.constant dense<0.000000e+00> : vector<4xf32>
    %74 = vector.multi_reduction <add>, %71, %cst_52 [1] : vector<4x64xf32> to vector<4xf32>
    %75 = vector.shape_cast %74 : vector<4xf32> to vector<4x1xf32>
    %cst_53 = arith.constant 6.400000e+01 : f32
    %76 = vector.broadcast %cst_53 : f32 to vector<4x1xf32>
    %77 = arith.divf %75, %76 : vector<4x1xf32>
    %78 = vector.broadcast %77 : vector<4x1xf32> to vector<4x64xf32>
    %79 = arith.subf %71, %78 : vector<4x64xf32>
    %80 = arith.mulf %79, %79 : vector<4x64xf32>
    %cst_54 = arith.constant dense<0.000000e+00> : vector<4xf32>
    %81 = vector.multi_reduction <add>, %80, %cst_54 [1] : vector<4x64xf32> to vector<4xf32>
    %82 = vector.shape_cast %81 : vector<4xf32> to vector<4x1xf32>
    %cst_55 = arith.constant 6.400000e+01 : f32
    %83 = vector.broadcast %cst_55 : f32 to vector<4x1xf32>
    %84 = arith.divf %82, %83 : vector<4x1xf32>
    %cst_56 = arith.constant 9.99999974E-6 : f32
    %85 = vector.broadcast %cst_56 : f32 to vector<4x1xf32>
    %86 = arith.addf %84, %85 : vector<4x1xf32>
    %87 = math.rsqrt %86 : vector<4x1xf32>
    %88 = vector.broadcast %87 : vector<4x1xf32> to vector<4x64xf32>
    %89 = arith.mulf %79, %88 : vector<4x64xf32>
    %90 = vector.broadcast %72 : vector<1x64xf32> to vector<4x64xf32>
    %91 = arith.mulf %89, %90 : vector<4x64xf32>
    %92 = vector.broadcast %73 : vector<1x64xf32> to vector<4x64xf32>
    %93 = arith.addf %91, %92 : vector<4x64xf32>
    %94 = arith.truncf %93 : vector<4x64xf32> to vector<4x64xbf16>
    %c0_57 = arith.constant 0 : index
    %c0_58 = arith.constant 0 : index
    %95 = vector.load %arg16[%c0_57, %c0_58] : memref<64x128xbf16, #tpu.memory_space<vmem>>, vector<64x128xbf16>
    %cst_59 = arith.constant dense<0.000000e+00> : vector<4x128xf32>
    %96 = tpu.matmul %94, %95, %cst_59 {dimension_numbers = #tpu.dot_dimension_numbers<[1], [0], [0], [1], [0, 0, 1, 1], [], []>} : vector<4x64xbf16>, vector<64x128xbf16>, vector<4x128xf32> -> vector<4x128xf32>
    %c0_60 = arith.constant 0 : index
    %c0_61 = arith.constant 0 : index
    %97 = vector.load %arg17[%c0_60, %c0_61] : memref<1x128xf32, #tpu.memory_space<vmem>>, vector<1x128xf32>
    %98 = vector.broadcast %97 : vector<1x128xf32> to vector<4x128xf32>
    %99 = arith.addf %96, %98 : vector<4x128xf32>
    %cst_62 = arith.constant 5.000000e-01 : f32
    %100 = vector.broadcast %cst_62 : f32 to vector<4x128xf32>
    %101 = arith.mulf %100, %99 : vector<4x128xf32>
    %cst_63 = arith.constant 4.471500e-02 : f32
    %102 = vector.broadcast %cst_63 : f32 to vector<4x128xf32>
    %103 = arith.mulf %102, %99 : vector<4x128xf32>
    %104 = arith.mulf %103, %99 : vector<4x128xf32>
    %105 = arith.mulf %104, %99 : vector<4x128xf32>
    %106 = arith.addf %99, %105 : vector<4x128xf32>
    %cst_64 = arith.constant 0.797884583 : f32
    %107 = vector.broadcast %cst_64 : f32 to vector<4x128xf32>
    %108 = arith.mulf %107, %106 : vector<4x128xf32>
    %109 = math.tanh %108 : vector<4x128xf32>
    %cst_65 = arith.constant 1.000000e+00 : f32
    %110 = vector.broadcast %cst_65 : f32 to vector<4x128xf32>
    %111 = arith.addf %110, %109 : vector<4x128xf32>
    %112 = arith.mulf %101, %111 : vector<4x128xf32>
    %113 = arith.truncf %112 : vector<4x128xf32> to vector<4x128xbf16>
    %c0_66 = arith.constant 0 : index
    %c0_67 = arith.constant 0 : index
    %114 = vector.load %arg18[%c0_66, %c0_67] : memref<128x64xbf16, #tpu.memory_space<vmem>>, vector<128x64xbf16>
    %cst_68 = arith.constant dense<0.000000e+00> : vector<4x64xf32>
    %115 = tpu.matmul %113, %114, %cst_68 {dimension_numbers = #tpu.dot_dimension_numbers<[1], [0], [0], [1], [0, 0, 1, 1], [], []>} : vector<4x128xbf16>, vector<128x64xbf16>, vector<4x64xf32> -> vector<4x64xf32>
    %c0_69 = arith.constant 0 : index
    %c0_70 = arith.constant 0 : index
    %116 = vector.load %arg19[%c0_69, %c0_70] : memref<1x64xf32, #tpu.memory_space<vmem>>, vector<1x64xf32>
    %117 = vector.broadcast %116 : vector<1x64xf32> to vector<4x64xf32>
    %118 = arith.addf %115, %117 : vector<4x64xf32>
    %119 = arith.addf %71, %118 : vector<4x64xf32>
    %120 = vector.shape_cast %119 : vector<4x64xf32> to vector<1x1x4x64xf32>
    %c0_71 = arith.constant 0 : index
    %c0_72 = arith.constant 0 : index
    %c0_73 = arith.constant 0 : index
    %c0_74 = arith.constant 0 : index
    %121 = vector.load %arg20[%c0_71, %c0_72, %c0_73, %c0_74] : memref<1x1x4x64xf32, #tpu.memory_space<vmem>>, vector<1x1x4x64xf32>
    tpu.vector_store %arg20[%c0_71, %c0_72, %c0_73, %c0_74], %120 {strides = array<i32>} : memref<1x1x4x64xf32, #tpu.memory_space<vmem>>, vector<1x1x4x64xf32>,
    return
  }
  func.func @transform_0(%arg0: i32, %arg1: i32) -> (i32, i32, i32, i32) {
    %c0_i32 = arith.constant 0 : i32
    %c0_i32_0 = arith.constant 0 : i32
    %c0_i32_1 = arith.constant 0 : i32
    return %arg0, %arg1, %c0_i32, %c0_i32_0 : i32, i32, i32, i32
  }
  func.func @transform_1(%arg0: i32, %arg1: i32) -> (i32, i32, i32, i32) {
    %c0_i32 = arith.constant 0 : i32
    %c0_i32_0 = arith.constant 0 : i32
    %c0_i32_1 = arith.constant 0 : i32
    %c0_i32_2 = arith.constant 0 : i32
    return %arg1, %c0_i32, %c0_i32_0, %c0_i32_1 : i32, i32, i32, i32
  }
  func.func @transform_2(%arg0: i32, %arg1: i32) -> (i32, i32) {
    %c0_i32 = arith.constant 0 : i32
    %c0_i32_0 = arith.constant 0 : i32
    %c0_i32_1 = arith.constant 0 : i32
    return %c0_i32, %c0_i32_0 : i32, i32
  }
  func.func @transform_3(%arg0: i32, %arg1: i32) -> (i32, i32) {
    %c0_i32 = arith.constant 0 : i32
    %c0_i32_0 = arith.constant 0 : i32
    %c0_i32_1 = arith.constant 0 : i32
    return %c0_i32, %c0_i32_0 : i32, i32
  }
  func.func @transform_4(%arg0: i32, %arg1: i32) -> (i32, i32, i32) {
    %c0_i32 = arith.constant 0 : i32
    %c0_i32_0 = arith.constant 0 : i32
    %c0_i32_1 = arith.constant 0 : i32
    %c0_i32_2 = arith.constant 0 : i32
    return %c0_i32, %c0_i32_0, %c0_i32_1 : i32, i32, i32
  }
  func.func @transform_5(%arg0: i32, %arg1: i32) -> (i32, i32, i32) {
    %c0_i32 = arith.constant 0 : i32
    %c0_i32_0 = arith.constant 0 : i32
    %c0_i32_1 = arith.constant 0 : i32
    %c0_i32_2 = arith.constant 0 : i32
    return %c0_i32, %c0_i32_0, %c0_i32_1 : i32, i32, i32
  }
  func.func @transform_6(%arg0: i32, %arg1: i32) -> (i32, i32, i32) {
    %c0_i32 = arith.constant 0 : i32
    %c0_i32_0 = arith.constant 0 : i32
    %c0_i32_1 = arith.constant 0 : i32
    %c0_i32_2 = arith.constant 0 : i32
    return %c0_i32, %c0_i32_0, %c0_i32_1 : i32, i32, i32
  }
  func.func @transform_7(%arg0: i32, %arg1: i32) -> (i32, i32, i32) {
    %c0_i32 = arith.constant 0 : i32
    %c0_i32_0 = arith.constant 0 : i32
    %c0_i32_1 = arith.constant 0 : i32
    %c0_i32_2 = arith.constant 0 : i32
    return %c0_i32, %c0_i32_0, %c0_i32_1 : i32, i32, i32
  }
  func.func @transform_8(%arg0: i32, %arg1: i32) -> (i32, i32, i32) {
    %c0_i32 = arith.constant 0 : i32
    %c0_i32_0 = arith.constant 0 : i32
    %c0_i32_1 = arith.constant 0 : i32
    %c0_i32_2 = arith.constant 0 : i32
    return %c0_i32, %c0_i32_0, %c0_i32_1 : i32, i32, i32
  }
  func.func @transform_9(%arg0: i32, %arg1: i32) -> (i32, i32, i32) {
    %c0_i32 = arith.constant 0 : i32
    %c0_i32_0 = arith.constant 0 : i32
    %c0_i32_1 = arith.constant 0 : i32
    %c0_i32_2 = arith.constant 0 : i32
    return %c0_i32, %c0_i32_0, %c0_i32_1 : i32, i32, i32
  }
  func.func @transform_10(%arg0: i32, %arg1: i32) -> (i32, i32, i32) {
    %c0_i32 = arith.constant 0 : i32
    %c0_i32_0 = arith.constant 0 : i32
    %c0_i32_1 = arith.constant 0 : i32
    %c0_i32_2 = arith.constant 0 : i32
    return %c0_i32, %c0_i32_0, %c0_i32_1 : i32, i32, i32
  }
  func.func @transform_11(%arg0: i32, %arg1: i32) -> (i32, i32) {
    %c0_i32 = arith.constant 0 : i32
    %c0_i32_0 = arith.constant 0 : i32
    %c0_i32_1 = arith.constant 0 : i32
    return %c0_i32, %c0_i32_0 : i32, i32
  }
  func.func @transform_12(%arg0: i32, %arg1: i32) -> (i32, i32) {
    %c0_i32 = arith.constant 0 : i32
    %c0_i32_0 = arith.constant 0 : i32
    %c0_i32_1 = arith.constant 0 : i32
    return %c0_i32, %c0_i32_0 : i32, i32
  }
  func.func @transform_13(%arg0: i32, %arg1: i32) -> (i32, i32) {
    %c0_i32 = arith.constant 0 : i32
    %c0_i32_0 = arith.constant 0 : i32
    %c0_i32_1 = arith.constant 0 : i32
    return %c0_i32, %c0_i32_0 : i32, i32
  }
  func.func @transform_14(%arg0: i32, %arg1: i32) -> (i32, i32) {
    %c0_i32 = arith.constant 0 : i32
    %c0_i32_0 = arith.constant 0 : i32
    %c0_i32_1 = arith.constant 0 : i32
    return %c0_i32, %c0_i32_0 : i32, i32
  }
  func.func @transform_15(%arg0: i32, %arg1: i32) -> (i32, i32) {
    %c0_i32 = arith.constant 0 : i32
    %c0_i32_0 = arith.constant 0 : i32
    %c0_i32_1 = arith.constant 0 : i32
    return %c0_i32, %c0_i32_0 : i32, i32
  }
  func.func @transform_16(%arg0: i32, %arg1: i32) -> (i32, i32) {
    %c0_i32 = arith.constant 0 : i32
    %c0_i32_0 = arith.constant 0 : i32
    %c0_i32_1 = arith.constant 0 : i32
    return %c0_i32, %c0_i32_0 : i32, i32
  }
  func.func @transform_17(%arg0: i32, %arg1: i32) -> (i32, i32) {
    %c0_i32 = arith.constant 0 : i32
    %c0_i32_0 = arith.constant 0 : i32
    %c0_i32_1 = arith.constant 0 : i32
    return %c0_i32, %c0_i32_0 : i32, i32
  }
  func.func @transform_18(%arg0: i32, %arg1: i32) -> (i32, i32, i32, i32) {
    %c0_i32 = arith.constant 0 : i32
    %c0_i32_0 = arith.constant 0 : i32
    %c0_i32_1 = arith.constant 0 : i32
    return %arg0, %arg1, %c0_i32, %c0_i32_0 : i32, i32, i32, i32
  }
}

module attributes {stable_mosaic.version = 11 : i64} {
  func.func @_swin_block_kernel(%arg0: i32, %arg1: i32, %arg2: memref<1x1x4x64xf32, #tpu.memory_space<vmem>>, %arg3: memref<1x4x4x4xf32, #tpu.memory_space<vmem>>, %arg4: memref<1x64xf32, #tpu.memory_space<vmem>>, %arg5: memref<1x64xf32, #tpu.memory_space<vmem>>, %arg6: memref<4x64x16xbf16, #tpu.memory_space<vmem>>, %arg7: memref<4x1x16xf32, #tpu.memory_space<vmem>>, %arg8: memref<4x64x16xbf16, #tpu.memory_space<vmem>>, %arg9: memref<4x1x16xf32, #tpu.memory_space<vmem>>, %arg10: memref<4x64x16xbf16, #tpu.memory_space<vmem>>, %arg11: memref<4x1x16xf32, #tpu.memory_space<vmem>>, %arg12: memref<4x16x64xbf16, #tpu.memory_space<vmem>>, %arg13: memref<1x64xf32, #tpu.memory_space<vmem>>, %arg14: memref<1x64xf32, #tpu.memory_space<vmem>>, %arg15: memref<1x64xf32, #tpu.memory_space<vmem>>, %arg16: memref<64x128xbf16, #tpu.memory_space<vmem>>, %arg17: memref<1x128xf32, #tpu.memory_space<vmem>>, %arg18: memref<128x64xbf16, #tpu.memory_space<vmem>>, %arg19: memref<1x64xf32, #tpu.memory_space<vmem>>, %arg20: memref<1x1x4x64xf32, #tpu.memory_space<vmem>>) attributes {dimension_semantics = [#tpu.dimension_semantics<parallel>, #tpu.dimension_semantics<parallel>], iteration_bounds = array<i64: 2, 1>, scalar_prefetch = 0 : i64, scratch_operands = 0 : i64, tpu.core_type = #tpu.core_type<tc>, window_params = [{transform_indices = @transform_0, window_bounds = array<i64: 1, 1, 4, 64>}, {transform_indices = @transform_1, window_bounds = array<i64: 1, 4, 4, 4>}, {pipeline_mode = #tpu.pipeline_mode<synchronous>, transform_indices = @transform_2, window_bounds = array<i64: 1, 64>}, {pipeline_mode = #tpu.pipeline_mode<synchronous>, transform_indices = @transform_3, window_bounds = array<i64: 1, 64>}, {pipeline_mode = #tpu.pipeline_mode<synchronous>, transform_indices = @transform_4, window_bounds = array<i64: 4, 64, 16>}, {pipeline_mode = #tpu.pipeline_mode<synchronous>, transform_indices = @transform_5, window_bounds = array<i64: 4, 1, 16>}, {pipeline_mode = #tpu.pipeline_mode<synchronous>, transform_indices = @transform_6, window_bounds = array<i64: 4, 64, 16>}, {pipeline_mode = #tpu.pipeline_mode<synchronous>, transform_indices = @transform_7, window_bounds = array<i64: 4, 1, 16>}, {pipeline_mode = #tpu.pipeline_mode<synchronous>, transform_indices = @transform_8, window_bounds = array<i64: 4, 64, 16>}, {pipeline_mode = #tpu.pipeline_mode<synchronous>, transform_indices = @transform_9, window_bounds = array<i64: 4, 1, 16>}, {pipeline_mode = #tpu.pipeline_mode<synchronous>, transform_indices = @transform_10, window_bounds = array<i64: 4, 16, 64>}, {pipeline_mode = #tpu.pipeline_mode<synchronous>, transform_indices = @transform_11, window_bounds = array<i64: 1, 64>}, {pipeline_mode = #tpu.pipeline_mode<synchronous>, transform_indices = @transform_12, window_bounds = array<i64: 1, 64>}, {pipeline_mode = #tpu.pipeline_mode<synchronous>, transform_indices = @transform_13, window_bounds = array<i64: 1, 64>}, {pipeline_mode = #tpu.pipeline_mode<synchronous>, transform_indices = @transform_14, window_bounds = array<i64: 64, 128>}, {pipeline_mode = #tpu.pipeline_mode<synchronous>, transform_indices = @transform_15, window_bounds = array<i64: 1, 128>}, {pipeline_mode = #tpu.pipeline_mode<synchronous>, transform_indices = @transform_16, window_bounds = array<i64: 128, 64>}, {pipeline_mode = #tpu.pipeline_mode<synchronous>, transform_indices = @transform_17, window_bounds = array<i64: 1, 64>}, {transform_indices = @transform_18, window_bounds = array<i64: 1, 1, 4, 64>}]} {
    %c0 = arith.constant 0 : index
    %c0_0 = arith.constant 0 : index
    %c0_1 = arith.constant 0 : index
    %c0_2 = arith.constant 0 : index
    %0 = vector.load %arg2[%c0, %c0_0, %c0_1, %c0_2] : memref<1x1x4x64xf32, #tpu.memory_space<vmem>>, vector<1x1x4x64xf32>
    %1 = vector.shape_cast %0 : vector<1x1x4x64xf32> to vector<4x64xf32>
    %c0_3 = arith.constant 0 : index
    %c0_4 = arith.constant 0 : index
    %c0_5 = arith.constant 0 : index
    %c0_6 = arith.constant 0 : index
    %2 = vector.load %arg3[%c0_3, %c0_4, %c0_5, %c0_6] : memref<1x4x4x4xf32, #tpu.memory_space<vmem>>, vector<1x4x4x4xf32>
    %3 = vector.shape_cast %2 : vector<1x4x4x4xf32> to vector<4x4x4xf32>
    %c0_7 = arith.constant 0 : index
    %c0_8 = arith.constant 0 : index
    %4 = vector.load %arg4[%c0_7, %c0_8] : memref<1x64xf32, #tpu.memory_space<vmem>>, vector<1x64xf32>
    %c0_9 = arith.constant 0 : index
    %c0_10 = arith.constant 0 : index
    %5 = vector.load %arg5[%c0_9, %c0_10] : memref<1x64xf32, #tpu.memory_space<vmem>>, vector<1x64xf32>
    %cst = arith.constant dense<0.000000e+00> : vector<4xf32>
    %6 = vector.multi_reduction <add>, %1, %cst [1] : vector<4x64xf32> to vector<4xf32>
    %7 = vector.shape_cast %6 : vector<4xf32> to vector<4x1xf32>
    %cst_11 = arith.constant 6.400000e+01 : f32
    %8 = vector.broadcast %cst_11 : f32 to vector<4x1xf32>
    %9 = arith.divf %7, %8 : vector<4x1xf32>
    %10 = vector.broadcast %9 : vector<4x1xf32> to vector<4x64xf32>
    %11 = arith.subf %1, %10 : vector<4x64xf32>
    %12 = arith.mulf %11, %11 : vector<4x64xf32>
    %cst_12 = arith.constant dense<0.000000e+00> : vector<4xf32>
    %13 = vector.multi_reduction <add>, %12, %cst_12 [1] : vector<4x64xf32> to vector<4xf32>
    %14 = vector.shape_cast %13 : vector<4xf32> to vector<4x1xf32>
    %cst_13 = arith.constant 6.400000e+01 : f32
    %15 = vector.broadcast %cst_13 : f32 to vector<4x1xf32>
    %16 = arith.divf %14, %15 : vector<4x1xf32>
    %cst_14 = arith.constant 9.99999974E-6 : f32
    %17 = vector.broadcast %cst_14 : f32 to vector<4x1xf32>
    %18 = arith.addf %16, %17 : vector<4x1xf32>
    %19 = math.rsqrt %18 : vector<4x1xf32>
    %20 = vector.broadcast %19 : vector<4x1xf32> to vector<4x64xf32>
    %21 = arith.mulf %11, %20 : vector<4x64xf32>
    %22 = vector.broadcast %4 : vector<1x64xf32> to vector<4x64xf32>
    %23 = arith.mulf %21, %22 : vector<4x64xf32>
    %24 = vector.broadcast %5 : vector<1x64xf32> to vector<4x64xf32>
    %25 = arith.addf %23, %24 : vector<4x64xf32>
    %26 = arith.truncf %25 : vector<4x64xf32> to vector<4x64xbf16>
    %27 = vector.shape_cast %26 : vector<4x64xbf16> to vector<1x4x64xbf16>
    %28 = vector.shape_cast %27 : vector<1x4x64xbf16> to vector<1x4x64xbf16>
    %29 = vector.broadcast %28 : vector<1x4x64xbf16> to vector<4x4x64xbf16>
    %c0_15 = arith.constant 0 : index
    %c0_16 = arith.constant 0 : index
    %c0_17 = arith.constant 0 : index
    %30 = vector.load %arg6[%c0_15, %c0_16, %c0_17] : memref<4x64x16xbf16, #tpu.memory_space<vmem>>, vector<4x64x16xbf16>
    %cst_18 = arith.constant dense<0.000000e+00> : vector<4x4x16xf32>
    %31 = tpu.matmul %29, %30, %cst_18 {dimension_numbers = #tpu.dot_dimension_numbers<[2], [1], [1], [2], [0, 0, 0, 1, 1, 2], [0], [0]>} : vector<4x4x64xbf16>, vector<4x64x16xbf16>, vector<4x4x16xf32> -> vector<4x4x16xf32>
    %c0_19 = arith.constant 0 : index
    %c0_20 = arith.constant 0 : index
    %c0_21 = arith.constant 0 : index
    %32 = vector.load %arg7[%c0_19, %c0_20, %c0_21] : memref<4x1x16xf32, #tpu.memory_space<vmem>>, vector<4x1x16xf32>
    %33 = vector.broadcast %32 : vector<4x1x16xf32> to vector<4x4x16xf32>
    %34 = arith.addf %31, %33 : vector<4x4x16xf32>
    %c0_22 = arith.constant 0 : index
    %c0_23 = arith.constant 0 : index
    %c0_24 = arith.constant 0 : index
    %35 = vector.load %arg8[%c0_22, %c0_23, %c0_24] : memref<4x64x16xbf16, #tpu.memory_space<vmem>>, vector<4x64x16xbf16>
    %cst_25 = arith.constant dense<0.000000e+00> : vector<4x4x16xf32>
    %36 = tpu.matmul %29, %35, %cst_25 {dimension_numbers = #tpu.dot_dimension_numbers<[2], [1], [1], [2], [0, 0, 0, 1, 1, 2], [0], [0]>} : vector<4x4x64xbf16>, vector<4x64x16xbf16>, vector<4x4x16xf32> -> vector<4x4x16xf32>
    %c0_26 = arith.constant 0 : index
    %c0_27 = arith.constant 0 : index
    %c0_28 = arith.constant 0 : index
    %37 = vector.load %arg9[%c0_26, %c0_27, %c0_28] : memref<4x1x16xf32, #tpu.memory_space<vmem>>, vector<4x1x16xf32>
    %38 = vector.broadcast %37 : vector<4x1x16xf32> to vector<4x4x16xf32>
    %39 = arith.addf %36, %38 : vector<4x4x16xf32>
    %c0_29 = arith.constant 0 : index
    %c0_30 = arith.constant 0 : index
    %c0_31 = arith.constant 0 : index
    %40 = vector.load %arg10[%c0_29, %c0_30, %c0_31] : memref<4x64x16xbf16, #tpu.memory_space<vmem>>, vector<4x64x16xbf16>
    %cst_32 = arith.constant dense<0.000000e+00> : vector<4x4x16xf32>
    %41 = tpu.matmul %29, %40, %cst_32 {dimension_numbers = #tpu.dot_dimension_numbers<[2], [1], [1], [2], [0, 0, 0, 1, 1, 2], [0], [0]>} : vector<4x4x64xbf16>, vector<4x64x16xbf16>, vector<4x4x16xf32> -> vector<4x4x16xf32>
    %c0_33 = arith.constant 0 : index
    %c0_34 = arith.constant 0 : index
    %c0_35 = arith.constant 0 : index
    %42 = vector.load %arg11[%c0_33, %c0_34, %c0_35] : memref<4x1x16xf32, #tpu.memory_space<vmem>>, vector<4x1x16xf32>
    %43 = vector.broadcast %42 : vector<4x1x16xf32> to vector<4x4x16xf32>
    %44 = arith.addf %41, %43 : vector<4x4x16xf32>
    %45 = arith.truncf %34 : vector<4x4x16xf32> to vector<4x4x16xbf16>
    %46 = arith.truncf %39 : vector<4x4x16xf32> to vector<4x4x16xbf16>
    %cst_36 = arith.constant dense<0.000000e+00> : vector<4x4x4xf32>
    %47 = tpu.matmul %45, %46, %cst_36 {dimension_numbers = #tpu.dot_dimension_numbers<[2], [2], [1], [1], [0, 0, 0, 1, 1, 1], [0], [0]>} : vector<4x4x16xbf16>, vector<4x4x16xbf16>, vector<4x4x4xf32> -> vector<4x4x4xf32>
    %cst_37 = arith.constant 2.500000e-01 : f32
    %48 = vector.broadcast %cst_37 : f32 to vector<4x4x4xf32>
    %49 = arith.mulf %47, %48 : vector<4x4x4xf32>
    %50 = arith.addf %49, %3 : vector<4x4x4xf32>
    %cst_38 = arith.constant dense<0xFF800000> : vector<4x4xf32>
    %51 = vector.multi_reduction <maximumf>, %50, %cst_38 [2] : vector<4x4x4xf32> to vector<4x4xf32>
    %52 = vector.shape_cast %51 : vector<4x4xf32> to vector<4x4x1xf32>
    %53 = vector.broadcast %52 : vector<4x4x1xf32> to vector<4x4x4xf32>
    %54 = arith.subf %50, %53 : vector<4x4x4xf32>
    %55 = math.exp %54 : vector<4x4x4xf32>
    %cst_39 = arith.constant dense<0.000000e+00> : vector<4x4xf32>
    %56 = vector.multi_reduction <add>, %55, %cst_39 [2] : vector<4x4x4xf32> to vector<4x4xf32>
    %57 = vector.shape_cast %56 : vector<4x4xf32> to vector<4x4x1xf32>
    %58 = tpu.reciprocal %57 : vector<4x4x1xf32> -> vector<4x4x1xf32>
    %59 = vector.broadcast %58 : vector<4x4x1xf32> to vector<4x4x4xf32>
    %60 = arith.mulf %55, %59 : vector<4x4x4xf32>
    %61 = arith.truncf %60 : vector<4x4x4xf32> to vector<4x4x4xbf16>
    %62 = arith.truncf %44 : vector<4x4x16xf32> to vector<4x4x16xbf16>
    %cst_40 = arith.constant dense<0.000000e+00> : vector<4x4x16xf32>
    %63 = tpu.matmul %61, %62, %cst_40 {dimension_numbers = #tpu.dot_dimension_numbers<[2], [1], [1], [2], [0, 0, 0, 1, 1, 2], [0], [0]>} : vector<4x4x4xbf16>, vector<4x4x16xbf16>, vector<4x4x16xf32> -> vector<4x4x16xf32>
    %64 = arith.truncf %63 : vector<4x4x16xf32> to vector<4x4x16xbf16>
    %c0_41 = arith.constant 0 : index
    %c0_42 = arith.constant 0 : index
    %c0_43 = arith.constant 0 : index
    %65 = vector.load %arg12[%c0_41, %c0_42, %c0_43] : memref<4x16x64xbf16, #tpu.memory_space<vmem>>, vector<4x16x64xbf16>
    %cst_44 = arith.constant dense<0.000000e+00> : vector<4x4x64xf32>
    %66 = tpu.matmul %64, %65, %cst_44 {dimension_numbers = #tpu.dot_dimension_numbers<[2], [1], [1], [2], [0, 0, 0, 1, 1, 2], [0], [0]>} : vector<4x4x16xbf16>, vector<4x16x64xbf16>, vector<4x4x64xf32> -> vector<4x4x64xf32>
    %cst_45 = arith.constant dense<0.000000e+00> : vector<4x64xf32>
    %67 = vector.multi_reduction <add>, %66, %cst_45 [0] : vector<4x4x64xf32> to vector<4x64xf32>
    %68 = arith.addf %1, %67 : vector<4x64xf32>
    %c0_46 = arith.constant 0 : index
    %c0_47 = arith.constant 0 : index
    %69 = vector.load %arg13[%c0_46, %c0_47] : memref<1x64xf32, #tpu.memory_space<vmem>>, vector<1x64xf32>
    %70 = vector.broadcast %69 : vector<1x64xf32> to vector<4x64xf32>
    %71 = arith.addf %68, %70 : vector<4x64xf32>
    %c0_48 = arith.constant 0 : index
    %c0_49 = arith.constant 0 : index
    %72 = vector.load %arg14[%c0_48, %c0_49] : memref<1x64xf32, #tpu.memory_space<vmem>>, vector<1x64xf32>
    %c0_50 = arith.constant 0 : index
    %c0_51 = arith.constant 0 : index
    %73 = vector.load %arg15[%c0_50, %c0_51] : memref<1x64xf32, #tpu.memory_space<vmem>>, vector<1x64xf32>
    %cst_52 = arith.constant dense<0.000000e+00> : vector<4xf32>
    %74 = vector.multi_reduction <add>, %71, %cst_52 [1] : vector<4x64xf32> to vector<4xf32>
    %75 = vector.shape_cast %74 : vector<4xf32> to vector<4x1xf32>
    %cst_53 = arith.constant 6.400000e+01 : f32
    %76 = vector.broadcast %cst_53 : f32 to vector<4x1xf32>
    %77 = arith.divf %75, %76 : vector<4x1xf32>
    %78 = vector.broadcast %77 : vector<4x1xf32> to vector<4x64xf32>
    %79 = arith.subf %71, %78 : vector<4x64xf32>
    %80 = arith.mulf %79, %79 : vector<4x64xf32>
    %cst_54 = arith.constant dense<0.000000e+00> : vector<4xf32>
    %81 = vector.multi_reduction <add>, %80, %cst_54 [1] : vector<4x64xf32> to vector<4xf32>
    %82 = vector.shape_cast %81 : vector<4xf32> to vector<4x1xf32>
    %cst_55 = arith.constant 6.400000e+01 : f32
    %83 = vector.broadcast %cst_55 : f32 to vector<4x1xf32>
    %84 = arith.divf %82, %83 : vector<4x1xf32>
    %cst_56 = arith.constant 9.99999974E-6 : f32
    %85 = vector.broadcast %cst_56 : f32 to vector<4x1xf32>
    %86 = arith.addf %84, %85 : vector<4x1xf32>
    %87 = math.rsqrt %86 : vector<4x1xf32>
    %88 = vector.broadcast %87 : vector<4x1xf32> to vector<4x64xf32>
    %89 = arith.mulf %79, %88 : vector<4x64xf32>
    %90 = vector.broadcast %72 : vector<1x64xf32> to vector<4x64xf32>
    %91 = arith.mulf %89, %90 : vector<4x64xf32>
    %92 = vector.broadcast %73 : vector<1x64xf32> to vector<4x64xf32>
    %93 = arith.addf %91, %92 : vector<4x64xf32>
    %94 = arith.truncf %93 : vector<4x64xf32> to vector<4x64xbf16>
    %c0_57 = arith.constant 0 : index
    %c0_58 = arith.constant 0 : index
    %95 = vector.load %arg16[%c0_57, %c0_58] : memref<64x128xbf16, #tpu.memory_space<vmem>>, vector<64x128xbf16>
    %cst_59 = arith.constant dense<0.000000e+00> : vector<4x128xf32>
    %96 = tpu.matmul %94, %95, %cst_59 {dimension_numbers = #tpu.dot_dimension_numbers<[1], [0], [0], [1], [0, 0, 1, 1], [], []>} : vector<4x64xbf16>, vector<64x128xbf16>, vector<4x128xf32> -> vector<4x128xf32>
    %c0_60 = arith.constant 0 : index
    %c0_61 = arith.constant 0 : index
    %97 = vector.load %arg17[%c0_60, %c0_61] : memref<1x128xf32, #tpu.memory_space<vmem>>, vector<1x128xf32>
    %98 = vector.broadcast %97 : vector<1x128xf32> to vector<4x128xf32>
    %99 = arith.addf %96, %98 : vector<4x128xf32>
    %cst_62 = arith.constant 5.000000e-01 : f32
    %100 = vector.broadcast %cst_62 : f32 to vector<4x128xf32>
    %101 = arith.mulf %100, %99 : vector<4x128xf32>
    %cst_63 = arith.constant 4.471500e-02 : f32
    %102 = vector.broadcast %cst_63 : f32 to vector<4x128xf32>
    %103 = arith.mulf %102, %99 : vector<4x128xf32>
    %104 = arith.mulf %103, %99 : vector<4x128xf32>
    %105 = arith.mulf %104, %99 : vector<4x128xf32>
    %106 = arith.addf %99, %105 : vector<4x128xf32>
    %cst_64 = arith.constant 0.797884583 : f32
    %107 = vector.broadcast %cst_64 : f32 to vector<4x128xf32>
    %108 = arith.mulf %107, %106 : vector<4x128xf32>
    %109 = math.tanh %108 : vector<4x128xf32>
    %cst_65 = arith.constant 1.000000e+00 : f32
    %110 = vector.broadcast %cst_65 : f32 to vector<4x128xf32>
    %111 = arith.addf %110, %109 : vector<4x128xf32>
    %112 = arith.mulf %101, %111 : vector<4x128xf32>
    %113 = arith.truncf %112 : vector<4x128xf32> to vector<4x128xbf16>
    %c0_66 = arith.constant 0 : index
    %c0_67 = arith.constant 0 : index
    %114 = vector.load %arg18[%c0_66, %c0_67] : memref<128x64xbf16, #tpu.memory_space<vmem>>, vector<128x64xbf16>
    %cst_68 = arith.constant dense<0.000000e+00> : vector<4x64xf32>
    %115 = tpu.matmul %113, %114, %cst_68 {dimension_numbers = #tpu.dot_dimension_numbers<[1], [0], [0], [1], [0, 0, 1, 1], [], []>} : vector<4x128xbf16>, vector<128x64xbf16>, vector<4x64xf32> -> vector<4x64xf32>
    %c0_69 = arith.constant 0 : index
    %c0_70 = arith.constant 0 : index
    %116 = vector.load %arg19[%c0_69, %c0_70] : memref<1x64xf32, #tpu.memory_space<vmem>>, vector<1x64xf32>
    %117 = vector.broadcast %116 : vector<1x64xf32> to vector<4x64xf32>
    %118 = arith.addf %115, %117 : vector<4x64xf32>
    %119 = arith.addf %71, %118 : vector<4x64xf32>
    %120 = vector.shape_cast %119 : vector<4x64xf32> to vector<1x1x4x64xf32>
    %c0_71 = arith.constant 0 : index
    %c0_72 = arith.constant 0 : index
    %c0_73 = arith.constant 0 : index
    %c0_74 = arith.constant 0 : index
    %121 = vector.load %arg20[%c0_71, %c0_72, %c0_73, %c0_74] : memref<1x1x4x64xf32, #tpu.memory_space<vmem>>, vector<1x1x4x64xf32>
    tpu.vector_store %arg20[%c0_71, %c0_72, %c0_73, %c0_74], %120 {strides = array<i32>} : memref<1x1x4x64xf32, #tpu.memory_space<vmem>>, vector<1x1x4x64xf32>,
    return
  }
  func.func @transform_0(%arg0: i32, %arg1: i32) -> (i32, i32, i32, i32) {
    %c0_i32 = arith.constant 0 : i32
    %c0_i32_0 = arith.constant 0 : i32
    %c0_i32_1 = arith.constant 0 : i32
    return %arg0, %arg1, %c0_i32, %c0_i32_0 : i32, i32, i32, i32
  }
  func.func @transform_1(%arg0: i32, %arg1: i32) -> (i32, i32, i32, i32) {
    %c0_i32 = arith.constant 0 : i32
    %c0_i32_0 = arith.constant 0 : i32
    %c0_i32_1 = arith.constant 0 : i32
    %c0_i32_2 = arith.constant 0 : i32
    return %arg1, %c0_i32, %c0_i32_0, %c0_i32_1 : i32, i32, i32, i32
  }
  func.func @transform_2(%arg0: i32, %arg1: i32) -> (i32, i32) {
    %c0_i32 = arith.constant 0 : i32
    %c0_i32_0 = arith.constant 0 : i32
    %c0_i32_1 = arith.constant 0 : i32
    return %c0_i32, %c0_i32_0 : i32, i32
  }
  func.func @transform_3(%arg0: i32, %arg1: i32) -> (i32, i32) {
    %c0_i32 = arith.constant 0 : i32
    %c0_i32_0 = arith.constant 0 : i32
    %c0_i32_1 = arith.constant 0 : i32
    return %c0_i32, %c0_i32_0 : i32, i32
  }
  func.func @transform_4(%arg0: i32, %arg1: i32) -> (i32, i32, i32) {
    %c0_i32 = arith.constant 0 : i32
    %c0_i32_0 = arith.constant 0 : i32
    %c0_i32_1 = arith.constant 0 : i32
    %c0_i32_2 = arith.constant 0 : i32
    return %c0_i32, %c0_i32_0, %c0_i32_1 : i32, i32, i32
  }
  func.func @transform_5(%arg0: i32, %arg1: i32) -> (i32, i32, i32) {
    %c0_i32 = arith.constant 0 : i32
    %c0_i32_0 = arith.constant 0 : i32
    %c0_i32_1 = arith.constant 0 : i32
    %c0_i32_2 = arith.constant 0 : i32
    return %c0_i32, %c0_i32_0, %c0_i32_1 : i32, i32, i32
  }
  func.func @transform_6(%arg0: i32, %arg1: i32) -> (i32, i32, i32) {
    %c0_i32 = arith.constant 0 : i32
    %c0_i32_0 = arith.constant 0 : i32
    %c0_i32_1 = arith.constant 0 : i32
    %c0_i32_2 = arith.constant 0 : i32
    return %c0_i32, %c0_i32_0, %c0_i32_1 : i32, i32, i32
  }
  func.func @transform_7(%arg0: i32, %arg1: i32) -> (i32, i32, i32) {
    %c0_i32 = arith.constant 0 : i32
    %c0_i32_0 = arith.constant 0 : i32
    %c0_i32_1 = arith.constant 0 : i32
    %c0_i32_2 = arith.constant 0 : i32
    return %c0_i32, %c0_i32_0, %c0_i32_1 : i32, i32, i32
  }
  func.func @transform_8(%arg0: i32, %arg1: i32) -> (i32, i32, i32) {
    %c0_i32 = arith.constant 0 : i32
    %c0_i32_0 = arith.constant 0 : i32
    %c0_i32_1 = arith.constant 0 : i32
    %c0_i32_2 = arith.constant 0 : i32
    return %c0_i32, %c0_i32_0, %c0_i32_1 : i32, i32, i32
  }
  func.func @transform_9(%arg0: i32, %arg1: i32) -> (i32, i32, i32) {
    %c0_i32 = arith.constant 0 : i32
    %c0_i32_0 = arith.constant 0 : i32
    %c0_i32_1 = arith.constant 0 : i32
    %c0_i32_2 = arith.constant 0 : i32
    return %c0_i32, %c0_i32_0, %c0_i32_1 : i32, i32, i32
  }
  func.func @transform_10(%arg0: i32, %arg1: i32) -> (i32, i32, i32) {
    %c0_i32 = arith.constant 0 : i32
    %c0_i32_0 = arith.constant 0 : i32
    %c0_i32_1 = arith.constant 0 : i32
    %c0_i32_2 = arith.constant 0 : i32
    return %c0_i32, %c0_i32_0, %c0_i32_1 : i32, i32, i32
  }
  func.func @transform_11(%arg0: i32, %arg1: i32) -> (i32, i32) {
    %c0_i32 = arith.constant 0 : i32
    %c0_i32_0 = arith.constant 0 : i32
    %c0_i32_1 = arith.constant 0 : i32
    return %c0_i32, %c0_i32_0 : i32, i32
  }
  func.func @transform_12(%arg0: i32, %arg1: i32) -> (i32, i32) {
    %c0_i32 = arith.constant 0 : i32
    %c0_i32_0 = arith.constant 0 : i32
    %c0_i32_1 = arith.constant 0 : i32
    return %c0_i32, %c0_i32_0 : i32, i32
  }
  func.func @transform_13(%arg0: i32, %arg1: i32) -> (i32, i32) {
    %c0_i32 = arith.constant 0 : i32
    %c0_i32_0 = arith.constant 0 : i32
    %c0_i32_1 = arith.constant 0 : i32
    return %c0_i32, %c0_i32_0 : i32, i32
  }
  func.func @transform_14(%arg0: i32, %arg1: i32) -> (i32, i32) {
    %c0_i32 = arith.constant 0 : i32
    %c0_i32_0 = arith.constant 0 : i32
    %c0_i32_1 = arith.constant 0 : i32
    return %c0_i32, %c0_i32_0 : i32, i32
  }
  func.func @transform_15(%arg0: i32, %arg1: i32) -> (i32, i32) {
    %c0_i32 = arith.constant 0 : i32
    %c0_i32_0 = arith.constant 0 : i32
    %c0_i32_1 = arith.constant 0 : i32
    return %c0_i32, %c0_i32_0 : i32, i32
  }
  func.func @transform_16(%arg0: i32, %arg1: i32) -> (i32, i32) {
    %c0_i32 = arith.constant 0 : i32
    %c0_i32_0 = arith.constant 0 : i32
    %c0_i32_1 = arith.constant 0 : i32
    return %c0_i32, %c0_i32_0 : i32, i32
  }
  func.func @transform_17(%arg0: i32, %arg1: i32) -> (i32, i32) {
    %c0_i32 = arith.constant 0 : i32
    %c0_i32_0 = arith.constant 0 : i32
    %c0_i32_1 = arith.constant 0 : i32
    return %c0_i32, %c0_i32_0 : i32, i32
  }
  func.func @transform_18(%arg0: i32, %arg1: i32) -> (i32, i32, i32, i32) {
    %c0_i32 = arith.constant 0 : i32
    %c0_i32_0 = arith.constant 0 : i32
    %c0_i32_1 = arith.constant 0 : i32
    return %arg0, %arg1, %c0_i32, %c0_i32_0 : i32, i32, i32, i32
  }
}

</mosaic_0001>

<llo_original>
// kernel: swin_forward.6
$region0: #{swin_forward.6}
  #allocation0 [shape = 'u32[]', space=smem, size = 0x4, offset = 0x4, fixed_abs, tag = 'smem constant byte address 0x4 - core index']
  #allocation1 [shape = 'u32[72,128]{1,0:T(1,128)}', space=vmem, size = 0x9000, scoped, tag = 'internal scratch']
  %s0 = inlined_call_operand.vmem [shape: f32[32,48], index: 0, kind: input, shape index: {}]
  %s1 = inlined_call_operand.vmem [shape: bf16[48,32], index: 1, kind: input, shape index: {}]
  %s2 = inlined_call_operand.vmem [shape: f32[1,32], index: 2, kind: input, shape index: {}]
  %s3 = inlined_call_operand.vmem [shape: f32[1,32], index: 3, kind: input, shape index: {}]
  %s4 = inlined_call_operand.vmem [shape: f32[1,32], index: 4, kind: input, shape index: {}]
  %s5 = inlined_call_operand.vmem [shape: f32[32,32], index: 5, kind: output, shape index: {}]
  %s6 = sld [smem:[#allocation0]]
  $region30: #{swin_forward.6} parent=0
    _
  %s8 = ssub.s32 1, %s6
  %s9 = scalar_select 0, %s8, %s6
  // Predicated region
  $region2: #{swin_forward.6} parent=0 // pred_check
    _
  $region3: #{swin_forward.6} parent=0 // pred_check_branch
    %11 = sbr.rel (0) target = $region5
  $region4: #{swin_forward.6} parent=0 // pred_region
    _
  $region5: #{swin_forward.6} parent=0 // pred_fallthru
    _
  // Predicated region
  $region6: #{swin_forward.6} parent=0 // pred_check
    _
  $region7: #{swin_forward.6} parent=0 // pred_check_branch
    %13 = sbr.rel (0) target = $region9
  $region8: #{swin_forward.6} parent=0 // pred_region
    _
  $region9: #{swin_forward.6} parent=0 // pred_fallthru
    _
  // Predicated region
  $region10: #{swin_forward.6} parent=0 // pred_check
    _
  $region11: #{swin_forward.6} parent=0 // pred_check_branch
    %15 = sbr.rel (0) target = $region13
  $region12: #{swin_forward.6} parent=0 // pred_region
    _
  $region13: #{swin_forward.6} parent=0 // pred_fallthru
    _
  // Predicated region
  $region14: #{swin_forward.6} parent=0 // pred_check
    _
  $region15: #{swin_forward.6} parent=0 // pred_check_branch
    %17 = sbr.rel (0) target = $region17
  $region16: #{swin_forward.6} parent=0 // pred_region
    _
  $region17: #{swin_forward.6} parent=0 // pred_fallthru
    _
  // Predicated region
  $region18: #{swin_forward.6} parent=0 // pred_check
    _
  $region19: #{swin_forward.6} parent=0 // pred_check_branch
    %19 = sbr.rel (0) target = $region21
  $region20: #{swin_forward.6} parent=0 // pred_region
    _
  $region21: #{swin_forward.6} parent=0 // pred_fallthru
    _
  %v21 = vld [vmem:[%s0] sm:$0xff]
  %v22 = vld [vmem:[%s0 + $0x8] sm:$0xff]
  %v23 = vld [vmem:[%s0 + $0x10] sm:$0xff]
  %v24 = vld [vmem:[%s0 + $0x18] sm:$0xff]
  %v25 = vpack.c.bf16 %v22, %v21
  %v26 = vpack.c.bf16 %v24, %v23
  %v27 = vld [vmem:[%s1] sm:$0xf]
  %v28 = vld [vmem:[%s1 + $0x4] sm:$0xf]
  %v29 = vld [vmem:[%s1 + $0x8] sm:$0xf]
  %v30 = vld [vmem:[%s1 + $0xc] sm:$0xf]
  %v31 = vld [vmem:[%s1 + $0x10] sm:$0xf]
  %v32 = vld [vmem:[%s1 + $0x14] sm:$0xf]
  %v33 = vld [vmem:[%s2] sm:$0x1]
  %v35 = vperm.slane %v33, 0
  %v43 = vunpack.c.l.b16 %v27
  %v44 = vunpack.c.l.b16 %v28
  %v45 = vunpack.c.l.b16 %v29
  %v46 = vunpack.c.l.b16 %v30
  %v47 = vunpack.c.l.b16 %v31
  %v48 = vunpack.c.l.b16 %v32
  %v49 = vpack.c.b16 %v44, %v43
  %v50 = vpack.c.b16 %v46, %v45
  %v51 = vpack.c.b16 %v48, %v47
  %vm55 = vcmask 392192
  %v57 = vsel %vm55, %v25, 0
  %v60 = vsel %vm55, %v26, 0
  %62 = vmatpush.bf16.msra.mxu0 0
  %63 = vmatpush.bf16.msra.mxu0 0
  %64 = vmatpush.bf16.msra.mxu0 0
  %65 = vmatpush.bf16.msra.mxu0 0
  %66 = vmatpush.bf16.msra.mxu0 0
  %67 = vmatpush.bf16.msra.mxu0 %v51
  %68 = vmatpush.bf16.msra.mxu0 %v50
  %69 = vmatpush.bf16.msra.mxu0 %v49
  %70 = vmatmul.bf16.gmra.mxu0 %v57
  %v71 = vpop.f32.mrf.mxu0
  %v72 = vadd.f32 %v35, %v71
  %v73 = vpop.f32.mrf.mxu0
  %v74 = vadd.f32 %v35, %v73
  %75 = vmatmul.bf16.gmra.mxu0 %v60
  %v76 = vpop.f32.mrf.mxu0
  %v77 = vadd.f32 %v35, %v76
  %v78 = vpop.f32.mrf.mxu0
  %v79 = vadd.f32 %v35, %v78
  %80 = vdwg.mxu0
  %v81 = vld [vmem:[%s3] sm:$0x1]
  %v82 = vld [vmem:[%s4] sm:$0x1]
  %vm83 = vcmask 261120
  %v84 = vsel %vm83, %v72, 0.0
  %85 = vadd.xlane.f32.xlu0 %v84
  %v86 = vpop.xlane.xlu0 %85
  %v87 = vsel %vm83, %v74, 0.0
  %88 = vadd.xlane.f32.xlu0 %v87
  %v89 = vpop.xlane.xlu0 %88
  %v90 = vsel %vm83, %v77, 0.0
  %91 = vadd.xlane.f32.xlu0 %v90
  %v92 = vpop.xlane.xlu0 %91
  %v93 = vsel %vm83, %v79, 0.0
  %94 = vadd.xlane.f32.xlu0 %v93
  %v95 = vpop.xlane.xlu0 %94
  %v96 = vrcp.pop 32.0
  %v97 = vmul.f32 32.0, %v96
  %v98 = vsub.f32 1.0, %v97
  %v99 = vmul.f32 %v96, %v98
  %v100 = vadd.f32 %v96, %v99
  %vm101 = vweird.f32 %v96
  %v102 = vsel %vm101, %v96, %v100
  %v103 = vmul.f32 %v86, %v102
  %v104 = vmul.f32 %v89, %v102
  %v105 = vmul.f32 %v92, %v102
  %v106 = vmul.f32 %v95, %v102
  %v107 = vsub.f32 %v72, %v103
  %v108 = vsub.f32 %v74, %v104
  %v109 = vsub.f32 %v77, %v105
  %v110 = vsub.f32 %v79, %v106
  %v111 = vmul.f32 %v107, %v107
  %v112 = vmul.f32 %v108, %v108
  %v113 = vmul.f32 %v109, %v109
  %v114 = vmul.f32 %v110, %v110
  %v115 = vsel %vm83, %v111, 0.0
  %116 = vadd.xlane.f32.xlu0 %v115
  %v117 = vpop.xlane.xlu0 %116
  %v118 = vsel %vm83, %v112, 0.0
  %119 = vadd.xlane.f32.xlu0 %v118
  %v120 = vpop.xlane.xlu0 %119
  %v121 = vsel %vm83, %v113, 0.0
  %122 = vadd.xlane.f32.xlu0 %v121
  %v123 = vpop.xlane.xlu0 %122
  %v124 = vsel %vm83, %v114, 0.0
  %125 = vadd.xlane.f32.xlu0 %v124
  %v126 = vpop.xlane.xlu0 %125
  %v127 = vmul.f32 %v117, %v102
  %v128 = vmul.f32 %v120, %v102
  %v129 = vmul.f32 %v123, %v102
  %v130 = vmul.f32 %v126, %v102
  %v131 = vadd.f32 %v127, 1e-05
  %v132 = vadd.f32 %v128, 1e-05
  %v133 = vadd.f32 %v129, 1e-05
  %v134 = vadd.f32 %v130, 1e-05
  %v135 = vrsqrt.pop %v131
  %v136 = vmul.f32 %v135, %v131
  %v137 = vmul.f32 %v136, %v135
  %v138 = vmul.f32 0.5, %v137
  %v139 = vsub.f32 1.5, %v138
  %v140 = vmul.f32 %v135, %v139
  %vm141 = vweird.f32 %v131
  %vm142 = vweird.f32 %v135
  %vm143 = vmor %vm141, %vm142
  %v144 = vsel %vm143, %v135, %v140
  %v145 = vrsqrt.pop %v132
  %v146 = vmul.f32 %v145, %v132
  %v147 = vmul.f32 %v146, %v145
  %v148 = vmul.f32 0.5, %v147
  %v149 = vsub.f32 1.5, %v148
  %v150 = vmul.f32 %v145, %v149
  %vm151 = vweird.f32 %v132
  %vm152 = vweird.f32 %v145
  %vm153 = vmor %vm151, %vm152
  %v154 = vsel %vm153, %v145, %v150
  %v155 = vrsqrt.pop %v133
  %v156 = vmul.f32 %v155, %v133
  %v157 = vmul.f32 %v156, %v155
  %v158 = vmul.f32 0.5, %v157
  %v159 = vsub.f32 1.5, %v158
  %v160 = vmul.f32 %v155, %v159
  %vm161 = vweird.f32 %v133
  %vm162 = vweird.f32 %v155
  %vm163 = vmor %vm161, %vm162
  %v164 = vsel %vm163, %v155, %v160
  %v165 = vrsqrt.pop %v134
  %v166 = vmul.f32 %v165, %v134
  %v167 = vmul.f32 %v166, %v165
  %v168 = vmul.f32 0.5, %v167
  %v169 = vsub.f32 1.5, %v168
  %v170 = vmul.f32 %v165, %v169
  %vm171 = vweird.f32 %v134
  %vm172 = vweird.f32 %v165
  %vm173 = vmor %vm171, %vm172
  %v174 = vsel %vm173, %v165, %v170
  %v175 = vmul.f32 %v107, %v144
  %v176 = vmul.f32 %v108, %v154
  %v177 = vmul.f32 %v109, %v164
  %v178 = vmul.f32 %v110, %v174
  %v180 = vperm.slane %v81, 0
  %v182 = vmul.f32 %v175, %v180
  %v183 = vmul.f32 %v176, %v180
  %v184 = vmul.f32 %v177, %v180
  %v185 = vmul.f32 %v178, %v180
  %v187 = vperm.slane %v82, 0
  %v189 = vadd.f32 %v182, %v187
  %v190 = vadd.f32 %v183, %v187
  %v191 = vadd.f32 %v184, %v187
  %v192 = vadd.f32 %v185, %v187
  %193 = vst.msk [vmem:[%s5] sm:$0xff] %vm83, %v189
  %194 = vst.msk [vmem:[%s5 + $0x8] sm:$0xff] %vm83, %v190
  %195 = vst.msk [vmem:[%s5 + $0x10] sm:$0xff] %vm83, %v191
  %196 = vst.msk [vmem:[%s5 + $0x18] sm:$0xff] %vm83, %v192
  // Predicated region
  $region22: #{swin_forward.6} parent=0 // pred_check
    _
  $region23: #{swin_forward.6} parent=0 // pred_check_branch
    %198 = sbr.rel (0) target = $region25
  $region24: #{swin_forward.6} parent=0 // pred_region
    _
  $region25: #{swin_forward.6} parent=0 // pred_fallthru
    _
  // Predicated region
  $region26: #{swin_forward.6} parent=0 // pred_check
    _
  $region27: #{swin_forward.6} parent=0 // pred_check_branch
    %200 = sbr.rel (0) target = $region29
  $region28: #{swin_forward.6} parent=0 // pred_region
    _
  $region29: #{swin_forward.6} parent=0 // pred_fallthru
    _

// kernel: swin_forward.7
$region0: #{swin_forward.7}
  #allocation0 [shape = 'u32[]', space=smem, size = 0x4, offset = 0x4, fixed_abs, tag = 'smem constant byte address 0x4 - core index']
  #allocation1 [shape = 'u32[72,128]{1,0:T(1,128)}', space=vmem, size = 0x9000, scoped, tag = 'internal scratch']
  %s0 = inlined_call_operand.vmem [shape: f32[2,4,4,32], index: 0, kind: input, shape index: {}]
  %s1 = inlined_call_operand.vmem [shape: f32[4,2,4,4], index: 1, kind: input, shape index: {}]
  %s2 = inlined_call_operand.vmem [shape: f32[1,32], index: 2, kind: input, shape index: {}]
  %s3 = inlined_call_operand.vmem [shape: f32[1,32], index: 3, kind: input, shape index: {}]
  %s4 = inlined_call_operand.vmem [shape: bf16[2,32,16], index: 4, kind: input, shape index: {}]
  %s5 = inlined_call_operand.vmem [shape: f32[2,1,16], index: 5, kind: input, shape index: {}]
  %s6 = inlined_call_operand.vmem [shape: bf16[2,32,16], index: 6, kind: input, shape index: {}]
  %s7 = inlined_call_operand.vmem [shape: f32[2,1,16], index: 7, kind: input, shape index: {}]
  %s8 = inlined_call_operand.vmem [shape: bf16[2,32,16], index: 8, kind: input, shape index: {}]
  %s9 = inlined_call_operand.vmem [shape: f32[2,1,16], index: 9, kind: input, shape index: {}]
  %s10 = inlined_call_operand.vmem [shape: bf16[2,16,32], index: 10, kind: input, shape index: {}]
  %s11 = inlined_call_operand.vmem [shape: f32[1,32], index: 11, kind: input, shape index: {}]
  %s12 = inlined_call_operand.vmem [shape: f32[1,32], index: 12, kind: input, shape index: {}]
  %s13 = inlined_call_operand.vmem [shape: f32[1,32], index: 13, kind: input, shape index: {}]
  %s14 = inlined_call_operand.vmem [shape: bf16[32,64], index: 14, kind: input, shape index: {}]
  %s15 = inlined_call_operand.vmem [shape: f32[1,64], index: 15, kind: input, shape index: {}]
  %s16 = inlined_call_operand.vmem [shape: bf16[64,32], index: 16, kind: input, shape index: {}]
  %s17 = inlined_call_operand.vmem [shape: f32[1,32], index: 17, kind: input, shape index: {}]
  %s18 = inlined_call_operand.vmem [shape: f32[2,4,4,32], index: 18, kind: output, shape index: {}]
  %s19 = sld [smem:[#allocation0]]
  $region105: #{swin_forward.7} parent=0
    _
  %s21 = ssub.s32 1, %s19
  %s22 = scalar_select 0, %s21, %s19
  loop: start=0, step=1, limit=10
  $region2: #{swin_forward.7} parent=0 // loop_pre_header
    _
  $region3: #{swin_forward.7} parent=0 // loop_header
    %s24 = sphi 0, %s28
    %p25 = scmp.ge.s32.totalorder %s24, 10
    %s31 = sphi 0, %s43
    %s32 = sphi 0, %s39
    %s33 = sphi 0, %s31
    %s34 = sphi 0, %s32
    %s35 = sphi 0, %s33
    %s36 = sphi 0, %s34
    %s48 = sphi 0, %s50
    %s51 = sphi 0, %s48
    %s52 = sphi 0, %s51
    %s68 = sphi 0, %s52
    %s74 = sphi 0, %s76
    %s77 = sphi 0, %s74
    %s78 = sphi 0, %s77
    %s94 = sphi 0, %s78
    %s98 = sphi 0, %s98
    %s100 = sphi 0, %s98
    %s101 = sphi 0, %s100
    %s115 = sphi 0, %s101
    %s119 = sphi 0, %s119
    %s121 = sphi 0, %s119
    %s122 = sphi 0, %s121
    %s136 = sphi 0, %s122
    %s140 = sphi 0, %s140
    %s142 = sphi 0, %s140
    %s143 = sphi 0, %s142
    %s157 = sphi 0, %s143
    %s161 = sphi 0, %s161
    %s163 = sphi 0, %s161
    %s164 = sphi 0, %s163
    %s178 = sphi 0, %s164
    %s182 = sphi 0, %s182
    %s184 = sphi 0, %s182
    %s185 = sphi 0, %s184
    %s199 = sphi 0, %s185
    %s203 = sphi 0, %s203
    %s205 = sphi 0, %s203
    %s206 = sphi 0, %s205
    %s220 = sphi 0, %s206
    %s224 = sphi 0, %s224
    %s226 = sphi 0, %s224
    %s227 = sphi 0, %s226
    %s241 = sphi 0, %s227
    %s245 = sphi 0, %s245
    %s247 = sphi 0, %s245
    %s248 = sphi 0, %s247
    %s262 = sphi 0, %s248
    %s266 = sphi 0, %s266
    %s268 = sphi 0, %s266
    %s269 = sphi 0, %s268
    %s283 = sphi 0, %s269
    %s287 = sphi 0, %s287
    %s289 = sphi 0, %s287
    %s290 = sphi 0, %s289
    %s304 = sphi 0, %s290
    %s308 = sphi 0, %s308
    %s310 = sphi 0, %s308
    %s311 = sphi 0, %s310
    %s325 = sphi 0, %s311
    %s329 = sphi 0, %s329
    %s331 = sphi 0, %s329
    %s332 = sphi 0, %s331
    %s346 = sphi 0, %s332
    %s350 = sphi 0, %s350
    %s352 = sphi 0, %s350
    %s353 = sphi 0, %s352
    %s367 = sphi 0, %s353
    %s371 = sphi 0, %s371
    %s373 = sphi 0, %s371
    %s374 = sphi 0, %s373
    %s388 = sphi 0, %s374
    %s392 = sphi 0, %s392
    %s394 = sphi 0, %s392
    %s395 = sphi 0, %s394
    %s409 = sphi 0, %s395
    %s413 = sphi 0, %s413
    %s415 = sphi 0, %s413
    %s416 = sphi 0, %s415
    %s430 = sphi 0, %s416
    %s438 = sphi 0, %s440
    %s441 = sphi 0, %s438
    %s442 = sphi 0, %s441
    %s458 = sphi 0, %s442
  $region4: #{swin_forward.7} parent=0 // loop_header_branch
    %27 = sbr.rel (%p25) target = $region8
  $region5: #{swin_forward.7} parent=0 // loop_body
    %s29 = ssub.s32 %s24, 1
    %s30 = ssub.s32 %s24, 2
    %s37 = sadd.s32 1, %s32
    %p38 = scmp.ge.s32.totalorder %s37, 4
    %s39 = scalar_select %p38, 0, %s37
    %s40 = sadd.s32 1, %s31
    %s41 = scalar_select %p38, %s40, %s31
    %p42 = scmp.ge.s32.totalorder %s41, 2
    %s43 = scalar_select %p42, 0, %s41
    %s44 = ssub.s32 %s31, %s43
    %s45 = ssub.s32 %s32, %s39
    %s46 = sor.u32 %s44, %s45
    %p47 = scmp.eq.s32.totalorder %s46, 0
    %s49 = sadd.s32 %s48, 1
    %s50 = scalar_select %p47, %s48, %s49
    %p53 = pneg %p47
    %p54 = scmp.eq.s32.totalorder %s24, 7
    %p55 = por %p53, %p54
    %p56 = scmp.ne.s32.totalorder %s48, %s51
    %p57 = scmp.eq.s32.totalorder %s24, 0
    %p58 = por %p56, %p57
    %p59 = scmp.ne.s32.totalorder %s48, %s51
    %p60 = scmp.eq.s32.totalorder %s29, 7
    %p61 = por %p59, %p60
    %p62 = scmp.ne.s32.totalorder %s51, %s52
    %p63 = scmp.eq.s32.totalorder %s29, 0
    %p64 = por %p62, %p63
    %p65 = scmp.ne.s32.totalorder %s51, %s52
    %p66 = scmp.eq.s32.totalorder %s30, 7
    %p67 = por %p65, %p66
    %p69 = scmp.ne.s32.totalorder %s52, %s68
    %p70 = scmp.eq.s32.totalorder %s30, 0
    %p71 = por %p69, %p70
    %s72 = ssub.s32 %s32, %s39
    %p73 = scmp.eq.s32.totalorder %s72, 0
    %s75 = sadd.s32 %s74, 1
    %s76 = scalar_select %p73, %s74, %s75
    %p79 = pneg %p73
    %p80 = scmp.eq.s32.totalorder %s24, 7
    %p81 = por %p79, %p80
    %p82 = scmp.ne.s32.totalorder %s74, %s77
    %p83 = scmp.eq.s32.totalorder %s24, 0
    %p84 = por %p82, %p83
    %p85 = scmp.ne.s32.totalorder %s74, %s77
    %p86 = scmp.eq.s32.totalorder %s29, 7
    %p87 = por %p85, %p86
    %p88 = scmp.ne.s32.totalorder %s77, %s78
    %p89 = scmp.eq.s32.totalorder %s29, 0
    %p90 = por %p88, %p89
    %p91 = scmp.ne.s32.totalorder %s77, %s78
    %p92 = scmp.eq.s32.totalorder %s30, 7
    %p93 = por %p91, %p92
    %p95 = scmp.ne.s32.totalorder %s78, %s94
    %p96 = scmp.eq.s32.totalorder %s30, 0
    %p97 = por %p95, %p96
    %s99 = sadd.s32 %s98, 1
    %p102 = scmp.eq.s32.totalorder %s24, 7
    %p103 = scmp.ne.s32.totalorder %s98, %s100
    %p104 = scmp.eq.s32.totalorder %s24, 0
    %p105 = por %p103, %p104
    %p106 = scmp.ne.s32.totalorder %s98, %s100
    %p107 = scmp.eq.s32.totalorder %s29, 7
    %p108 = por %p106, %p107
    %p109 = scmp.ne.s32.totalorder %s100, %s101
    %p110 = scmp.eq.s32.totalorder %s29, 0
    %p111 = por %p109, %p110
    %p112 = scmp.ne.s32.totalorder %s100, %s101
    %p113 = scmp.eq.s32.totalorder %s30, 7
    %p114 = por %p112, %p113
    %p116 = scmp.ne.s32.totalorder %s101, %s115
    %p117 = scmp.eq.s32.totalorder %s30, 0
    %p118 = por %p116, %p117
    %s120 = sadd.s32 %s119, 1
    %p123 = scmp.eq.s32.totalorder %s24, 7
    %p124 = scmp.ne.s32.totalorder %s119, %s121
    %p125 = scmp.eq.s32.totalorder %s24, 0
    %p126 = por %p124, %p125
    %p127 = scmp.ne.s32.totalorder %s119, %s121
    %p128 = scmp.eq.s32.totalorder %s29, 7
    %p129 = por %p127, %p128
    %p130 = scmp.ne.s32.totalorder %s121, %s122
    %p131 = scmp.eq.s32.totalorder %s29, 0
    %p132 = por %p130, %p131
    %p133 = scmp.ne.s32.totalorder %s121, %s122
    %p134 = scmp.eq.s32.totalorder %s30, 7
    %p135 = por %p133, %p134
    %p137 = scmp.ne.s32.totalorder %s122, %s136
    %p138 = scmp.eq.s32.totalorder %s30, 0
    %p139 = por %p137, %p138
    %s141 = sadd.s32 %s140, 1
    %p144 = scmp.eq.s32.totalorder %s24, 7
    %p145 = scmp.ne.s32.totalorder %s140, %s142
    %p146 = scmp.eq.s32.totalorder %s24, 0
    %p147 = por %p145, %p146
    %p148 = scmp.ne.s32.totalorder %s140, %s142
    %p149 = scmp.eq.s32.totalorder %s29, 7
    %p150 = por %p148, %p149
    %p151 = scmp.ne.s32.totalorder %s142, %s143
    %p152 = scmp.eq.s32.totalorder %s29, 0
    %p153 = por %p151, %p152
    %p154 = scmp.ne.s32.totalorder %s142, %s143
    %p155 = scmp.eq.s32.totalorder %s30, 7
    %p156 = por %p154, %p155
    %p158 = scmp.ne.s32.totalorder %s143, %s157
    %p159 = scmp.eq.s32.totalorder %s30, 0
    %p160 = por %p158, %p159
    %s162 = sadd.s32 %s161, 1
    %p165 = scmp.eq.s32.totalorder %s24, 7
    %p166 = scmp.ne.s32.totalorder %s161, %s163
    %p167 = scmp.eq.s32.totalorder %s24, 0
    %p168 = por %p166, %p167
    %p169 = scmp.ne.s32.totalorder %s161, %s163
    %p170 = scmp.eq.s32.totalorder %s29, 7
    %p171 = por %p169, %p170
    %p172 = scmp.ne.s32.totalorder %s163, %s164
    %p173 = scmp.eq.s32.totalorder %s29, 0
    %p174 = por %p172, %p173
    %p175 = scmp.ne.s32.totalorder %s163, %s164
    %p176 = scmp.eq.s32.totalorder %s30, 7
    %p177 = por %p175, %p176
    %p179 = scmp.ne.s32.totalorder %s164, %s178
    %p180 = scmp.eq.s32.totalorder %s30, 0
    %p181 = por %p179, %p180
    %s183 = sadd.s32 %s182, 1
    %p186 = scmp.eq.s32.totalorder %s24, 7
    %p187 = scmp.ne.s32.totalorder %s182, %s184
    %p188 = scmp.eq.s32.totalorder %s24, 0
    %p189 = por %p187, %p188
    %p190 = scmp.ne.s32.totalorder %s182, %s184
    %p191 = scmp.eq.s32.totalorder %s29, 7
    %p192 = por %p190, %p191
    %p193 = scmp.ne.s32.totalorder %s184, %s185
    %p194 = scmp.eq.s32.totalorder %s29, 0
    %p195 = por %p193, %p194
    %p196 = scmp.ne.s32.totalorder %s184, %s185
    %p197 = scmp.eq.s32.totalorder %s30, 7
    %p198 = por %p196, %p197
    %p200 = scmp.ne.s32.totalorder %s185, %s199
    %p201 = scmp.eq.s32.totalorder %s30, 0
    %p202 = por %p200, %p201
    %s204 = sadd.s32 %s203, 1
    %p207 = scmp.eq.s32.totalorder %s24, 7
    %p208 = scmp.ne.s32.totalorder %s203, %s205
    %p209 = scmp.eq.s32.totalorder %s24, 0
    %p210 = por %p208, %p209
    %p211 = scmp.ne.s32.totalorder %s203, %s205
    %p212 = scmp.eq.s32.totalorder %s29, 7
    %p213 = por %p211, %p212
    %p214 = scmp.ne.s32.totalorder %s205, %s206
    %p215 = scmp.eq.s32.totalorder %s29, 0
    %p216 = por %p214, %p215
    %p217 = scmp.ne.s32.totalorder %s205, %s206
    %p218 = scmp.eq.s32.totalorder %s30, 7
    %p219 = por %p217, %p218
    %p221 = scmp.ne.s32.totalorder %s206, %s220
    %p222 = scmp.eq.s32.totalorder %s30, 0
    %p223 = por %p221, %p222
    %s225 = sadd.s32 %s224, 1
    %p228 = scmp.eq.s32.totalorder %s24, 7
    %p229 = scmp.ne.s32.totalorder %s224, %s226
    %p230 = scmp.eq.s32.totalorder %s24, 0
    %p231 = por %p229, %p230
    %p232 = scmp.ne.s32.totalorder %s224, %s226
    %p233 = scmp.eq.s32.totalorder %s29, 7
    %p234 = por %p232, %p233
    %p235 = scmp.ne.s32.totalorder %s226, %s227
    %p236 = scmp.eq.s32.totalorder %s29, 0
    %p237 = por %p235, %p236
    %p238 = scmp.ne.s32.totalorder %s226, %s227
    %p239 = scmp.eq.s32.totalorder %s30, 7
    %p240 = por %p238, %p239
    %p242 = scmp.ne.s32.totalorder %s227, %s241
    %p243 = scmp.eq.s32.totalorder %s30, 0
    %p244 = por %p242, %p243
    %s246 = sadd.s32 %s245, 1
    %p249 = scmp.eq.s32.totalorder %s24, 7
    %p250 = scmp.ne.s32.totalorder %s245, %s247
    %p251 = scmp.eq.s32.totalorder %s24, 0
    %p252 = por %p250, %p251
    %p253 = scmp.ne.s32.totalorder %s245, %s247
    %p254 = scmp.eq.s32.totalorder %s29, 7
    %p255 = por %p253, %p254
    %p256 = scmp.ne.s32.totalorder %s247, %s248
    %p257 = scmp.eq.s32.totalorder %s29, 0
    %p258 = por %p256, %p257
    %p259 = scmp.ne.s32.totalorder %s247, %s248
    %p260 = scmp.eq.s32.totalorder %s30, 7
    %p261 = por %p259, %p260
    %p263 = scmp.ne.s32.totalorder %s248, %s262
    %p264 = scmp.eq.s32.totalorder %s30, 0
    %p265 = por %p263, %p264
    %s267 = sadd.s32 %s266, 1
    %p270 = scmp.eq.s32.totalorder %s24, 7
    %p271 = scmp.ne.s32.totalorder %s266, %s268
    %p272 = scmp.eq.s32.totalorder %s24, 0
    %p273 = por %p271, %p272
    %p274 = scmp.ne.s32.totalorder %s266, %s268
    %p275 = scmp.eq.s32.totalorder %s29, 7
    %p276 = por %p274, %p275
    %p277 = scmp.ne.s32.totalorder %s268, %s269
    %p278 = scmp.eq.s32.totalorder %s29, 0
    %p279 = por %p277, %p278
    %p280 = scmp.ne.s32.totalorder %s268, %s269
    %p281 = scmp.eq.s32.totalorder %s30, 7
    %p282 = por %p280, %p281
    %p284 = scmp.ne.s32.totalorder %s269, %s283
    %p285 = scmp.eq.s32.totalorder %s30, 0
    %p286 = por %p284, %p285
    %s288 = sadd.s32 %s287, 1
    %p291 = scmp.eq.s32.totalorder %s24, 7
    %p292 = scmp.ne.s32.totalorder %s287, %s289
    %p293 = scmp.eq.s32.totalorder %s24, 0
    %p294 = por %p292, %p293
    %p295 = scmp.ne.s32.totalorder %s287, %s289
    %p296 = scmp.eq.s32.totalorder %s29, 7
    %p297 = por %p295, %p296
    %p298 = scmp.ne.s32.totalorder %s289, %s290
    %p299 = scmp.eq.s32.totalorder %s29, 0
    %p300 = por %p298, %p299
    %p301 = scmp.ne.s32.totalorder %s289, %s290
    %p302 = scmp.eq.s32.totalorder %s30, 7
    %p303 = por %p301, %p302
    %p305 = scmp.ne.s32.totalorder %s290, %s304
    %p306 = scmp.eq.s32.totalorder %s30, 0
    %p307 = por %p305, %p306
    %s309 = sadd.s32 %s308, 1
    %p312 = scmp.eq.s32.totalorder %s24, 7
    %p313 = scmp.ne.s32.totalorder %s308, %s310
    %p314 = scmp.eq.s32.totalorder %s24, 0
    %p315 = por %p313, %p314
    %p316 = scmp.ne.s32.totalorder %s308, %s310
    %p317 = scmp.eq.s32.totalorder %s29, 7
    %p318 = por %p316, %p317
    %p319 = scmp.ne.s32.totalorder %s310, %s311
    %p320 = scmp.eq.s32.totalorder %s29, 0
    %p321 = por %p319, %p320
    %p322 = scmp.ne.s32.totalorder %s310, %s311
    %p323 = scmp.eq.s32.totalorder %s30, 7
    %p324 = por %p322, %p323
    %p326 = scmp.ne.s32.totalorder %s311, %s325
    %p327 = scmp.eq.s32.totalorder %s30, 0
    %p328 = por %p326, %p327
    %s330 = sadd.s32 %s329, 1
    %p333 = scmp.eq.s32.totalorder %s24, 7
    %p334 = scmp.ne.s32.totalorder %s329, %s331
    %p335 = scmp.eq.s32.totalorder %s24, 0
    %p336 = por %p334, %p335
    %p337 = scmp.ne.s32.totalorder %s329, %s331
    %p338 = scmp.eq.s32.totalorder %s29, 7
    %p339 = por %p337, %p338
    %p340 = scmp.ne.s32.totalorder %s331, %s332
    %p341 = scmp.eq.s32.totalorder %s29, 0
    %p342 = por %p340, %p341
    %p343 = scmp.ne.s32.totalorder %s331, %s332
    %p344 = scmp.eq.s32.totalorder %s30, 7
    %p345 = por %p343, %p344
    %p347 = scmp.ne.s32.totalorder %s332, %s346
    %p348 = scmp.eq.s32.totalorder %s30, 0
    %p349 = por %p347, %p348
    %s351 = sadd.s32 %s350, 1
    %p354 = scmp.eq.s32.totalorder %s24, 7
    %p355 = scmp.ne.s32.totalorder %s350, %s352
    %p356 = scmp.eq.s32.totalorder %s24, 0
    %p357 = por %p355, %p356
    %p358 = scmp.ne.s32.totalorder %s350, %s352
    %p359 = scmp.eq.s32.totalorder %s29, 7
    %p360 = por %p358, %p359
    %p361 = scmp.ne.s32.totalorder %s352, %s353
    %p362 = scmp.eq.s32.totalorder %s29, 0
    %p363 = por %p361, %p362
    %p364 = scmp.ne.s32.totalorder %s352, %s353
    %p365 = scmp.eq.s32.totalorder %s30, 7
    %p366 = por %p364, %p365
    %p368 = scmp.ne.s32.totalorder %s353, %s367
    %p369 = scmp.eq.s32.totalorder %s30, 0
    %p370 = por %p368, %p369
    %s372 = sadd.s32 %s371, 1
    %p375 = scmp.eq.s32.totalorder %s24, 7
    %p376 = scmp.ne.s32.totalorder %s371, %s373
    %p377 = scmp.eq.s32.totalorder %s24, 0
    %p378 = por %p376, %p377
    %p379 = scmp.ne.s32.totalorder %s371, %s373
    %p380 = scmp.eq.s32.totalorder %s29, 7
    %p381 = por %p379, %p380
    %p382 = scmp.ne.s32.totalorder %s373, %s374
    %p383 = scmp.eq.s32.totalorder %s29, 0
    %p384 = por %p382, %p383
    %p385 = scmp.ne.s32.totalorder %s373, %s374
    %p386 = scmp.eq.s32.totalorder %s30, 7
    %p387 = por %p385, %p386
    %p389 = scmp.ne.s32.totalorder %s374, %s388
    %p390 = scmp.eq.s32.totalorder %s30, 0
    %p391 = por %p389, %p390
    %s393 = sadd.s32 %s392, 1
    %p396 = scmp.eq.s32.totalorder %s24, 7
    %p397 = scmp.ne.s32.totalorder %s392, %s394
    %p398 = scmp.eq.s32.totalorder %s24, 0
    %p399 = por %p397, %p398
    %p400 = scmp.ne.s32.totalorder %s392, %s394
    %p401 = scmp.eq.s32.totalorder %s29, 7
    %p402 = por %p400, %p401
    %p403 = scmp.ne.s32.totalorder %s394, %s395
    %p404 = scmp.eq.s32.totalorder %s29, 0
    %p405 = por %p403, %p404
    %p406 = scmp.ne.s32.totalorder %s394, %s395
    %p407 = scmp.eq.s32.totalorder %s30, 7
    %p408 = por %p406, %p407
    %p410 = scmp.ne.s32.totalorder %s395, %s409
    %p411 = scmp.eq.s32.totalorder %s30, 0
    %p412 = por %p410, %p411
    %s414 = sadd.s32 %s413, 1
    %p417 = scmp.eq.s32.totalorder %s24, 7
    %p418 = scmp.ne.s32.totalorder %s413, %s415
    %p419 = scmp.eq.s32.totalorder %s24, 0
    %p420 = por %p418, %p419
    %p421 = scmp.ne.s32.totalorder %s413, %s415
    %p422 = scmp.eq.s32.totalorder %s29, 7
    %p423 = por %p421, %p422
    %p424 = scmp.ne.s32.totalorder %s415, %s416
    %p425 = scmp.eq.s32.totalorder %s29, 0
    %p426 = por %p424, %p425
    %p427 = scmp.ne.s32.totalorder %s415, %s416
    %p428 = scmp.eq.s32.totalorder %s30, 7
    %p429 = por %p427, %p428
    %p431 = scmp.ne.s32.totalorder %s416, %s430
    %p432 = scmp.eq.s32.totalorder %s30, 0
    %p433 = por %p431, %p432
    %s434 = ssub.s32 %s31, %s43
    %s435 = ssub.s32 %s32, %s39
    %s436 = sor.u32 %s434, %s435
    %p437 = scmp.eq.s32.totalorder %s436, 0
    %s439 = sadd.s32 %s438, 1
    %s440 = scalar_select %p437, %s438, %s439
    %p443 = pneg %p437
    %p444 = scmp.eq.s32.totalorder %s24, 7
    %p445 = por %p443, %p444
    %p446 = scmp.ne.s32.totalorder %s438, %s441
    %p447 = scmp.eq.s32.totalorder %s24, 0
    %p448 = por %p446, %p447
    %p449 = scmp.ne.s32.totalorder %s438, %s441
    %p450 = scmp.eq.s32.totalorder %s29, 7
    %p451 = por %p449, %p450
    %p452 = scmp.ne.s32.totalorder %s441, %s442
    %p453 = scmp.eq.s32.totalorder %s29, 0
    %p454 = por %p452, %p453
    %p455 = scmp.ne.s32.totalorder %s441, %s442
    %p456 = scmp.eq.s32.totalorder %s30, 7
    %p457 = por %p455, %p456
    %p459 = scmp.ne.s32.totalorder %s442, %s458
    %p460 = scmp.eq.s32.totalorder %s30, 0
    %p461 = por %p459, %p460
    %p462 = scmp.le.s32.totalorder 1, %s24
    %p463 = scmp.lt.s32.totalorder %s24, 9
    %p464 = pnand %p462, %p463
    %p465 = pneg %p464
    // Predicated region
    $region9: #{swin_forward.7} parent=5 // pred_check
      _
    $region10: #{swin_forward.7} parent=5 // pred_check_branch
      %467 = sbr.rel (%p464) target = $region12
    $region11: #{swin_forward.7} parent=5 // pred_region
      %s468 = ssub.s32 %s24, 1
      // Predicated region
      $region13: #{swin_forward.7} parent=11 // pred_check
        %p469 = pneg %p111
      $region14: #{swin_forward.7} parent=11 // pred_check_branch
        %471 = sbr.rel (%p469) target = $region16
      $region15: #{swin_forward.7} parent=11 // pred_region
        _
      $region16: #{swin_forward.7} parent=11 // pred_fallthru
        _
      // Predicated region
      $region17: #{swin_forward.7} parent=11 // pred_check
        %p472 = pneg %p132
      $region18: #{swin_forward.7} parent=11 // pred_check_branch
        %474 = sbr.rel (%p472) target = $region20
      $region19: #{swin_forward.7} parent=11 // pred_region
        _
      $region20: #{swin_forward.7} parent=11 // pred_fallthru
        _
      // Predicated region
      $region21: #{swin_forward.7} parent=11 // pred_check
        %p475 = pneg %p153
      $region22: #{swin_forward.7} parent=11 // pred_check_branch
        %477 = sbr.rel (%p475) target = $region24
      $region23: #{swin_forward.7} parent=11 // pred_region
        _
      $region24: #{swin_forward.7} parent=11 // pred_fallthru
        _
      // Predicated region
      $region25: #{swin_forward.7} parent=11 // pred_check
        %p478 = pneg %p174
      $region26: #{swin_forward.7} parent=11 // pred_check_branch
        %480 = sbr.rel (%p478) target = $region28
      $region27: #{swin_forward.7} parent=11 // pred_region
        _
      $region28: #{swin_forward.7} parent=11 // pred_fallthru
        _
      // Predicated region
      $region29: #{swin_forward.7} parent=11 // pred_check
        %p481 = pneg %p195
      $region30: #{swin_forward.7} parent=11 // pred_check_branch
        %483 = sbr.rel (%p481) target = $region32
      $region31: #{swin_forward.7} parent=11 // pred_region
        _
      $region32: #{swin_forward.7} parent=11 // pred_fallthru
        _
      // Predicated region
      $region33: #{swin_forward.7} parent=11 // pred_check
        %p484 = pneg %p216
      $region34: #{swin_forward.7} parent=11 // pred_check_branch
        %486 = sbr.rel (%p484) target = $region36
      $region35: #{swin_forward.7} parent=11 // pred_region
        _
      $region36: #{swin_forward.7} parent=11 // pred_fallthru
        _
      // Predicated region
      $region37: #{swin_forward.7} parent=11 // pred_check
        %p487 = pneg %p237
      $region38: #{swin_forward.7} parent=11 // pred_check_branch
        %489 = sbr.rel (%p487) target = $region40
      $region39: #{swin_forward.7} parent=11 // pred_region
        _
      $region40: #{swin_forward.7} parent=11 // pred_fallthru
        _
      // Predicated region
      $region41: #{swin_forward.7} parent=11 // pred_check
        %p490 = pneg %p258
      $region42: #{swin_forward.7} parent=11 // pred_check_branch
        %492 = sbr.rel (%p490) target = $region44
      $region43: #{swin_forward.7} parent=11 // pred_region
        _
      $region44: #{swin_forward.7} parent=11 // pred_fallthru
        _
      // Predicated region
      $region45: #{swin_forward.7} parent=11 // pred_check
        %p493 = pneg %p279
      $region46: #{swin_forward.7} parent=11 // pred_check_branch
        %495 = sbr.rel (%p493) target = $region48
      $region47: #{swin_forward.7} parent=11 // pred_region
        _
      $region48: #{swin_forward.7} parent=11 // pred_fallthru
        _
      // Predicated region
      $region49: #{swin_forward.7} parent=11 // pred_check
        %p496 = pneg %p300
      $region50: #{swin_forward.7} parent=11 // pred_check_branch
        %498 = sbr.rel (%p496) target = $region52
      $region51: #{swin_forward.7} parent=11 // pred_region
        _
      $region52: #{swin_forward.7} parent=11 // pred_fallthru
        _
      // Predicated region
      $region53: #{swin_forward.7} parent=11 // pred_check
        %p499 = pneg %p321
      $region54: #{swin_forward.7} parent=11 // pred_check_branch
        %501 = sbr.rel (%p499) target = $region56
      $region55: #{swin_forward.7} parent=11 // pred_region
        _
      $region56: #{swin_forward.7} parent=11 // pred_fallthru
        _
      // Predicated region
      $region57: #{swin_forward.7} parent=11 // pred_check
        %p502 = pneg %p342
      $region58: #{swin_forward.7} parent=11 // pred_check_branch
        %504 = sbr.rel (%p502) target = $region60
      $region59: #{swin_forward.7} parent=11 // pred_region
        _
      $region60: #{swin_forward.7} parent=11 // pred_fallthru
        _
      // Predicated region
      $region61: #{swin_forward.7} parent=11 // pred_check
        %p505 = pneg %p363
      $region62: #{swin_forward.7} parent=11 // pred_check_branch
        %507 = sbr.rel (%p505) target = $region64
      $region63: #{swin_forward.7} parent=11 // pred_region
        _
      $region64: #{swin_forward.7} parent=11 // pred_fallthru
        _
      // Predicated region
      $region65: #{swin_forward.7} parent=11 // pred_check
        %p508 = pneg %p384
      $region66: #{swin_forward.7} parent=11 // pred_check_branch
        %510 = sbr.rel (%p508) target = $region68
      $region67: #{swin_forward.7} parent=11 // pred_region
        _
      $region68: #{swin_forward.7} parent=11 // pred_fallthru
        _
      // Predicated region
      $region69: #{swin_forward.7} parent=11 // pred_check
        %p511 = pneg %p405
      $region70: #{swin_forward.7} parent=11 // pred_check_branch
        %513 = sbr.rel (%p511) target = $region72
      $region71: #{swin_forward.7} parent=11 // pred_region
        _
      $region72: #{swin_forward.7} parent=11 // pred_fallthru
        _
      // Predicated region
      $region73: #{swin_forward.7} parent=11 // pred_check
        %p514 = pneg %p426
      $region74: #{swin_forward.7} parent=11 // pred_check_branch
        %516 = sbr.rel (%p514) target = $region76
      $region75: #{swin_forward.7} parent=11 // pred_region
        _
      $region76: #{swin_forward.7} parent=11 // pred_fallthru
        _
    $region12: #{swin_forward.7} parent=5 // pred_fallthru
      _
    %p517 = scmp.lt.s32.totalorder %s24, 8
    // Predicated region
    $region77: #{swin_forward.7} parent=5 // pred_check
      %p518 = pneg %p517
    $region78: #{swin_forward.7} parent=5 // pred_check_branch
      %520 = sbr.rel (%p518) target = $region80
    $region79: #{swin_forward.7} parent=5 // pred_region
      // Predicated region
      $region81: #{swin_forward.7} parent=79 // pred_check
        %p521 = pneg %p58
      $region82: #{swin_forward.7} parent=79 // pred_check_branch
        %523 = sbr.rel (%p521) target = $region84
      $region83: #{swin_forward.7} parent=79 // pred_region
        %p524 = scmp.lt.s32.totalorder %s31, 1
        %s525 = scalar_select %p524, %s31, 1
        %p526 = scmp.lt.s32.totalorder %s32, 3
        %s527 = scalar_select %p526, %s32, 3
        %s528 = smul.addr %s525, 4
        %s529 = sadd.s32 %s527, %s528
        %s530 = smul.addr %s529, 4
        %s531 = scalar_lea.vmem %s0, %s530
      $region84: #{swin_forward.7} parent=79 // pred_fallthru
        _
      // Predicated region
      $region85: #{swin_forward.7} parent=79 // pred_check
        %p532 = pneg %p84
      $region86: #{swin_forward.7} parent=79 // pred_check_branch
        %534 = sbr.rel (%p532) target = $region88
      $region87: #{swin_forward.7} parent=79 // pred_region
        %p535 = scmp.lt.s32.totalorder %s32, 3
        %s536 = scalar_select %p535, %s32, 3
        %s537 = smul.addr %s536, 2
        %s538 = smul.addr %s537, 4
        %s539 = scalar_lea.vmem %s1, %s538
      $region88: #{swin_forward.7} parent=79 // pred_fallthru
        _
    $region80: #{swin_forward.7} parent=5 // pred_fallthru
      _
    %p540 = scmp.le.s32.totalorder 1, %s24
    %p541 = scmp.lt.s32.totalorder %s24, 9
    %p542 = pnand %p540, %p541
    %p543 = pneg %p542
    // Predicated region
    $region89: #{swin_forward.7} parent=5 // pred_check
      _
    $region90: #{swin_forward.7} parent=5 // pred_check_branch
      %545 = sbr.rel (%p542) target = $region92
    $region91: #{swin_forward.7} parent=5 // pred_region
      %s546 = ssub.s32 %s24, 1
      %p547 = scmp.lt.s32.totalorder %s33, 1
      %s548 = scalar_select %p547, %s33, 1
      %p549 = scmp.lt.s32.totalorder %s34, 3
      %s550 = scalar_select %p549, %s34, 3
      %s551 = smul.addr %s548, 4
      %s552 = sadd.s32 %s550, %s551
      %s553 = smul.addr %s552, 4
      %s554 = scalar_lea.vmem %s0, %s553
      %p555 = pneg %p64
      %p556 = pneg %p61
      %p557 = scmp.lt.s32.totalorder %s34, 3
      %s558 = scalar_select %p557, %s34, 3
      %s559 = smul.addr %s558, 2
      %s560 = smul.addr %s559, 4
      %s561 = scalar_lea.vmem %s1, %s560
      %p562 = pneg %p90
      %p563 = pneg %p87
      %p564 = pneg %p111
      %p565 = pneg %p108
      %p566 = pneg %p132
      %p567 = pneg %p129
      %p568 = pneg %p153
      %p569 = pneg %p150
      %p570 = pneg %p174
      %p571 = pneg %p171
      %p572 = pneg %p195
      %p573 = pneg %p192
      %p574 = pneg %p216
      %p575 = pneg %p213
      %p576 = pneg %p237
      %p577 = pneg %p234
      %p578 = pneg %p258
      %p579 = pneg %p255
      %p580 = pneg %p279
      %p581 = pneg %p276
      %p582 = pneg %p300
      %p583 = pneg %p297
      %p584 = pneg %p321
      %p585 = pneg %p318
      %p586 = pneg %p342
      %p587 = pneg %p339
      %p588 = pneg %p363
      %p589 = pneg %p360
      %p590 = pneg %p384
      %p591 = pneg %p381
      %p592 = pneg %p405
      %p593 = pneg %p402
      %p594 = pneg %p426
      %p595 = pneg %p423
      %p596 = pneg %p454
      %p597 = pneg %p451
      %p598 = scmp.lt.s32.totalorder %s33, 1
      %s599 = scalar_select %p598, %s33, 1
      %p600 = scmp.lt.s32.totalorder %s34, 3
      %s601 = scalar_select %p600, %s34, 3
      %s602 = smul.addr %s599, 4
      %s603 = sadd.s32 %s601, %s602
      %s604 = smul.addr %s603, 4
      %s605 = scalar_lea.vmem %s18, %s604
      %p606 = scmp.lt.s32.totalorder %s33, 1
      %s607 = scalar_select %p606, %s33, 1
      %p608 = scmp.lt.s32.totalorder %s34, 3
      %s609 = scalar_select %p608, %s34, 3
      %s610 = smul.addr %s607, 4
      %s611 = sadd.s32 %s609, %s610
      %s612 = smul.addr %s611, 4
      %s613 = scalar_lea.vmem %s0, %s612
      %p614 = scmp.lt.s32.totalorder %s34, 3
      %s615 = scalar_select %p614, %s34, 3
      %s616 = smul.addr %s615, 2
      %s617 = smul.addr %s616, 4
      %s618 = scalar_lea.vmem %s1, %s617
      %p619 = scmp.lt.s32.totalorder %s33, 1
      %s620 = scalar_select %p619, %s33, 1
      %p621 = scmp.lt.s32.totalorder %s34, 3
      %s622 = scalar_select %p621, %s34, 3
      %s623 = smul.addr %s620, 4
      %s624 = sadd.s32 %s622, %s623
      %s625 = smul.addr %s624, 4
      %s626 = scalar_lea.vmem %s18, %s625
      %v628 = vld [vmem:[%s613] sm:$0xf]
      %v629 = vld [vmem:[%s618] sm:$0xf]
      %v630 = vld [vmem:[%s618 + $0x4] sm:$0xf]
      %v631 = vld [vmem:[%s2] sm:$0x1]
      %v632 = vld [vmem:[%s3] sm:$0x1]
      %vm633 = vcmask 257024
      %v634 = vsel %vm633, %v628, 0.0
      %635 = vadd.xlane.f32.xlu0 %v634
      %v636 = vpop.xlane.xlu0 %635
      %v637 = vrcp.pop 32.0
      %v638 = vmul.f32 32.0, %v637
      %v639 = vsub.f32 1.0, %v638
      %v640 = vmul.f32 %v637, %v639
      %v641 = vadd.f32 %v637, %v640
      %vm642 = vweird.f32 %v637
      %v643 = vsel %vm642, %v637, %v641
      %v644 = vmul.f32 %v636, %v643
      %v645 = vsub.f32 %v628, %v644
      %v646 = vmul.f32 %v645, %v645
      %v647 = vsel %vm633, %v646, 0.0
      %648 = vadd.xlane.f32.xlu0 %v647
      %v649 = vpop.xlane.xlu0 %648
      %v650 = vmul.f32 %v649, %v643
      %v651 = vadd.f32 %v650, 1e-05
      %v652 = vrsqrt.pop %v651
      %v653 = vmul.f32 %v652, %v651
      %v654 = vmul.f32 %v653, %v652
      %v655 = vmul.f32 0.5, %v654
      %v656 = vsub.f32 1.5, %v655
      %v657 = vmul.f32 %v652, %v656
      %vm658 = vweird.f32 %v651
      %vm659 = vweird.f32 %v652
      %vm660 = vmor %vm658, %vm659
      %v661 = vsel %vm660, %v652, %v657
      %v662 = vmul.f32 %v645, %v661
      %v664 = vperm.slane %v631, 0
      %v666 = vmul.f32 %v662, %v664
      %v668 = vperm.slane %v632, 0
      %v670 = vadd.f32 %v666, %v668
      %v671 = vpack.c.bf16 %v670, %v670
      %v672 = vld [vmem:[%s4] sm:$0xf]
      %v673 = vld [vmem:[%s4 + $0x4] sm:$0xf]
      %v674 = vld [vmem:[%s4 + $0x8] sm:$0xf]
      %v675 = vld [vmem:[%s4 + $0xc] sm:$0xf]
      %v676 = vld [vmem:[%s4 + $0x10] sm:$0xf]
      %v677 = vld [vmem:[%s4 + $0x14] sm:$0xf]
      %v678 = vld [vmem:[%s4 + $0x18] sm:$0xf]
      %v679 = vld [vmem:[%s4 + $0x1c] sm:$0xf]
      %v680 = vld [vmem:[%s5] sm:$0x1]
      %v681 = vld [vmem:[%s5 + $0x1] sm:$0x1]
      %v684 = vperm.slane %v680, 0
      %v685 = vperm.slane %v681, 0
      %v692 = vunpack.c.l.b16 %v672
      %v693 = vunpack.c.l.b16 %v673
      %v694 = vunpack.c.l.b16 %v674
      %v695 = vunpack.c.l.b16 %v675
      %v696 = vpack.c.b16 %v693, %v692
      %v697 = vpack.c.b16 %v695, %v694
      %vm700 = vcmask 261120
      %v702 = vsel %vm700, %v671, 0
      %704 = vmatpush.bf16.msra.mxu0 0
      %705 = vmatpush.bf16.msra.mxu0 0
      %706 = vmatpush.bf16.msra.mxu0 0
      %707 = vmatpush.bf16.msra.mxu0 0
      %708 = vmatpush.bf16.msra.mxu0 0
      %709 = vmatpush.bf16.msra.mxu0 0
      %710 = vmatpush.bf16.msra.mxu0 %v697
      %711 = vmatpush.bf16.msra.mxu0 %v696
      %712 = vmatmul.bf16.gmra.mxu0 %v702
      %v713 = vpop.f32.mrf.mxu0
      %v714 = vadd.f32 %v684, %v713
      %v715 = vpop.f32.mrf.mxu0
      %716 = vdwg.mxu0
      %v721 = vunpack.c.l.b16 %v676
      %v722 = vunpack.c.l.b16 %v677
      %v723 = vunpack.c.l.b16 %v678
      %v724 = vunpack.c.l.b16 %v679
      %v725 = vpack.c.b16 %v722, %v721
      %v726 = vpack.c.b16 %v724, %v723
      %729 = vmatpush.bf16.msra.mxu0 0
      %730 = vmatpush.bf16.msra.mxu0 0
      %731 = vmatpush.bf16.msra.mxu0 0
      %732 = vmatpush.bf16.msra.mxu0 0
      %733 = vmatpush.bf16.msra.mxu0 0
      %734 = vmatpush.bf16.msra.mxu0 0
      %735 = vmatpush.bf16.msra.mxu0 %v726
      %736 = vmatpush.bf16.msra.mxu0 %v725
      %737 = vmatmul.bf16.gmra.mxu0 %v702
      %v738 = vpop.f32.mrf.mxu0
      %v739 = vadd.f32 %v685, %v738
      %v740 = vpop.f32.mrf.mxu0
      %741 = vdwg.mxu0
      %v742 = vld [vmem:[%s6] sm:$0xf]
      %v743 = vld [vmem:[%s6 + $0x4] sm:$0xf]
      %v744 = vld [vmem:[%s6 + $0x8] sm:$0xf]
      %v745 = vld [vmem:[%s6 + $0xc] sm:$0xf]
      %v746 = vld [vmem:[%s6 + $0x10] sm:$0xf]
      %v747 = vld [vmem:[%s6 + $0x14] sm:$0xf]
      %v748 = vld [vmem:[%s6 + $0x18] sm:$0xf]
      %v749 = vld [vmem:[%s6 + $0x1c] sm:$0xf]
      %v750 = vld [vmem:[%s7] sm:$0x1]
      %v751 = vld [vmem:[%s7 + $0x1] sm:$0x1]
      %v754 = vperm.slane %v750, 0
      %v755 = vperm.slane %v751, 0
      %v762 = vunpack.c.l.b16 %v742
      %v763 = vunpack.c.l.b16 %v743
      %v764 = vunpack.c.l.b16 %v744
      %v765 = vunpack.c.l.b16 %v745
      %v766 = vpack.c.b16 %v763, %v762
      %v767 = vpack.c.b16 %v765, %v764
      %770 = vmatpush.bf16.msra.mxu0 0
      %771 = vmatpush.bf16.msra.mxu0 0
      %772 = vmatpush.bf16.msra.mxu0 0
      %773 = vmatpush.bf16.msra.mxu0 0
      %774 = vmatpush.bf16.msra.mxu0 0
      %775 = vmatpush.bf16.msra.mxu0 0
      %776 = vmatpush.bf16.msra.mxu0 %v767
      %777 = vmatpush.bf16.msra.mxu0 %v766
      %778 = vmatmul.bf16.gmra.mxu0 %v702
      %v779 = vpop.f32.mrf.mxu0
      %v780 = vadd.f32 %v754, %v779
      %v781 = vpop.f32.mrf.mxu0
      %782 = vdwg.mxu0
      %v787 = vunpack.c.l.b16 %v746
      %v788 = vunpack.c.l.b16 %v747
      %v789 = vunpack.c.l.b16 %v748
      %v790 = vunpack.c.l.b16 %v749
      %v791 = vpack.c.b16 %v788, %v787
      %v792 = vpack.c.b16 %v790, %v789
      %795 = vmatpush.bf16.msra.mxu0 0
      %796 = vmatpush.bf16.msra.mxu0 0
      %797 = vmatpush.bf16.msra.mxu0 0
      %798 = vmatpush.bf16.msra.mxu0 0
      %799 = vmatpush.bf16.msra.mxu0 0
      %800 = vmatpush.bf16.msra.mxu0 0
      %801 = vmatpush.bf16.msra.mxu0 %v792
      %802 = vmatpush.bf16.msra.mxu0 %v791
      %803 = vmatmul.bf16.gmra.mxu0 %v702
      %v804 = vpop.f32.mrf.mxu0
      %v805 = vadd.f32 %v755, %v804
      %v806 = vpop.f32.mrf.mxu0
      %807 = vdwg.mxu0
      %v808 = vld [vmem:[%s8] sm:$0xf]
      %v809 = vld [vmem:[%s8 + $0x4] sm:$0xf]
      %v810 = vld [vmem:[%s8 + $0x8] sm:$0xf]
      %v811 = vld [vmem:[%s8 + $0xc] sm:$0xf]
      %v812 = vld [vmem:[%s8 + $0x10] sm:$0xf]
      %v813 = vld [vmem:[%s8 + $0x14] sm:$0xf]
      %v814 = vld [vmem:[%s8 + $0x18] sm:$0xf]
      %v815 = vld [vmem:[%s8 + $0x1c] sm:$0xf]
      %v816 = vld [vmem:[%s9] sm:$0x1]
      %v817 = vld [vmem:[%s9 + $0x1] sm:$0x1]
      %v820 = vperm.slane %v816, 0
      %v821 = vperm.slane %v817, 0
      %v828 = vunpack.c.l.b16 %v808
      %v829 = vunpack.c.l.b16 %v809
      %v830 = vunpack.c.l.b16 %v810
      %v831 = vunpack.c.l.b16 %v811
      %v832 = vpack.c.b16 %v829, %v828
      %v833 = vpack.c.b16 %v831, %v830
      %836 = vmatpush.bf16.msra.mxu0 0
      %837 = vmatpush.bf16.msra.mxu0 0
      %838 = vmatpush.bf16.msra.mxu0 0
      %839 = vmatpush.bf16.msra.mxu0 0
      %840 = vmatpush.bf16.msra.mxu0 0
      %841 = vmatpush.bf16.msra.mxu0 0
      %842 = vmatpush.bf16.msra.mxu0 %v833
      %843 = vmatpush.bf16.msra.mxu0 %v832
      %844 = vmatmul.bf16.gmra.mxu0 %v702
      %v845 = vpop.f32.mrf.mxu0
      %v846 = vadd.f32 %v820, %v845
      %v847 = vpop.f32.mrf.mxu0
      %848 = vdwg.mxu0
      %v853 = vunpack.c.l.b16 %v812
      %v854 = vunpack.c.l.b16 %v813
      %v855 = vunpack.c.l.b16 %v814
      %v856 = vunpack.c.l.b16 %v815
      %v857 = vpack.c.b16 %v854, %v853
      %v858 = vpack.c.b16 %v856, %v855
      %861 = vmatpush.bf16.msra.mxu0 0
      %862 = vmatpush.bf16.msra.mxu0 0
      %863 = vmatpush.bf16.msra.mxu0 0
      %864 = vmatpush.bf16.msra.mxu0 0
      %865 = vmatpush.bf16.msra.mxu0 0
      %866 = vmatpush.bf16.msra.mxu0 0
      %867 = vmatpush.bf16.msra.mxu0 %v858
      %868 = vmatpush.bf16.msra.mxu0 %v857
      %869 = vmatmul.bf16.gmra.mxu0 %v702
      %v870 = vpop.f32.mrf.mxu0
      %v871 = vadd.f32 %v821, %v870
      %v872 = vpop.f32.mrf.mxu0
      %873 = vdwg.mxu0
      %v874 = vpack.c.bf16 %v714, %v714
      %v875 = vpack.c.bf16 %v739, %v739
      %v876 = vpack.c.bf16 %v780, %v780
      %v877 = vpack.c.bf16 %v805, %v805
      %vm878 = vcmask 130048
      %v880 = vsel %vm878, %v874, 0
      %v883 = vsel %vm878, %v876, 0
      %885 = vmatpush.bf16.xpose.msra.mxu0 0
      %886 = vmatpush.bf16.xpose.msra.mxu0 0
      %887 = vmatpush.bf16.xpose.msra.mxu0 0
      %888 = vmatpush.bf16.xpose.msra.mxu0 0
      %889 = vmatpush.bf16.xpose.msra.mxu0 0
      %890 = vmatpush.bf16.xpose.msra.mxu0 0
      %891 = vmatpush.bf16.xpose.msra.mxu0 0
      %892 = vmatpush.bf16.xpose.msra.mxu0 %v883
      %893 = vmatmul.bf16.gmra.mxu0 %v880
      %v894 = vpop.f32.mrf.mxu0
      %v895 = vadd.f32 0.0, %v894
      %v896 = vpop.f32.mrf.mxu0
      %897 = vdwg.mxu0
      %v899 = vsel %vm878, %v875, 0
      %v902 = vsel %vm878, %v877, 0
      %904 = vmatpush.bf16.xpose.msra.mxu0 0
      %905 = vmatpush.bf16.xpose.msra.mxu0 0
      %906 = vmatpush.bf16.xpose.msra.mxu0 0
      %907 = vmatpush.bf16.xpose.msra.mxu0 0
      %908 = vmatpush.bf16.xpose.msra.mxu0 0
      %909 = vmatpush.bf16.xpose.msra.mxu0 0
      %910 = vmatpush.bf16.xpose.msra.mxu0 0
      %911 = vmatpush.bf16.xpose.msra.mxu0 %v902
      %912 = vmatmul.bf16.gmra.mxu0 %v899
      %v913 = vpop.f32.mrf.mxu0
      %v914 = vadd.f32 0.0, %v913
      %v915 = vpop.f32.mrf.mxu0
      %916 = vdwg.mxu0
      %v917 = vmul.f32 %v895, 0.25
      %v918 = vmul.f32 %v914, 0.25
      %v919 = vadd.f32 %v917, %v629
      %v920 = vadd.f32 %v918, %v630
      %vm921 = vcmask 27648
      %v922 = vsel %vm921, %v919, -inf
      %923 = vmax.xlane.f32.xlu0 %v922
      %v924 = vpop.xlane.xlu0 %923
      %v925 = vsel %vm921, %v920, -inf
      %926 = vmax.xlane.f32.xlu0 %v925
      %v927 = vpop.xlane.xlu0 %926
      %v928 = vsub.f32 %v919, %v924
      %v929 = vsub.f32 %v920, %v927
      %v930 = vmul.f32 %v928, 1.442695
      %v931 = vpow.pop %v930
      %v932 = vmul.f32 %v929, 1.442695
      %v933 = vpow.pop %v932
      %v934 = vsel %vm921, %v931, 0.0
      %935 = vadd.xlane.f32.xlu0 %v934
      %v936 = vpop.xlane.xlu0 %935
      %v937 = vsel %vm921, %v933, 0.0
      %938 = vadd.xlane.f32.xlu0 %v937
      %v939 = vpop.xlane.xlu0 %938
      %v940 = vrcp.pop %v936
      %v941 = vmul.f32 %v936, %v940
      %v942 = vsub.f32 1.0, %v941
      %v943 = vmul.f32 %v940, %v942
      %v944 = vadd.f32 %v940, %v943
      %vm945 = vweird.f32 %v936
      %vm946 = vweird.f32 %v940
      %vm947 = vmor %vm945, %vm946
      %v948 = vsel %vm947, %v940, %v944
      %v949 = vand.u32 2147483647, %v936
      %vm950 = vcmp.eq.f32.partialorder %v949, 8.507059e+37
      %v951 = vand.u32 %v936, 2147483648
      %v952 = vor.u32 1.1754944e-38, %v951
      %v953 = vsel %vm950, %v952, %v948
      %v954 = vrcp.pop %v939
      %v955 = vmul.f32 %v939, %v954
      %v956 = vsub.f32 1.0, %v955
      %v957 = vmul.f32 %v954, %v956
      %v958 = vadd.f32 %v954, %v957
      %vm959 = vweird.f32 %v939
      %vm960 = vweird.f32 %v954
      %vm961 = vmor %vm959, %vm960
      %v962 = vsel %vm961, %v954, %v958
      %v963 = vand.u32 2147483647, %v939
      %vm964 = vcmp.eq.f32.partialorder %v963, 8.507059e+37
      %v965 = vand.u32 %v939, 2147483648
      %v966 = vor.u32 1.1754944e-38, %v965
      %v967 = vsel %vm964, %v966, %v962
      %v968 = vmul.f32 %v931, %v953
      %v969 = vmul.f32 %v933, %v967
      %v970 = vpack.c.bf16 %v968, %v968
      %v971 = vpack.c.bf16 %v969, %v969
      %v972 = vpack.c.bf16 %v846, %v846
      %v973 = vpack.c.bf16 %v871, %v871
      %vm974 = vcmask 31744
      %v976 = vsel %vm974, %v970, 0
      %vm978 = vcmask 1041408
      %v980 = vsel %vm978, %v972, 0
      %982 = vmatpush.bf16.msra.mxu0 0
      %983 = vmatpush.bf16.msra.mxu0 0
      %984 = vmatpush.bf16.msra.mxu0 0
      %985 = vmatpush.bf16.msra.mxu0 0
      %986 = vmatpush.bf16.msra.mxu0 0
      %987 = vmatpush.bf16.msra.mxu0 0
      %988 = vmatpush.bf16.msra.mxu0 0
      %989 = vmatpush.bf16.msra.mxu0 %v980
      %990 = vmatmul.bf16.gmra.mxu0 %v976
      %v991 = vpop.f32.mrf.mxu0
      %v992 = vadd.f32 0.0, %v991
      %v993 = vpop.f32.mrf.mxu0
      %994 = vdwg.mxu0
      %v996 = vsel %vm974, %v971, 0
      %v999 = vsel %vm978, %v973, 0
      %1001 = vmatpush.bf16.msra.mxu0 0
      %1002 = vmatpush.bf16.msra.mxu0 0
      %1003 = vmatpush.bf16.msra.mxu0 0
      %1004 = vmatpush.bf16.msra.mxu0 0
      %1005 = vmatpush.bf16.msra.mxu0 0
      %1006 = vmatpush.bf16.msra.mxu0 0
      %1007 = vmatpush.bf16.msra.mxu0 0
      %1008 = vmatpush.bf16.msra.mxu0 %v999
      %1009 = vmatmul.bf16.gmra.mxu0 %v996
      %v1010 = vpop.f32.mrf.mxu0
      %v1011 = vadd.f32 0.0, %v1010
      %v1012 = vpop.f32.mrf.mxu0
      %1013 = vdwg.mxu0
      %v1014 = vpack.c.bf16 %v992, %v992
      %v1015 = vpack.c.bf16 %v1011, %v1011
      %v1016 = vld [vmem:[%s10] sm:$0xf]
      %v1017 = vld [vmem:[%s10 + $0x4] sm:$0xf]
      %v1018 = vld [vmem:[%s10 + $0x8] sm:$0xf]
      %v1019 = vld [vmem:[%s10 + $0xc] sm:$0xf]
      %v1022 = vunpack.c.l.b16 %v1016
      %v1023 = vunpack.c.l.b16 %v1017
      %v1024 = vpack.c.b16 %v1023, %v1022
      %v1027 = vsel %vm878, %v1014, 0
      %1029 = vmatpush.bf16.msra.mxu0 0
      %1030 = vmatpush.bf16.msra.mxu0 0
      %1031 = vmatpush.bf16.msra.mxu0 0
      %1032 = vmatpush.bf16.msra.mxu0 0
      %1033 = vmatpush.bf16.msra.mxu0 0
      %1034 = vmatpush.bf16.msra.mxu0 0
      %1035 = vmatpush.bf16.msra.mxu0 0
      %1036 = vmatpush.bf16.msra.mxu0 %v1024
      %1037 = vmatmul.bf16.gmra.mxu0 %v1027
      %v1038 = vpop.f32.mrf.mxu0
      %v1039 = vadd.f32 0.0, %v1038
      %v1040 = vpop.f32.mrf.mxu0
      %1041 = vdwg.mxu0
      %v1044 = vunpack.c.l.b16 %v1018
      %v1045 = vunpack.c.l.b16 %v1019
      %v1046 = vpack.c.b16 %v1045, %v1044
      %v1049 = vsel %vm878, %v1015, 0
      %1051 = vmatpush.bf16.msra.mxu0 0
      %1052 = vmatpush.bf16.msra.mxu0 0
      %1053 = vmatpush.bf16.msra.mxu0 0
      %1054 = vmatpush.bf16.msra.mxu0 0
      %1055 = vmatpush.bf16.msra.mxu0 0
      %1056 = vmatpush.bf16.msra.mxu0 0
      %1057 = vmatpush.bf16.msra.mxu0 0
      %1058 = vmatpush.bf16.msra.mxu0 %v1046
      %1059 = vmatmul.bf16.gmra.mxu0 %v1049
      %v1060 = vpop.f32.mrf.mxu0
      %v1061 = vadd.f32 0.0, %v1060
      %v1062 = vpop.f32.mrf.mxu0
      %1063 = vdwg.mxu0
      %v1064 = vsel %vm633, %v1039, 0.0
      %v1065 = vsel %vm633, %v1061, 0.0
      %v1066 = vadd.f32 %v1064, %v1065
      %v1067 = vadd.f32 %v628, %v1066
      %v1068 = vld [vmem:[%s11] sm:$0x1]
      %v1070 = vperm.slane %v1068, 0
      %v1072 = vadd.f32 %v1067, %v1070
      %v1073 = vld [vmem:[%s12] sm:$0x1]
      %v1074 = vld [vmem:[%s13] sm:$0x1]
      %v1075 = vsel %vm633, %v1072, 0.0
      %1076 = vadd.xlane.f32.xlu0 %v1075
      %v1077 = vpop.xlane.xlu0 %1076
      %v1078 = vmul.f32 %v1077, %v643
      %v1079 = vsub.f32 %v1072, %v1078
      %v1080 = vmul.f32 %v1079, %v1079
      %v1081 = vsel %vm633, %v1080, 0.0
      %1082 = vadd.xlane.f32.xlu0 %v1081
      %v1083 = vpop.xlane.xlu0 %1082
      %v1084 = vmul.f32 %v1083, %v643
      %v1085 = vadd.f32 %v1084, 1e-05
      %v1086 = vrsqrt.pop %v1085
      %v1087 = vmul.f32 %v1086, %v1085
      %v1088 = vmul.f32 %v1087, %v1086
      %v1089 = vmul.f32 0.5, %v1088
      %v1090 = vsub.f32 1.5, %v1089
      %v1091 = vmul.f32 %v1086, %v1090
      %vm1092 = vweird.f32 %v1085
      %vm1093 = vweird.f32 %v1086
      %vm1094 = vmor %vm1092, %vm1093
      %v1095 = vsel %vm1094, %v1086, %v1091
      %v1096 = vmul.f32 %v1079, %v1095
      %v1098 = vperm.slane %v1073, 0
      %v1100 = vmul.f32 %v1096, %v1098
      %v1102 = vperm.slane %v1074, 0
      %v1104 = vadd.f32 %v1100, %v1102
      %v1105 = vpack.c.bf16 %v1104, %v1104
      %v1106 = vld [vmem:[%s14] sm:$0xf]
      %v1107 = vld [vmem:[%s14 + $0x4] sm:$0xf]
      %v1108 = vld [vmem:[%s14 + $0x8] sm:$0xf]
      %v1109 = vld [vmem:[%s14 + $0xc] sm:$0xf]
      %v1110 = vld [vmem:[%s15] sm:$0x1]
      %v1112 = vperm.slane %v1110, 0
      %v1118 = vunpack.c.l.b16 %v1106
      %v1119 = vunpack.c.l.b16 %v1107
      %v1120 = vunpack.c.l.b16 %v1108
      %v1121 = vunpack.c.l.b16 %v1109
      %v1122 = vpack.c.b16 %v1119, %v1118
      %v1123 = vpack.c.b16 %v1121, %v1120
      %v1127 = vsel %vm700, %v1105, 0
      %1129 = vmatpush.bf16.msra.mxu0 0
      %1130 = vmatpush.bf16.msra.mxu0 0
      %1131 = vmatpush.bf16.msra.mxu0 0
      %1132 = vmatpush.bf16.msra.mxu0 0
      %1133 = vmatpush.bf16.msra.mxu0 0
      %1134 = vmatpush.bf16.msra.mxu0 0
      %1135 = vmatpush.bf16.msra.mxu0 %v1123
      %1136 = vmatpush.bf16.msra.mxu0 %v1122
      %1137 = vmatmul.bf16.gmra.mxu0 %v1127
      %v1138 = vpop.f32.mrf.mxu0
      %v1139 = vadd.f32 %v1112, %v1138
      %v1140 = vpop.f32.mrf.mxu0
      %1141 = vdwg.mxu0
      %v1142 = vmul.f32 %v1139, 0.5
      %v1143 = vmul.f32 %v1139, 0.044715
      %v1144 = vmul.f32 %v1143, %v1139
      %v1145 = vmul.f32 %v1144, %v1139
      %v1146 = vadd.f32 %v1139, %v1145
      %v1147 = vmul.f32 %v1146, 0.7978846
      %v1148 = vtanh.pop %v1147
      %v1149 = vadd.f32 %v1148, 1.0
      %v1150 = vmul.f32 %v1142, %v1149
      %v1151 = vpack.c.bf16 %v1150, %v1150
      %v1152 = vld [vmem:[%s16] sm:$0xf]
      %v1153 = vld [vmem:[%s16 + $0x4] sm:$0xf]
      %v1154 = vld [vmem:[%s16 + $0x8] sm:$0xf]
      %v1155 = vld [vmem:[%s16 + $0xc] sm:$0xf]
      %v1156 = vld [vmem:[%s16 + $0x10] sm:$0xf]
      %v1157 = vld [vmem:[%s16 + $0x14] sm:$0xf]
      %v1158 = vld [vmem:[%s16 + $0x18] sm:$0xf]
      %v1159 = vld [vmem:[%s16 + $0x1c] sm:$0xf]
      %v1160 = vld [vmem:[%s17] sm:$0x1]
      %v1162 = vperm.slane %v1160, 0
      %v1172 = vunpack.c.l.b16 %v1152
      %v1173 = vunpack.c.l.b16 %v1153
      %v1174 = vunpack.c.l.b16 %v1154
      %v1175 = vunpack.c.l.b16 %v1155
      %v1176 = vunpack.c.l.b16 %v1156
      %v1177 = vunpack.c.l.b16 %v1157
      %v1178 = vunpack.c.l.b16 %v1158
      %v1179 = vunpack.c.l.b16 %v1159
      %v1180 = vpack.c.b16 %v1173, %v1172
      %v1181 = vpack.c.b16 %v1175, %v1174
      %v1182 = vpack.c.b16 %v1177, %v1176
      %v1183 = vpack.c.b16 %v1179, %v1178
      %vm1188 = vcmask 523264
      %v1190 = vsel %vm1188, %v1151, 0
      %1192 = vmatpush.bf16.msra.mxu0 0
      %1193 = vmatpush.bf16.msra.mxu0 0
      %1194 = vmatpush.bf16.msra.mxu0 0
      %1195 = vmatpush.bf16.msra.mxu0 0
      %1196 = vmatpush.bf16.msra.mxu0 %v1183
      %1197 = vmatpush.bf16.msra.mxu0 %v1182
      %1198 = vmatpush.bf16.msra.mxu0 %v1181
      %1199 = vmatpush.bf16.msra.mxu0 %v1180
      %1200 = vmatmul.bf16.gmra.mxu0 %v1190
      %v1201 = vpop.f32.mrf.mxu0
      %v1202 = vadd.f32 %v1162, %v1201
      %v1203 = vpop.f32.mrf.mxu0
      %1204 = vdwg.mxu0
      %v1205 = vadd.f32 %v1072, %v1202
      %1206 = vst.msk [vmem:[%s626] sm:$0xf] %vm633, %v1205
      %p1207 = scmp.lt.s32.totalorder %s33, 1
      %s1208 = scalar_select %p1207, %s33, 1
      %p1209 = scmp.lt.s32.totalorder %s34, 3
      %s1210 = scalar_select %p1209, %s34, 3
      %s1211 = smul.addr %s1208, 4
      %s1212 = sadd.s32 %s1210, %s1211
      %s1213 = smul.addr %s1212, 4
      %s1214 = scalar_lea.vmem %s18, %s1213
      // Predicated region
      $region93: #{swin_forward.7} parent=91 // pred_check
        %p1215 = pneg %p451
      $region94: #{swin_forward.7} parent=91 // pred_check_branch
        %1217 = sbr.rel (%p1215) target = $region96
      $region95: #{swin_forward.7} parent=91 // pred_region
        _
      $region96: #{swin_forward.7} parent=91 // pred_fallthru
        _
    $region92: #{swin_forward.7} parent=5 // pred_fallthru
      _
    %p1218 = scmp.le.s32.totalorder 2, %s24
    // Predicated region
    $region97: #{swin_forward.7} parent=5 // pred_check
      %p1219 = pneg %p1218
    $region98: #{swin_forward.7} parent=5 // pred_check_branch
      %1221 = sbr.rel (%p1219) target = $region100
    $region99: #{swin_forward.7} parent=5 // pred_region
      %s1222 = ssub.s32 %s24, 2
      // Predicated region
      $region101: #{swin_forward.7} parent=99 // pred_check
        %p1223 = pneg %p457
      $region102: #{swin_forward.7} parent=99 // pred_check_branch
        %1225 = sbr.rel (%p1223) target = $region104
      $region103: #{swin_forward.7} parent=99 // pred_region
        %p1226 = scmp.lt.s32.totalorder %s35, 1
        %s1227 = scalar_select %p1226, %s35, 1
        %p1228 = scmp.lt.s32.totalorder %s36, 3
        %s1229 = scalar_select %p1228, %s36, 3
        %s1230 = smul.addr %s1227, 4
        %s1231 = sadd.s32 %s1229, %s1230
        %s1232 = smul.addr %s1231, 4
        %s1233 = scalar_lea.vmem %s18, %s1232
      $region104: #{swin_forward.7} parent=99 // pred_fallthru
        _
    $region100: #{swin_forward.7} parent=5 // pred_fallthru
      _
  $region6: #{swin_forward.7} parent=0 // loop_footer
    %s28 = sadd.s32 1, %s24
  $region7: #{swin_forward.7} parent=0 // loop_footer_branch
    %23 = sbr.rel target = $region3
  $region8: #{swin_forward.7} parent=0 // loop_exit
    _

// kernel: swin_forward.9
$region0: #{swin_forward.9}
  #allocation0 [shape = 'u32[]', space=smem, size = 0x4, offset = 0x4, fixed_abs, tag = 'smem constant byte address 0x4 - core index']
  #allocation1 [shape = 'u32[72,128]{1,0:T(1,128)}', space=vmem, size = 0x9000, scoped, tag = 'internal scratch']
  %s0 = inlined_call_operand.vmem [shape: f32[8,128], index: 0, kind: input, shape index: {}]
  %s1 = inlined_call_operand.vmem [shape: f32[1,128], index: 1, kind: input, shape index: {}]
  %s2 = inlined_call_operand.vmem [shape: f32[1,128], index: 2, kind: input, shape index: {}]
  %s3 = inlined_call_operand.vmem [shape: bf16[128,64], index: 3, kind: input, shape index: {}]
  %s4 = inlined_call_operand.vmem [shape: f32[8,64], index: 4, kind: output, shape index: {}]
  %s5 = sld [smem:[#allocation0]]
  $region26: #{swin_forward.9} parent=0
    _
  %s7 = ssub.s32 1, %s5
  %s8 = scalar_select 0, %s7, %s5
  // Predicated region
  $region2: #{swin_forward.9} parent=0 // pred_check
    _
  $region3: #{swin_forward.9} parent=0 // pred_check_branch
    %10 = sbr.rel (0) target = $region5
  $region4: #{swin_forward.9} parent=0 // pred_region
    _
  $region5: #{swin_forward.9} parent=0 // pred_fallthru
    _
  // Predicated region
  $region6: #{swin_forward.9} parent=0 // pred_check
    _
  $region7: #{swin_forward.9} parent=0 // pred_check_branch
    %12 = sbr.rel (0) target = $region9
  $region8: #{swin_forward.9} parent=0 // pred_region
    _
  $region9: #{swin_forward.9} parent=0 // pred_fallthru
    _
  // Predicated region
  $region10: #{swin_forward.9} parent=0 // pred_check
    _
  $region11: #{swin_forward.9} parent=0 // pred_check_branch
    %14 = sbr.rel (0) target = $region13
  $region12: #{swin_forward.9} parent=0 // pred_region
    _
  $region13: #{swin_forward.9} parent=0 // pred_fallthru
    _
  // Predicated region
  $region14: #{swin_forward.9} parent=0 // pred_check
    _
  $region15: #{swin_forward.9} parent=0 // pred_check_branch
    %16 = sbr.rel (0) target = $region17
  $region16: #{swin_forward.9} parent=0 // pred_region
    _
  $region17: #{swin_forward.9} parent=0 // pred_fallthru
    _
  %v17 = vld [vmem:[%s0] sm:$0xff]
  %v18 = vld [vmem:[%s1] sm:$0x1]
  %v19 = vld [vmem:[%s2] sm:$0x1]
  %20 = vadd.xlane.f32.xlu0 %v17
  %v21 = vpop.xlane.xlu0 %20
  %v22 = vrcp.pop 128.0
  %v23 = vmul.f32 128.0, %v22
  %v24 = vsub.f32 1.0, %v23
  %v25 = vmul.f32 %v22, %v24
  %v26 = vadd.f32 %v22, %v25
  %vm27 = vweird.f32 %v22
  %v28 = vsel %vm27, %v22, %v26
  %v29 = vmul.f32 %v21, %v28
  %v30 = vsub.f32 %v17, %v29
  %v31 = vmul.f32 %v30, %v30
  %32 = vadd.xlane.f32.xlu0 %v31
  %v33 = vpop.xlane.xlu0 %32
  %v34 = vmul.f32 %v33, %v28
  %v35 = vadd.f32 %v34, 1e-05
  %v36 = vrsqrt.pop %v35
  %v37 = vmul.f32 %v36, %v35
  %v38 = vmul.f32 %v37, %v36
  %v39 = vmul.f32 0.5, %v38
  %v40 = vsub.f32 1.5, %v39
  %v41 = vmul.f32 %v36, %v40
  %vm42 = vweird.f32 %v35
  %vm43 = vweird.f32 %v36
  %vm44 = vmor %vm42, %vm43
  %v45 = vsel %vm44, %v36, %v41
  %v46 = vmul.f32 %v30, %v45
  %v48 = vperm.slane %v18, 0
  %v50 = vmul.f32 %v46, %v48
  %v52 = vperm.slane %v19, 0
  %v54 = vadd.f32 %v50, %v52
  %v55 = vpack.c.bf16 %v54, %v54
  %v56 = vld [vmem:[%s3] sm:$0xf]
  %v57 = vld [vmem:[%s3 + $0x4] sm:$0xf]
  %v58 = vld [vmem:[%s3 + $0x8] sm:$0xf]
  %v59 = vld [vmem:[%s3 + $0xc] sm:$0xf]
  %v60 = vld [vmem:[%s3 + $0x10] sm:$0xf]
  %v61 = vld [vmem:[%s3 + $0x14] sm:$0xf]
  %v62 = vld [vmem:[%s3 + $0x18] sm:$0xf]
  %v63 = vld [vmem:[%s3 + $0x1c] sm:$0xf]
  %v64 = vld [vmem:[%s3 + $0x20] sm:$0xf]
  %v65 = vld [vmem:[%s3 + $0x24] sm:$0xf]
  %v66 = vld [vmem:[%s3 + $0x28] sm:$0xf]
  %v67 = vld [vmem:[%s3 + $0x2c] sm:$0xf]
  %v68 = vld [vmem:[%s3 + $0x30] sm:$0xf]
  %v69 = vld [vmem:[%s3 + $0x34] sm:$0xf]
  %v70 = vld [vmem:[%s3 + $0x38] sm:$0xf]
  %v71 = vld [vmem:[%s3 + $0x3c] sm:$0xf]
  %v88 = vunpack.c.l.b16 %v56
  %v89 = vunpack.c.l.b16 %v57
  %v90 = vunpack.c.l.b16 %v58
  %v91 = vunpack.c.l.b16 %v59
  %v92 = vunpack.c.l.b16 %v60
  %v93 = vunpack.c.l.b16 %v61
  %v94 = vunpack.c.l.b16 %v62
  %v95 = vunpack.c.l.b16 %v63
  %v96 = vunpack.c.l.b16 %v64
  %v97 = vunpack.c.l.b16 %v65
  %v98 = vunpack.c.l.b16 %v66
  %v99 = vunpack.c.l.b16 %v67
  %v100 = vunpack.c.l.b16 %v68
  %v101 = vunpack.c.l.b16 %v69
  %v102 = vunpack.c.l.b16 %v70
  %v103 = vunpack.c.l.b16 %v71
  %v104 = vpack.c.b16 %v89, %v88
  %v105 = vpack.c.b16 %v91, %v90
  %v106 = vpack.c.b16 %v93, %v92
  %v107 = vpack.c.b16 %v95, %v94
  %v108 = vpack.c.b16 %v97, %v96
  %v109 = vpack.c.b16 %v99, %v98
  %v110 = vpack.c.b16 %v101, %v100
  %v111 = vpack.c.b16 %v103, %v102
  %120 = vmatpush.bf16.msra.mxu0 %v111
  %121 = vmatpush.bf16.msra.mxu0 %v110
  %122 = vmatpush.bf16.msra.mxu0 %v109
  %123 = vmatpush.bf16.msra.mxu0 %v108
  %124 = vmatpush.bf16.msra.mxu0 %v107
  %125 = vmatpush.bf16.msra.mxu0 %v106
  %126 = vmatpush.bf16.msra.mxu0 %v105
  %127 = vmatpush.bf16.msra.mxu0 %v104
  %128 = vmatmul.bf16.gmra.mxu0 %v55
  %v129 = vpop.f32.mrf.mxu0
  %v130 = vadd.f32 0.0, %v129
  %v131 = vpop.f32.mrf.mxu0
  %132 = vdwg.mxu0
  %vm133 = vcmask 523264
  %134 = vst.msk [vmem:[%s4] sm:$0xff] %vm133, %v130
  // Predicated region
  $region18: #{swin_forward.9} parent=0 // pred_check
    _
  $region19: #{swin_forward.9} parent=0 // pred_check_branch
    %136 = sbr.rel (0) target = $region21
  $region20: #{swin_forward.9} parent=0 // pred_region
    _
  $region21: #{swin_forward.9} parent=0 // pred_fallthru
    _
  // Predicated region
  $region22: #{swin_forward.9} parent=0 // pred_check
    _
  $region23: #{swin_forward.9} parent=0 // pred_check_branch
    %138 = sbr.rel (0) target = $region25
  $region24: #{swin_forward.9} parent=0 // pred_region
    _
  $region25: #{swin_forward.9} parent=0 // pred_fallthru
    _

// kernel: swin_forward.11
$region0: #{swin_forward.11}
  #allocation0 [shape = 'u32[]', space=smem, size = 0x4, offset = 0x4, fixed_abs, tag = 'smem constant byte address 0x4 - core index']
  #allocation1 [shape = 'u32[72,128]{1,0:T(1,128)}', space=vmem, size = 0x9000, scoped, tag = 'internal scratch']
  %s0 = inlined_call_operand.vmem [shape: f32[2,1,4,64], index: 0, kind: input, shape index: {}]
  %s1 = inlined_call_operand.vmem [shape: f32[1,4,4,4], index: 1, kind: input, shape index: {}]
  %s2 = inlined_call_operand.vmem [shape: f32[1,64], index: 2, kind: input, shape index: {}]
  %s3 = inlined_call_operand.vmem [shape: f32[1,64], index: 3, kind: input, shape index: {}]
  %s4 = inlined_call_operand.vmem [shape: bf16[4,64,16], index: 4, kind: input, shape index: {}]
  %s5 = inlined_call_operand.vmem [shape: f32[4,1,16], index: 5, kind: input, shape index: {}]
  %s6 = inlined_call_operand.vmem [shape: bf16[4,64,16], index: 6, kind: input, shape index: {}]
  %s7 = inlined_call_operand.vmem [shape: f32[4,1,16], index: 7, kind: input, shape index: {}]
  %s8 = inlined_call_operand.vmem [shape: bf16[4,64,16], index: 8, kind: input, shape index: {}]
  %s9 = inlined_call_operand.vmem [shape: f32[4,1,16], index: 9, kind: input, shape index: {}]
  %s10 = inlined_call_operand.vmem [shape: bf16[4,16,64], index: 10, kind: input, shape index: {}]
  %s11 = inlined_call_operand.vmem [shape: f32[1,64], index: 11, kind: input, shape index: {}]
  %s12 = inlined_call_operand.vmem [shape: f32[1,64], index: 12, kind: input, shape index: {}]
  %s13 = inlined_call_operand.vmem [shape: f32[1,64], index: 13, kind: input, shape index: {}]
  %s14 = inlined_call_operand.vmem [shape: bf16[64,128], index: 14, kind: input, shape index: {}]
  %s15 = inlined_call_operand.vmem [shape: f32[1,128], index: 15, kind: input, shape index: {}]
  %s16 = inlined_call_operand.vmem [shape: bf16[128,64], index: 16, kind: input, shape index: {}]
  %s17 = inlined_call_operand.vmem [shape: f32[1,64], index: 17, kind: input, shape index: {}]
  %s18 = inlined_call_operand.hbm [shape: f32[2,1,4,64], index: 18, kind: output, shape index: {}]
  %s19 = sld [smem:[#allocation0]]
  $region105: #{swin_forward.11} parent=0
    _
  %s21 = ssub.s32 1, %s19
  %s22 = scalar_select 0, %s21, %s19
  $region1: #{swin_forward.11} parent=0
    #allocation2 [shape = 'u8[4096]{0}', space=vmem, size = 0x1000, scoped, tag = 'output window, operand 0']
    #allocation3 [shape = 's32[2]{0}', space=sflag, size = 0x8, scoped, tag = 'scoped memory for swin_forward.11']
    %23 = vsyncpa [#allocation3], 0
    %s24 = scalar_lea.sflag [#allocation3], 1
    %25 = vsyncpa %s24, 0
    loop: start=0, step=1, limit=4
    $region2: #{swin_forward.11} parent=1 // loop_pre_header
      _
    $region3: #{swin_forward.11} parent=1 // loop_header
      %s27 = sphi 0, %s31
      %p28 = scmp.ge.s32.totalorder %s27, 4
      %s34 = sphi 0, %s46
      %s35 = sphi 0, %s42
      %s36 = sphi 0, %s34
      %s37 = sphi 0, %s35
      %s38 = sphi 0, %s36
      %s39 = sphi 0, %s37
      %s51 = sphi 0, %s53
      %s54 = sphi 0, %s51
      %s55 = sphi 0, %s54
      %s71 = sphi 0, %s55
      %s77 = sphi 0, %s79
      %s80 = sphi 0, %s77
      %s81 = sphi 0, %s80
      %s97 = sphi 0, %s81
      %s101 = sphi 0, %s101
      %s103 = sphi 0, %s101
      %s104 = sphi 0, %s103
      %s118 = sphi 0, %s104
      %s122 = sphi 0, %s122
      %s124 = sphi 0, %s122
      %s125 = sphi 0, %s124
      %s139 = sphi 0, %s125
      %s143 = sphi 0, %s143
      %s145 = sphi 0, %s143
      %s146 = sphi 0, %s145
      %s160 = sphi 0, %s146
      %s164 = sphi 0, %s164
      %s166 = sphi 0, %s164
      %s167 = sphi 0, %s166
      %s181 = sphi 0, %s167
      %s185 = sphi 0, %s185
      %s187 = sphi 0, %s185
      %s188 = sphi 0, %s187
      %s202 = sphi 0, %s188
      %s206 = sphi 0, %s206
      %s208 = sphi 0, %s206
      %s209 = sphi 0, %s208
      %s223 = sphi 0, %s209
      %s227 = sphi 0, %s227
      %s229 = sphi 0, %s227
      %s230 = sphi 0, %s229
      %s244 = sphi 0, %s230
      %s248 = sphi 0, %s248
      %s250 = sphi 0, %s248
      %s251 = sphi 0, %s250
      %s265 = sphi 0, %s251
      %s269 = sphi 0, %s269
      %s271 = sphi 0, %s269
      %s272 = sphi 0, %s271
      %s286 = sphi 0, %s272
      %s290 = sphi 0, %s290
      %s292 = sphi 0, %s290
      %s293 = sphi 0, %s292
      %s307 = sphi 0, %s293
      %s311 = sphi 0, %s311
      %s313 = sphi 0, %s311
      %s314 = sphi 0, %s313
      %s328 = sphi 0, %s314
      %s332 = sphi 0, %s332
      %s334 = sphi 0, %s332
      %s335 = sphi 0, %s334
      %s349 = sphi 0, %s335
      %s353 = sphi 0, %s353
      %s355 = sphi 0, %s353
      %s356 = sphi 0, %s355
      %s370 = sphi 0, %s356
      %s374 = sphi 0, %s374
      %s376 = sphi 0, %s374
      %s377 = sphi 0, %s376
      %s391 = sphi 0, %s377
      %s395 = sphi 0, %s395
      %s397 = sphi 0, %s395
      %s398 = sphi 0, %s397
      %s412 = sphi 0, %s398
      %s416 = sphi 0, %s416
      %s418 = sphi 0, %s416
      %s419 = sphi 0, %s418
      %s433 = sphi 0, %s419
      %s441 = sphi 0, %s443
      %s444 = sphi 0, %s441
      %s445 = sphi 0, %s444
      %s461 = sphi 0, %s445
    $region4: #{swin_forward.11} parent=1 // loop_header_branch
      %30 = sbr.rel (%p28) target = $region8
    $region5: #{swin_forward.11} parent=1 // loop_body
      %s32 = ssub.s32 %s27, 1
      %s33 = ssub.s32 %s27, 2
      %s40 = sadd.s32 1, %s35
      %p41 = scmp.ge.s32.totalorder %s40, 1
      %s42 = scalar_select %p41, 0, %s40
      %s43 = sadd.s32 1, %s34
      %s44 = scalar_select %p41, %s43, %s34
      %p45 = scmp.ge.s32.totalorder %s44, 2
      %s46 = scalar_select %p45, 0, %s44
      %s47 = ssub.s32 %s34, %s46
      %s48 = ssub.s32 %s35, %s42
      %s49 = sor.u32 %s47, %s48
      %p50 = scmp.eq.s32.totalorder %s49, 0
      %s52 = sadd.s32 %s51, 1
      %s53 = scalar_select %p50, %s51, %s52
      %p56 = pneg %p50
      %p57 = scmp.eq.s32.totalorder %s27, 1
      %p58 = por %p56, %p57
      %p59 = scmp.ne.s32.totalorder %s51, %s54
      %p60 = scmp.eq.s32.totalorder %s27, 0
      %p61 = por %p59, %p60
      %p62 = scmp.ne.s32.totalorder %s51, %s54
      %p63 = scmp.eq.s32.totalorder %s32, 1
      %p64 = por %p62, %p63
      %p65 = scmp.ne.s32.totalorder %s54, %s55
      %p66 = scmp.eq.s32.totalorder %s32, 0
      %p67 = por %p65, %p66
      %p68 = scmp.ne.s32.totalorder %s54, %s55
      %p69 = scmp.eq.s32.totalorder %s33, 1
      %p70 = por %p68, %p69
      %p72 = scmp.ne.s32.totalorder %s55, %s71
      %p73 = scmp.eq.s32.totalorder %s33, 0
      %p74 = por %p72, %p73
      %s75 = ssub.s32 %s35, %s42
      %p76 = scmp.eq.s32.totalorder %s75, 0
      %s78 = sadd.s32 %s77, 1
      %s79 = scalar_select %p76, %s77, %s78
      %p82 = pneg %p76
      %p83 = scmp.eq.s32.totalorder %s27, 1
      %p84 = por %p82, %p83
      %p85 = scmp.ne.s32.totalorder %s77, %s80
      %p86 = scmp.eq.s32.totalorder %s27, 0
      %p87 = por %p85, %p86
      %p88 = scmp.ne.s32.totalorder %s77, %s80
      %p89 = scmp.eq.s32.totalorder %s32, 1
      %p90 = por %p88, %p89
      %p91 = scmp.ne.s32.totalorder %s80, %s81
      %p92 = scmp.eq.s32.totalorder %s32, 0
      %p93 = por %p91, %p92
      %p94 = scmp.ne.s32.totalorder %s80, %s81
      %p95 = scmp.eq.s32.totalorder %s33, 1
      %p96 = por %p94, %p95
      %p98 = scmp.ne.s32.totalorder %s81, %s97
      %p99 = scmp.eq.s32.totalorder %s33, 0
      %p100 = por %p98, %p99
      %s102 = sadd.s32 %s101, 1
      %p105 = scmp.eq.s32.totalorder %s27, 1
      %p106 = scmp.ne.s32.totalorder %s101, %s103
      %p107 = scmp.eq.s32.totalorder %s27, 0
      %p108 = por %p106, %p107
      %p109 = scmp.ne.s32.totalorder %s101, %s103
      %p110 = scmp.eq.s32.totalorder %s32, 1
      %p111 = por %p109, %p110
      %p112 = scmp.ne.s32.totalorder %s103, %s104
      %p113 = scmp.eq.s32.totalorder %s32, 0
      %p114 = por %p112, %p113
      %p115 = scmp.ne.s32.totalorder %s103, %s104
      %p116 = scmp.eq.s32.totalorder %s33, 1
      %p117 = por %p115, %p116
      %p119 = scmp.ne.s32.totalorder %s104, %s118
      %p120 = scmp.eq.s32.totalorder %s33, 0
      %p121 = por %p119, %p120
      %s123 = sadd.s32 %s122, 1
      %p126 = scmp.eq.s32.totalorder %s27, 1
      %p127 = scmp.ne.s32.totalorder %s122, %s124
      %p128 = scmp.eq.s32.totalorder %s27, 0
      %p129 = por %p127, %p128
      %p130 = scmp.ne.s32.totalorder %s122, %s124
      %p131 = scmp.eq.s32.totalorder %s32, 1
      %p132 = por %p130, %p131
      %p133 = scmp.ne.s32.totalorder %s124, %s125
      %p134 = scmp.eq.s32.totalorder %s32, 0
      %p135 = por %p133, %p134
      %p136 = scmp.ne.s32.totalorder %s124, %s125
      %p137 = scmp.eq.s32.totalorder %s33, 1
      %p138 = por %p136, %p137
      %p140 = scmp.ne.s32.totalorder %s125, %s139
      %p141 = scmp.eq.s32.totalorder %s33, 0
      %p142 = por %p140, %p141
      %s144 = sadd.s32 %s143, 1
      %p147 = scmp.eq.s32.totalorder %s27, 1
      %p148 = scmp.ne.s32.totalorder %s143, %s145
      %p149 = scmp.eq.s32.totalorder %s27, 0
      %p150 = por %p148, %p149
      %p151 = scmp.ne.s32.totalorder %s143, %s145
      %p152 = scmp.eq.s32.totalorder %s32, 1
      %p153 = por %p151, %p152
      %p154 = scmp.ne.s32.totalorder %s145, %s146
      %p155 = scmp.eq.s32.totalorder %s32, 0
      %p156 = por %p154, %p155
      %p157 = scmp.ne.s32.totalorder %s145, %s146
      %p158 = scmp.eq.s32.totalorder %s33, 1
      %p159 = por %p157, %p158
      %p161 = scmp.ne.s32.totalorder %s146, %s160
      %p162 = scmp.eq.s32.totalorder %s33, 0
      %p163 = por %p161, %p162
      %s165 = sadd.s32 %s164, 1
      %p168 = scmp.eq.s32.totalorder %s27, 1
      %p169 = scmp.ne.s32.totalorder %s164, %s166
      %p170 = scmp.eq.s32.totalorder %s27, 0
      %p171 = por %p169, %p170
      %p172 = scmp.ne.s32.totalorder %s164, %s166
      %p173 = scmp.eq.s32.totalorder %s32, 1
      %p174 = por %p172, %p173
      %p175 = scmp.ne.s32.totalorder %s166, %s167
      %p176 = scmp.eq.s32.totalorder %s32, 0
      %p177 = por %p175, %p176
      %p178 = scmp.ne.s32.totalorder %s166, %s167
      %p179 = scmp.eq.s32.totalorder %s33, 1
      %p180 = por %p178, %p179
      %p182 = scmp.ne.s32.totalorder %s167, %s181
      %p183 = scmp.eq.s32.totalorder %s33, 0
      %p184 = por %p182, %p183
      %s186 = sadd.s32 %s185, 1
      %p189 = scmp.eq.s32.totalorder %s27, 1
      %p190 = scmp.ne.s32.totalorder %s185, %s187
      %p191 = scmp.eq.s32.totalorder %s27, 0
      %p192 = por %p190, %p191
      %p193 = scmp.ne.s32.totalorder %s185, %s187
      %p194 = scmp.eq.s32.totalorder %s32, 1
      %p195 = por %p193, %p194
      %p196 = scmp.ne.s32.totalorder %s187, %s188
      %p197 = scmp.eq.s32.totalorder %s32, 0
      %p198 = por %p196, %p197
      %p199 = scmp.ne.s32.totalorder %s187, %s188
      %p200 = scmp.eq.s32.totalorder %s33, 1
      %p201 = por %p199, %p200
      %p203 = scmp.ne.s32.totalorder %s188, %s202
      %p204 = scmp.eq.s32.totalorder %s33, 0
      %p205 = por %p203, %p204
      %s207 = sadd.s32 %s206, 1
      %p210 = scmp.eq.s32.totalorder %s27, 1
      %p211 = scmp.ne.s32.totalorder %s206, %s208
      %p212 = scmp.eq.s32.totalorder %s27, 0
      %p213 = por %p211, %p212
      %p214 = scmp.ne.s32.totalorder %s206, %s208
      %p215 = scmp.eq.s32.totalorder %s32, 1
      %p216 = por %p214, %p215
      %p217 = scmp.ne.s32.totalorder %s208, %s209
      %p218 = scmp.eq.s32.totalorder %s32, 0
      %p219 = por %p217, %p218
      %p220 = scmp.ne.s32.totalorder %s208, %s209
      %p221 = scmp.eq.s32.totalorder %s33, 1
      %p222 = por %p220, %p221
      %p224 = scmp.ne.s32.totalorder %s209, %s223
      %p225 = scmp.eq.s32.totalorder %s33, 0
      %p226 = por %p224, %p225
      %s228 = sadd.s32 %s227, 1
      %p231 = scmp.eq.s32.totalorder %s27, 1
      %p232 = scmp.ne.s32.totalorder %s227, %s229
      %p233 = scmp.eq.s32.totalorder %s27, 0
      %p234 = por %p232, %p233
      %p235 = scmp.ne.s32.totalorder %s227, %s229
      %p236 = scmp.eq.s32.totalorder %s32, 1
      %p237 = por %p235, %p236
      %p238 = scmp.ne.s32.totalorder %s229, %s230
      %p239 = scmp.eq.s32.totalorder %s32, 0
      %p240 = por %p238, %p239
      %p241 = scmp.ne.s32.totalorder %s229, %s230
      %p242 = scmp.eq.s32.totalorder %s33, 1
      %p243 = por %p241, %p242
      %p245 = scmp.ne.s32.totalorder %s230, %s244
      %p246 = scmp.eq.s32.totalorder %s33, 0
      %p247 = por %p245, %p246
      %s249 = sadd.s32 %s248, 1
      %p252 = scmp.eq.s32.totalorder %s27, 1
      %p253 = scmp.ne.s32.totalorder %s248, %s250
      %p254 = scmp.eq.s32.totalorder %s27, 0
      %p255 = por %p253, %p254
      %p256 = scmp.ne.s32.totalorder %s248, %s250
      %p257 = scmp.eq.s32.totalorder %s32, 1
      %p258 = por %p256, %p257
      %p259 = scmp.ne.s32.totalorder %s250, %s251
      %p260 = scmp.eq.s32.totalorder %s32, 0
      %p261 = por %p259, %p260
      %p262 = scmp.ne.s32.totalorder %s250, %s251
      %p263 = scmp.eq.s32.totalorder %s33, 1
      %p264 = por %p262, %p263
      %p266 = scmp.ne.s32.totalorder %s251, %s265
      %p267 = scmp.eq.s32.totalorder %s33, 0
      %p268 = por %p266, %p267
      %s270 = sadd.s32 %s269, 1
      %p273 = scmp.eq.s32.totalorder %s27, 1
      %p274 = scmp.ne.s32.totalorder %s269, %s271
      %p275 = scmp.eq.s32.totalorder %s27, 0
      %p276 = por %p274, %p275
      %p277 = scmp.ne.s32.totalorder %s269, %s271
      %p278 = scmp.eq.s32.totalorder %s32, 1
      %p279 = por %p277, %p278
      %p280 = scmp.ne.s32.totalorder %s271, %s272
      %p281 = scmp.eq.s32.totalorder %s32, 0
      %p282 = por %p280, %p281
      %p283 = scmp.ne.s32.totalorder %s271, %s272
      %p284 = scmp.eq.s32.totalorder %s33, 1
      %p285 = por %p283, %p284
      %p287 = scmp.ne.s32.totalorder %s272, %s286
      %p288 = scmp.eq.s32.totalorder %s33, 0
      %p289 = por %p287, %p288
      %s291 = sadd.s32 %s290, 1
      %p294 = scmp.eq.s32.totalorder %s27, 1
      %p295 = scmp.ne.s32.totalorder %s290, %s292
      %p296 = scmp.eq.s32.totalorder %s27, 0
      %p297 = por %p295, %p296
      %p298 = scmp.ne.s32.totalorder %s290, %s292
      %p299 = scmp.eq.s32.totalorder %s32, 1
      %p300 = por %p298, %p299
      %p301 = scmp.ne.s32.totalorder %s292, %s293
      %p302 = scmp.eq.s32.totalorder %s32, 0
      %p303 = por %p301, %p302
      %p304 = scmp.ne.s32.totalorder %s292, %s293
      %p305 = scmp.eq.s32.totalorder %s33, 1
      %p306 = por %p304, %p305
      %p308 = scmp.ne.s32.totalorder %s293, %s307
      %p309 = scmp.eq.s32.totalorder %s33, 0
      %p310 = por %p308, %p309
      %s312 = sadd.s32 %s311, 1
      %p315 = scmp.eq.s32.totalorder %s27, 1
      %p316 = scmp.ne.s32.totalorder %s311, %s313
      %p317 = scmp.eq.s32.totalorder %s27, 0
      %p318 = por %p316, %p317
      %p319 = scmp.ne.s32.totalorder %s311, %s313
      %p320 = scmp.eq.s32.totalorder %s32, 1
      %p321 = por %p319, %p320
      %p322 = scmp.ne.s32.totalorder %s313, %s314
      %p323 = scmp.eq.s32.totalorder %s32, 0
      %p324 = por %p322, %p323
      %p325 = scmp.ne.s32.totalorder %s313, %s314
      %p326 = scmp.eq.s32.totalorder %s33, 1
      %p327 = por %p325, %p326
      %p329 = scmp.ne.s32.totalorder %s314, %s328
      %p330 = scmp.eq.s32.totalorder %s33, 0
      %p331 = por %p329, %p330
      %s333 = sadd.s32 %s332, 1
      %p336 = scmp.eq.s32.totalorder %s27, 1
      %p337 = scmp.ne.s32.totalorder %s332, %s334
      %p338 = scmp.eq.s32.totalorder %s27, 0
      %p339 = por %p337, %p338
      %p340 = scmp.ne.s32.totalorder %s332, %s334
      %p341 = scmp.eq.s32.totalorder %s32, 1
      %p342 = por %p340, %p341
      %p343 = scmp.ne.s32.totalorder %s334, %s335
      %p344 = scmp.eq.s32.totalorder %s32, 0
      %p345 = por %p343, %p344
      %p346 = scmp.ne.s32.totalorder %s334, %s335
      %p347 = scmp.eq.s32.totalorder %s33, 1
      %p348 = por %p346, %p347
      %p350 = scmp.ne.s32.totalorder %s335, %s349
      %p351 = scmp.eq.s32.totalorder %s33, 0
      %p352 = por %p350, %p351
      %s354 = sadd.s32 %s353, 1
      %p357 = scmp.eq.s32.totalorder %s27, 1
      %p358 = scmp.ne.s32.totalorder %s353, %s355
      %p359 = scmp.eq.s32.totalorder %s27, 0
      %p360 = por %p358, %p359
      %p361 = scmp.ne.s32.totalorder %s353, %s355
      %p362 = scmp.eq.s32.totalorder %s32, 1
      %p363 = por %p361, %p362
      %p364 = scmp.ne.s32.totalorder %s355, %s356
      %p365 = scmp.eq.s32.totalorder %s32, 0
      %p366 = por %p364, %p365
      %p367 = scmp.ne.s32.totalorder %s355, %s356
      %p368 = scmp.eq.s32.totalorder %s33, 1
      %p369 = por %p367, %p368
      %p371 = scmp.ne.s32.totalorder %s356, %s370
      %p372 = scmp.eq.s32.totalorder %s33, 0
      %p373 = por %p371, %p372
      %s375 = sadd.s32 %s374, 1
      %p378 = scmp.eq.s32.totalorder %s27, 1
      %p379 = scmp.ne.s32.totalorder %s374, %s376
      %p380 = scmp.eq.s32.totalorder %s27, 0
      %p381 = por %p379, %p380
      %p382 = scmp.ne.s32.totalorder %s374, %s376
      %p383 = scmp.eq.s32.totalorder %s32, 1
      %p384 = por %p382, %p383
      %p385 = scmp.ne.s32.totalorder %s376, %s377
      %p386 = scmp.eq.s32.totalorder %s32, 0
      %p387 = por %p385, %p386
      %p388 = scmp.ne.s32.totalorder %s376, %s377
      %p389 = scmp.eq.s32.totalorder %s33, 1
      %p390 = por %p388, %p389
      %p392 = scmp.ne.s32.totalorder %s377, %s391
      %p393 = scmp.eq.s32.totalorder %s33, 0
      %p394 = por %p392, %p393
      %s396 = sadd.s32 %s395, 1
      %p399 = scmp.eq.s32.totalorder %s27, 1
      %p400 = scmp.ne.s32.totalorder %s395, %s397
      %p401 = scmp.eq.s32.totalorder %s27, 0
      %p402 = por %p400, %p401
      %p403 = scmp.ne.s32.totalorder %s395, %s397
      %p404 = scmp.eq.s32.totalorder %s32, 1
      %p405 = por %p403, %p404
      %p406 = scmp.ne.s32.totalorder %s397, %s398
      %p407 = scmp.eq.s32.totalorder %s32, 0
      %p408 = por %p406, %p407
      %p409 = scmp.ne.s32.totalorder %s397, %s398
      %p410 = scmp.eq.s32.totalorder %s33, 1
      %p411 = por %p409, %p410
      %p413 = scmp.ne.s32.totalorder %s398, %s412
      %p414 = scmp.eq.s32.totalorder %s33, 0
      %p415 = por %p413, %p414
      %s417 = sadd.s32 %s416, 1
      %p420 = scmp.eq.s32.totalorder %s27, 1
      %p421 = scmp.ne.s32.totalorder %s416, %s418
      %p422 = scmp.eq.s32.totalorder %s27, 0
      %p423 = por %p421, %p422
      %p424 = scmp.ne.s32.totalorder %s416, %s418
      %p425 = scmp.eq.s32.totalorder %s32, 1
      %p426 = por %p424, %p425
      %p427 = scmp.ne.s32.totalorder %s418, %s419
      %p428 = scmp.eq.s32.totalorder %s32, 0
      %p429 = por %p427, %p428
      %p430 = scmp.ne.s32.totalorder %s418, %s419
      %p431 = scmp.eq.s32.totalorder %s33, 1
      %p432 = por %p430, %p431
      %p434 = scmp.ne.s32.totalorder %s419, %s433
      %p435 = scmp.eq.s32.totalorder %s33, 0
      %p436 = por %p434, %p435
      %s437 = ssub.s32 %s34, %s46
      %s438 = ssub.s32 %s35, %s42
      %s439 = sor.u32 %s437, %s438
      %p440 = scmp.eq.s32.totalorder %s439, 0
      %s442 = sadd.s32 %s441, 1
      %s443 = scalar_select %p440, %s441, %s442
      %p446 = pneg %p440
      %p447 = scmp.eq.s32.totalorder %s27, 1
      %p448 = por %p446, %p447
      %p449 = scmp.ne.s32.totalorder %s441, %s444
      %p450 = scmp.eq.s32.totalorder %s27, 0
      %p451 = por %p449, %p450
      %p452 = scmp.ne.s32.totalorder %s441, %s444
      %p453 = scmp.eq.s32.totalorder %s32, 1
      %p454 = por %p452, %p453
      %p455 = scmp.ne.s32.totalorder %s444, %s445
      %p456 = scmp.eq.s32.totalorder %s32, 0
      %p457 = por %p455, %p456
      %p458 = scmp.ne.s32.totalorder %s444, %s445
      %p459 = scmp.eq.s32.totalorder %s33, 1
      %p460 = por %p458, %p459
      %p462 = scmp.ne.s32.totalorder %s445, %s461
      %p463 = scmp.eq.s32.totalorder %s33, 0
      %p464 = por %p462, %p463
      %p465 = scmp.le.s32.totalorder 1, %s27
      %p466 = scmp.lt.s32.totalorder %s27, 3
      %p467 = pnand %p465, %p466
      %p468 = pneg %p467
      // Predicated region
      $region9: #{swin_forward.11} parent=5 // pred_check
        _
      $region10: #{swin_forward.11} parent=5 // pred_check_branch
        %470 = sbr.rel (%p467) target = $region12
      $region11: #{swin_forward.11} parent=5 // pred_region
        %s471 = ssub.s32 %s27, 1
        // Predicated region
        $region13: #{swin_forward.11} parent=11 // pred_check
          %p472 = pneg %p93
        $region14: #{swin_forward.11} parent=11 // pred_check_branch
          %474 = sbr.rel (%p472) target = $region16
        $region15: #{swin_forward.11} parent=11 // pred_region
          %p475 = scmp.lt.s32.totalorder %s37, 0
          %s476 = scalar_select %p475, %s37, 0
          %s477 = smul.addr %s476, 4
          %s478 = smul.addr %s477, 4
          %s479 = scalar_lea.vmem %s1, %s478
        $region16: #{swin_forward.11} parent=11 // pred_fallthru
          _
        // Predicated region
        $region17: #{swin_forward.11} parent=11 // pred_check
          %p480 = pneg %p114
        $region18: #{swin_forward.11} parent=11 // pred_check_branch
          %482 = sbr.rel (%p480) target = $region20
        $region19: #{swin_forward.11} parent=11 // pred_region
          _
        $region20: #{swin_forward.11} parent=11 // pred_fallthru
          _
        // Predicated region
        $region21: #{swin_forward.11} parent=11 // pred_check
          %p483 = pneg %p135
        $region22: #{swin_forward.11} parent=11 // pred_check_branch
          %485 = sbr.rel (%p483) target = $region24
        $region23: #{swin_forward.11} parent=11 // pred_region
          _
        $region24: #{swin_forward.11} parent=11 // pred_fallthru
          _
        // Predicated region
        $region25: #{swin_forward.11} parent=11 // pred_check
          %p486 = pneg %p156
        $region26: #{swin_forward.11} parent=11 // pred_check_branch
          %488 = sbr.rel (%p486) target = $region28
        $region27: #{swin_forward.11} parent=11 // pred_region
          _
        $region28: #{swin_forward.11} parent=11 // pred_fallthru
          _
        // Predicated region
        $region29: #{swin_forward.11} parent=11 // pred_check
          %p489 = pneg %p177
        $region30: #{swin_forward.11} parent=11 // pred_check_branch
          %491 = sbr.rel (%p489) target = $region32
        $region31: #{swin_forward.11} parent=11 // pred_region
          _
        $region32: #{swin_forward.11} parent=11 // pred_fallthru
          _
        // Predicated region
        $region33: #{swin_forward.11} parent=11 // pred_check
          %p492 = pneg %p198
        $region34: #{swin_forward.11} parent=11 // pred_check_branch
          %494 = sbr.rel (%p492) target = $region36
        $region35: #{swin_forward.11} parent=11 // pred_region
          _
        $region36: #{swin_forward.11} parent=11 // pred_fallthru
          _
        // Predicated region
        $region37: #{swin_forward.11} parent=11 // pred_check
          %p495 = pneg %p219
        $region38: #{swin_forward.11} parent=11 // pred_check_branch
          %497 = sbr.rel (%p495) target = $region40
        $region39: #{swin_forward.11} parent=11 // pred_region
          _
        $region40: #{swin_forward.11} parent=11 // pred_fallthru
          _
        // Predicated region
        $region41: #{swin_forward.11} parent=11 // pred_check
          %p498 = pneg %p240
        $region42: #{swin_forward.11} parent=11 // pred_check_branch
          %500 = sbr.rel (%p498) target = $region44
        $region43: #{swin_forward.11} parent=11 // pred_region
          _
        $region44: #{swin_forward.11} parent=11 // pred_fallthru
          _
        // Predicated region
        $region45: #{swin_forward.11} parent=11 // pred_check
          %p501 = pneg %p261
        $region46: #{swin_forward.11} parent=11 // pred_check_branch
          %503 = sbr.rel (%p501) target = $region48
        $region47: #{swin_forward.11} parent=11 // pred_region
          _
        $region48: #{swin_forward.11} parent=11 // pred_fallthru
          _
        // Predicated region
        $region49: #{swin_forward.11} parent=11 // pred_check
          %p504 = pneg %p282
        $region50: #{swin_forward.11} parent=11 // pred_check_branch
          %506 = sbr.rel (%p504) target = $region52
        $region51: #{swin_forward.11} parent=11 // pred_region
          _
        $region52: #{swin_forward.11} parent=11 // pred_fallthru
          _
        // Predicated region
        $region53: #{swin_forward.11} parent=11 // pred_check
          %p507 = pneg %p303
        $region54: #{swin_forward.11} parent=11 // pred_check_branch
          %509 = sbr.rel (%p507) target = $region56
        $region55: #{swin_forward.11} parent=11 // pred_region
          _
        $region56: #{swin_forward.11} parent=11 // pred_fallthru
          _
        // Predicated region
        $region57: #{swin_forward.11} parent=11 // pred_check
          %p510 = pneg %p324
        $region58: #{swin_forward.11} parent=11 // pred_check_branch
          %512 = sbr.rel (%p510) target = $region60
        $region59: #{swin_forward.11} parent=11 // pred_region
          _
        $region60: #{swin_forward.11} parent=11 // pred_fallthru
          _
        // Predicated region
        $region61: #{swin_forward.11} parent=11 // pred_check
          %p513 = pneg %p345
        $region62: #{swin_forward.11} parent=11 // pred_check_branch
          %515 = sbr.rel (%p513) target = $region64
        $region63: #{swin_forward.11} parent=11 // pred_region
          _
        $region64: #{swin_forward.11} parent=11 // pred_fallthru
          _
        // Predicated region
        $region65: #{swin_forward.11} parent=11 // pred_check
          %p516 = pneg %p366
        $region66: #{swin_forward.11} parent=11 // pred_check_branch
          %518 = sbr.rel (%p516) target = $region68
        $region67: #{swin_forward.11} parent=11 // pred_region
          _
        $region68: #{swin_forward.11} parent=11 // pred_fallthru
          _
        // Predicated region
        $region69: #{swin_forward.11} parent=11 // pred_check
          %p519 = pneg %p387
        $region70: #{swin_forward.11} parent=11 // pred_check_branch
          %521 = sbr.rel (%p519) target = $region72
        $region71: #{swin_forward.11} parent=11 // pred_region
          _
        $region72: #{swin_forward.11} parent=11 // pred_fallthru
          _
        // Predicated region
        $region73: #{swin_forward.11} parent=11 // pred_check
          %p522 = pneg %p408
        $region74: #{swin_forward.11} parent=11 // pred_check_branch
          %524 = sbr.rel (%p522) target = $region76
        $region75: #{swin_forward.11} parent=11 // pred_region
          _
        $region76: #{swin_forward.11} parent=11 // pred_fallthru
          _
        // Predicated region
        $region77: #{swin_forward.11} parent=11 // pred_check
          %p525 = pneg %p429
        $region78: #{swin_forward.11} parent=11 // pred_check_branch
          %527 = sbr.rel (%p525) target = $region80
        $region79: #{swin_forward.11} parent=11 // pred_region
          _
        $region80: #{swin_forward.11} parent=11 // pred_fallthru
          _
      $region12: #{swin_forward.11} parent=5 // pred_fallthru
        _
      %p528 = scmp.lt.s32.totalorder %s27, 2
      // Predicated region
      $region81: #{swin_forward.11} parent=5 // pred_check
        %p529 = pneg %p528
      $region82: #{swin_forward.11} parent=5 // pred_check_branch
        %531 = sbr.rel (%p529) target = $region84
      $region83: #{swin_forward.11} parent=5 // pred_region
        // Predicated region
        $region85: #{swin_forward.11} parent=83 // pred_check
          %p532 = pneg %p61
        $region86: #{swin_forward.11} parent=83 // pred_check_branch
          %534 = sbr.rel (%p532) target = $region88
        $region87: #{swin_forward.11} parent=83 // pred_region
          %p535 = scmp.lt.s32.totalorder %s34, 1
          %s536 = scalar_select %p535, %s34, 1
          %p537 = scmp.lt.s32.totalorder %s35, 0
          %s538 = scalar_select %p537, %s35, 0
          %s539 = sadd.s32 %s538, %s536
          %s540 = smul.addr %s539, 4
          %s541 = scalar_lea.vmem %s0, %s540
        $region88: #{swin_forward.11} parent=83 // pred_fallthru
          _
      $region84: #{swin_forward.11} parent=5 // pred_fallthru
        _
      %p542 = scmp.le.s32.totalorder 1, %s27
      %p543 = scmp.lt.s32.totalorder %s27, 3
      %p544 = pnand %p542, %p543
      %p545 = pneg %p544
      // Predicated region
      $region89: #{swin_forward.11} parent=5 // pred_check
        _
      $region90: #{swin_forward.11} parent=5 // pred_check_branch
        %547 = sbr.rel (%p544) target = $region92
      $region91: #{swin_forward.11} parent=5 // pred_region
        %s548 = ssub.s32 %s27, 1
        %p549 = scmp.lt.s32.totalorder %s36, 1
        %s550 = scalar_select %p549, %s36, 1
        %p551 = scmp.lt.s32.totalorder %s37, 0
        %s552 = scalar_select %p551, %s37, 0
        %s553 = sadd.s32 %s552, %s550
        %s554 = smul.addr %s553, 4
        %s555 = scalar_lea.vmem %s0, %s554
        %p556 = pneg %p67
        %p557 = pneg %p64
        %p558 = scmp.lt.s32.totalorder %s37, 0
        %s559 = scalar_select %p558, %s37, 0
        %s560 = smul.addr %s559, 4
        %s561 = smul.addr %s560, 4
        %s562 = scalar_lea.vmem %s1, %s561
        %p563 = pneg %p93
        %p564 = pneg %p90
        %p565 = pneg %p114
        %p566 = pneg %p111
        %p567 = pneg %p135
        %p568 = pneg %p132
        %p569 = pneg %p156
        %p570 = pneg %p153
        %p571 = pneg %p177
        %p572 = pneg %p174
        %p573 = pneg %p198
        %p574 = pneg %p195
        %p575 = pneg %p219
        %p576 = pneg %p216
        %p577 = pneg %p240
        %p578 = pneg %p237
        %p579 = pneg %p261
        %p580 = pneg %p258
        %p581 = pneg %p282
        %p582 = pneg %p279
        %p583 = pneg %p303
        %p584 = pneg %p300
        %p585 = pneg %p324
        %p586 = pneg %p321
        %p587 = pneg %p345
        %p588 = pneg %p342
        %p589 = pneg %p366
        %p590 = pneg %p363
        %p591 = pneg %p387
        %p592 = pneg %p384
        %p593 = pneg %p408
        %p594 = pneg %p405
        %p595 = pneg %p429
        %p596 = pneg %p426
        %p597 = pneg %p457
        %p598 = pneg %p454
        %s599 = sand.u32 %s444, 1
        %s600 = scalar_lea.sflag [#allocation3], %s599
        %s601 = sand.u32 %s444, 1
        %s602 = smul.addr %s601, 4
        %s603 = scalar_lea.vmem [#allocation2], %s602
        %p604 = scmp.lt.s32.totalorder %s36, 1
        %s605 = scalar_select %p604, %s36, 1
        %p606 = scmp.lt.s32.totalorder %s37, 0
        %s607 = scalar_select %p606, %s37, 0
        %s608 = sadd.s32 %s607, %s605
        %s609 = smul.addr %s608, 4
        %s610 = scalar_lea.vmem %s0, %s609
        %p611 = scmp.lt.s32.totalorder %s37, 0
        %s612 = scalar_select %p611, %s37, 0
        %s613 = smul.addr %s612, 4
        %s614 = smul.addr %s613, 4
        %s615 = scalar_lea.vmem %s1, %s614
        %v617 = vld [vmem:[%s610] sm:$0xf]
        %v618 = vld [vmem:[%s615] sm:$0xf]
        %v619 = vld [vmem:[%s615 + $0x4] sm:$0xf]
        %v620 = vld [vmem:[%s615 + $0x8] sm:$0xf]
        %v621 = vld [vmem:[%s615 + $0xc] sm:$0xf]
        %v622 = vld [vmem:[%s2] sm:$0x1]
        %v623 = vld [vmem:[%s3] sm:$0x1]
        %vm624 = vcmask 519168
        %v625 = vsel %vm624, %v617, 0.0
        %626 = vadd.xlane.f32.xlu0 %v625
        %v627 = vpop.xlane.xlu0 %626
        %v628 = vrcp.pop 64.0
        %v629 = vmul.f32 64.0, %v628
        %v630 = vsub.f32 1.0, %v629
        %v631 = vmul.f32 %v628, %v630
        %v632 = vadd.f32 %v628, %v631
        %vm633 = vweird.f32 %v628
        %v634 = vsel %vm633, %v628, %v632
        %v635 = vmul.f32 %v627, %v634
        %v636 = vsub.f32 %v617, %v635
        %v637 = vmul.f32 %v636, %v636
        %v638 = vsel %vm624, %v637, 0.0
        %639 = vadd.xlane.f32.xlu0 %v638
        %v640 = vpop.xlane.xlu0 %639
        %v641 = vmul.f32 %v640, %v634
        %v642 = vadd.f32 %v641, 1e-05
        %v643 = vrsqrt.pop %v642
        %v644 = vmul.f32 %v643, %v642
        %v645 = vmul.f32 %v644, %v643
        %v646 = vmul.f32 0.5, %v645
        %v647 = vsub.f32 1.5, %v646
        %v648 = vmul.f32 %v643, %v647
        %vm649 = vweird.f32 %v642
        %vm650 = vweird.f32 %v643
        %vm651 = vmor %vm649, %vm650
        %v652 = vsel %vm651, %v643, %v648
        %v653 = vmul.f32 %v636, %v652
        %v655 = vperm.slane %v622, 0
        %v657 = vmul.f32 %v653, %v655
        %v659 = vperm.slane %v623, 0
        %v661 = vadd.f32 %v657, %v659
        %v662 = vpack.c.bf16 %v661, %v661
        %v663 = vld [vmem:[%s4] sm:$0xf]
        %v664 = vld [vmem:[%s4 + $0x4] sm:$0xf]
        %v665 = vld [vmem:[%s4 + $0x8] sm:$0xf]
        %v666 = vld [vmem:[%s4 + $0xc] sm:$0xf]
        %v667 = vld [vmem:[%s4 + $0x10] sm:$0xf]
        %v668 = vld [vmem:[%s4 + $0x14] sm:$0xf]
        %v669 = vld [vmem:[%s4 + $0x18] sm:$0xf]
        %v670 = vld [vmem:[%s4 + $0x1c] sm:$0xf]
        %v671 = vld [vmem:[%s4 + $0x20] sm:$0xf]
        %v672 = vld [vmem:[%s4 + $0x24] sm:$0xf]
        %v673 = vld [vmem:[%s4 + $0x28] sm:$0xf]
        %v674 = vld [vmem:[%s4 + $0x2c] sm:$0xf]
        %v675 = vld [vmem:[%s4 + $0x30] sm:$0xf]
        %v676 = vld [vmem:[%s4 + $0x34] sm:$0xf]
        %v677 = vld [vmem:[%s4 + $0x38] sm:$0xf]
        %v678 = vld [vmem:[%s4 + $0x3c] sm:$0xf]
        %v679 = vld [vmem:[%s4 + $0x40] sm:$0xf]
        %v680 = vld [vmem:[%s4 + $0x44] sm:$0xf]
        %v681 = vld [vmem:[%s4 + $0x48] sm:$0xf]
        %v682 = vld [vmem:[%s4 + $0x4c] sm:$0xf]
        %v683 = vld [vmem:[%s4 + $0x50] sm:$0xf]
        %v684 = vld [vmem:[%s4 + $0x54] sm:$0xf]
        %v685 = vld [vmem:[%s4 + $0x58] sm:$0xf]
        %v686 = vld [vmem:[%s4 + $0x5c] sm:$0xf]
        %v687 = vld [vmem:[%s4 + $0x60] sm:$0xf]
        %v688 = vld [vmem:[%s4 + $0x64] sm:$0xf]
        %v689 = vld [vmem:[%s4 + $0x68] sm:$0xf]
        %v690 = vld [vmem:[%s4 + $0x6c] sm:$0xf]
        %v691 = vld [vmem:[%s4 + $0x70] sm:$0xf]
        %v692 = vld [vmem:[%s4 + $0x74] sm:$0xf]
        %v693 = vld [vmem:[%s4 + $0x78] sm:$0xf]
        %v694 = vld [vmem:[%s4 + $0x7c] sm:$0xf]
        %v695 = vld [vmem:[%s5] sm:$0x1]
        %v696 = vld [vmem:[%s5 + $0x1] sm:$0x1]
        %v697 = vld [vmem:[%s5 + $0x2] sm:$0x1]
        %v698 = vld [vmem:[%s5 + $0x3] sm:$0x1]
        %v703 = vperm.slane %v695, 0
        %v704 = vperm.slane %v696, 0
        %v705 = vperm.slane %v697, 0
        %v706 = vperm.slane %v698, 0
        %v719 = vunpack.c.l.b16 %v663
        %v720 = vunpack.c.l.b16 %v664
        %v721 = vunpack.c.l.b16 %v665
        %v722 = vunpack.c.l.b16 %v666
        %v723 = vunpack.c.l.b16 %v667
        %v724 = vunpack.c.l.b16 %v668
        %v725 = vunpack.c.l.b16 %v669
        %v726 = vunpack.c.l.b16 %v670
        %v727 = vpack.c.b16 %v720, %v719
        %v728 = vpack.c.b16 %v722, %v721
        %v729 = vpack.c.b16 %v724, %v723
        %v730 = vpack.c.b16 %v726, %v725
        %vm735 = vcmask 523264
        %v737 = vsel %vm735, %v662, 0
        %739 = vmatpush.bf16.msra.mxu0 0
        %740 = vmatpush.bf16.msra.mxu0 0
        %741 = vmatpush.bf16.msra.mxu0 0
        %742 = vmatpush.bf16.msra.mxu0 0
        %743 = vmatpush.bf16.msra.mxu0 %v730
        %744 = vmatpush.bf16.msra.mxu0 %v729
        %745 = vmatpush.bf16.msra.mxu0 %v728
        %746 = vmatpush.bf16.msra.mxu0 %v727
        %747 = vmatmul.bf16.gmra.mxu0 %v737
        %v748 = vpop.f32.mrf.mxu0
        %v749 = vadd.f32 %v703, %v748
        %v750 = vpop.f32.mrf.mxu0
        %751 = vdwg.mxu0
        %v760 = vunpack.c.l.b16 %v671
        %v761 = vunpack.c.l.b16 %v672
        %v762 = vunpack.c.l.b16 %v673
        %v763 = vunpack.c.l.b16 %v674
        %v764 = vunpack.c.l.b16 %v675
        %v765 = vunpack.c.l.b16 %v676
        %v766 = vunpack.c.l.b16 %v677
        %v767 = vunpack.c.l.b16 %v678
        %v768 = vpack.c.b16 %v761, %v760
        %v769 = vpack.c.b16 %v763, %v762
        %v770 = vpack.c.b16 %v765, %v764
        %v771 = vpack.c.b16 %v767, %v766
        %776 = vmatpush.bf16.msra.mxu0 0
        %777 = vmatpush.bf16.msra.mxu0 0
        %778 = vmatpush.bf16.msra.mxu0 0
        %779 = vmatpush.bf16.msra.mxu0 0
        %780 = vmatpush.bf16.msra.mxu0 %v771
        %781 = vmatpush.bf16.msra.mxu0 %v770
        %782 = vmatpush.bf16.msra.mxu0 %v769
        %783 = vmatpush.bf16.msra.mxu0 %v768
        %784 = vmatmul.bf16.gmra.mxu0 %v737
        %v785 = vpop.f32.mrf.mxu0
        %v786 = vadd.f32 %v704, %v785
        %v787 = vpop.f32.mrf.mxu0
        %788 = vdwg.mxu0
        %v797 = vunpack.c.l.b16 %v679
        %v798 = vunpack.c.l.b16 %v680
        %v799 = vunpack.c.l.b16 %v681
        %v800 = vunpack.c.l.b16 %v682
        %v801 = vunpack.c.l.b16 %v683
        %v802 = vunpack.c.l.b16 %v684
        %v803 = vunpack.c.l.b16 %v685
        %v804 = vunpack.c.l.b16 %v686
        %v805 = vpack.c.b16 %v798, %v797
        %v806 = vpack.c.b16 %v800, %v799
        %v807 = vpack.c.b16 %v802, %v801
        %v808 = vpack.c.b16 %v804, %v803
        %813 = vmatpush.bf16.msra.mxu0 0
        %814 = vmatpush.bf16.msra.mxu0 0
        %815 = vmatpush.bf16.msra.mxu0 0
        %816 = vmatpush.bf16.msra.mxu0 0
        %817 = vmatpush.bf16.msra.mxu0 %v808
        %818 = vmatpush.bf16.msra.mxu0 %v807
        %819 = vmatpush.bf16.msra.mxu0 %v806
        %820 = vmatpush.bf16.msra.mxu0 %v805
        %821 = vmatmul.bf16.gmra.mxu0 %v737
        %v822 = vpop.f32.mrf.mxu0
        %v823 = vadd.f32 %v705, %v822
        %v824 = vpop.f32.mrf.mxu0
        %825 = vdwg.mxu0
        %v834 = vunpack.c.l.b16 %v687
        %v835 = vunpack.c.l.b16 %v688
        %v836 = vunpack.c.l.b16 %v689
        %v837 = vunpack.c.l.b16 %v690
        %v838 = vunpack.c.l.b16 %v691
        %v839 = vunpack.c.l.b16 %v692
        %v840 = vunpack.c.l.b16 %v693
        %v841 = vunpack.c.l.b16 %v694
        %v842 = vpack.c.b16 %v835, %v834
        %v843 = vpack.c.b16 %v837, %v836
        %v844 = vpack.c.b16 %v839, %v838
        %v845 = vpack.c.b16 %v841, %v840
        %850 = vmatpush.bf16.msra.mxu0 0
        %851 = vmatpush.bf16.msra.mxu0 0
        %852 = vmatpush.bf16.msra.mxu0 0
        %853 = vmatpush.bf16.msra.mxu0 0
        %854 = vmatpush.bf16.msra.mxu0 %v845
        %855 = vmatpush.bf16.msra.mxu0 %v844
        %856 = vmatpush.bf16.msra.mxu0 %v843
        %857 = vmatpush.bf16.msra.mxu0 %v842
        %858 = vmatmul.bf16.gmra.mxu0 %v737
        %v859 = vpop.f32.mrf.mxu0
        %v860 = vadd.f32 %v706, %v859
        %v861 = vpop.f32.mrf.mxu0
        %862 = vdwg.mxu0
        %v863 = vld [vmem:[%s6] sm:$0xf]
        %v864 = vld [vmem:[%s6 + $0x4] sm:$0xf]
        %v865 = vld [vmem:[%s6 + $0x8] sm:$0xf]
        %v866 = vld [vmem:[%s6 + $0xc] sm:$0xf]
        %v867 = vld [vmem:[%s6 + $0x10] sm:$0xf]
        %v868 = vld [vmem:[%s6 + $0x14] sm:$0xf]
        %v869 = vld [vmem:[%s6 + $0x18] sm:$0xf]
        %v870 = vld [vmem:[%s6 + $0x1c] sm:$0xf]
        %v871 = vld [vmem:[%s6 + $0x20] sm:$0xf]
        %v872 = vld [vmem:[%s6 + $0x24] sm:$0xf]
        %v873 = vld [vmem:[%s6 + $0x28] sm:$0xf]
        %v874 = vld [vmem:[%s6 + $0x2c] sm:$0xf]
        %v875 = vld [vmem:[%s6 + $0x30] sm:$0xf]
        %v876 = vld [vmem:[%s6 + $0x34] sm:$0xf]
        %v877 = vld [vmem:[%s6 + $0x38] sm:$0xf]
        %v878 = vld [vmem:[%s6 + $0x3c] sm:$0xf]
        %v879 = vld [vmem:[%s6 + $0x40] sm:$0xf]
        %v880 = vld [vmem:[%s6 + $0x44] sm:$0xf]
        %v881 = vld [vmem:[%s6 + $0x48] sm:$0xf]
        %v882 = vld [vmem:[%s6 + $0x4c] sm:$0xf]
        %v883 = vld [vmem:[%s6 + $0x50] sm:$0xf]
        %v884 = vld [vmem:[%s6 + $0x54] sm:$0xf]
        %v885 = vld [vmem:[%s6 + $0x58] sm:$0xf]
        %v886 = vld [vmem:[%s6 + $0x5c] sm:$0xf]
        %v887 = vld [vmem:[%s6 + $0x60] sm:$0xf]
        %v888 = vld [vmem:[%s6 + $0x64] sm:$0xf]
        %v889 = vld [vmem:[%s6 + $0x68] sm:$0xf]
        %v890 = vld [vmem:[%s6 + $0x6c] sm:$0xf]
        %v891 = vld [vmem:[%s6 + $0x70] sm:$0xf]
        %v892 = vld [vmem:[%s6 + $0x74] sm:$0xf]
        %v893 = vld [vmem:[%s6 + $0x78] sm:$0xf]
        %v894 = vld [vmem:[%s6 + $0x7c] sm:$0xf]
        %v895 = vld [vmem:[%s7] sm:$0x1]
        %v896 = vld [vmem:[%s7 + $0x1] sm:$0x1]
        %v897 = vld [vmem:[%s7 + $0x2] sm:$0x1]
        %v898 = vld [vmem:[%s7 + $0x3] sm:$0x1]
        %v903 = vperm.slane %v895, 0
        %v904 = vperm.slane %v896, 0
        %v905 = vperm.slane %v897, 0
        %v906 = vperm.slane %v898, 0
        %v919 = vunpack.c.l.b16 %v863
        %v920 = vunpack.c.l.b16 %v864
        %v921 = vunpack.c.l.b16 %v865
        %v922 = vunpack.c.l.b16 %v866
        %v923 = vunpack.c.l.b16 %v867
        %v924 = vunpack.c.l.b16 %v868
        %v925 = vunpack.c.l.b16 %v869
        %v926 = vunpack.c.l.b16 %v870
        %v927 = vpack.c.b16 %v920, %v919
        %v928 = vpack.c.b16 %v922, %v921
        %v929 = vpack.c.b16 %v924, %v923
        %v930 = vpack.c.b16 %v926, %v925
        %935 = vmatpush.bf16.msra.mxu0 0
        %936 = vmatpush.bf16.msra.mxu0 0
        %937 = vmatpush.bf16.msra.mxu0 0
        %938 = vmatpush.bf16.msra.mxu0 0
        %939 = vmatpush.bf16.msra.mxu0 %v930
        %940 = vmatpush.bf16.msra.mxu0 %v929
        %941 = vmatpush.bf16.msra.mxu0 %v928
        %942 = vmatpush.bf16.msra.mxu0 %v927
        %943 = vmatmul.bf16.gmra.mxu0 %v737
        %v944 = vpop.f32.mrf.mxu0
        %v945 = vadd.f32 %v903, %v944
        %v946 = vpop.f32.mrf.mxu0
        %947 = vdwg.mxu0
        %v956 = vunpack.c.l.b16 %v871
        %v957 = vunpack.c.l.b16 %v872
        %v958 = vunpack.c.l.b16 %v873
        %v959 = vunpack.c.l.b16 %v874
        %v960 = vunpack.c.l.b16 %v875
        %v961 = vunpack.c.l.b16 %v876
        %v962 = vunpack.c.l.b16 %v877
        %v963 = vunpack.c.l.b16 %v878
        %v964 = vpack.c.b16 %v957, %v956
        %v965 = vpack.c.b16 %v959, %v958
        %v966 = vpack.c.b16 %v961, %v960
        %v967 = vpack.c.b16 %v963, %v962
        %972 = vmatpush.bf16.msra.mxu0 0
        %973 = vmatpush.bf16.msra.mxu0 0
        %974 = vmatpush.bf16.msra.mxu0 0
        %975 = vmatpush.bf16.msra.mxu0 0
        %976 = vmatpush.bf16.msra.mxu0 %v967
        %977 = vmatpush.bf16.msra.mxu0 %v966
        %978 = vmatpush.bf16.msra.mxu0 %v965
        %979 = vmatpush.bf16.msra.mxu0 %v964
        %980 = vmatmul.bf16.gmra.mxu0 %v737
        %v981 = vpop.f32.mrf.mxu0
        %v982 = vadd.f32 %v904, %v981
        %v983 = vpop.f32.mrf.mxu0
        %984 = vdwg.mxu0
        %v993 = vunpack.c.l.b16 %v879
        %v994 = vunpack.c.l.b16 %v880
        %v995 = vunpack.c.l.b16 %v881
        %v996 = vunpack.c.l.b16 %v882
        %v997 = vunpack.c.l.b16 %v883
        %v998 = vunpack.c.l.b16 %v884
        %v999 = vunpack.c.l.b16 %v885
        %v1000 = vunpack.c.l.b16 %v886
        %v1001 = vpack.c.b16 %v994, %v993
        %v1002 = vpack.c.b16 %v996, %v995
        %v1003 = vpack.c.b16 %v998, %v997
        %v1004 = vpack.c.b16 %v1000, %v999
        %1009 = vmatpush.bf16.msra.mxu0 0
        %1010 = vmatpush.bf16.msra.mxu0 0
        %1011 = vmatpush.bf16.msra.mxu0 0
        %1012 = vmatpush.bf16.msra.mxu0 0
        %1013 = vmatpush.bf16.msra.mxu0 %v1004
        %1014 = vmatpush.bf16.msra.mxu0 %v1003
        %1015 = vmatpush.bf16.msra.mxu0 %v1002
        %1016 = vmatpush.bf16.msra.mxu0 %v1001
        %1017 = vmatmul.bf16.gmra.mxu0 %v737
        %v1018 = vpop.f32.mrf.mxu0
        %v1019 = vadd.f32 %v905, %v1018
        %v1020 = vpop.f32.mrf.mxu0
        %1021 = vdwg.mxu0
        %v1030 = vunpack.c.l.b16 %v887
        %v1031 = vunpack.c.l.b16 %v888
        %v1032 = vunpack.c.l.b16 %v889
        %v1033 = vunpack.c.l.b16 %v890
        %v1034 = vunpack.c.l.b16 %v891
        %v1035 = vunpack.c.l.b16 %v892
        %v1036 = vunpack.c.l.b16 %v893
        %v1037 = vunpack.c.l.b16 %v894
        %v1038 = vpack.c.b16 %v1031, %v1030
        %v1039 = vpack.c.b16 %v1033, %v1032
        %v1040 = vpack.c.b16 %v1035, %v1034
        %v1041 = vpack.c.b16 %v1037, %v1036
        %1046 = vmatpush.bf16.msra.mxu0 0
        %1047 = vmatpush.bf16.msra.mxu0 0
        %1048 = vmatpush.bf16.msra.mxu0 0
        %1049 = vmatpush.bf16.msra.mxu0 0
        %1050 = vmatpush.bf16.msra.mxu0 %v1041
        %1051 = vmatpush.bf16.msra.mxu0 %v1040
        %1052 = vmatpush.bf16.msra.mxu0 %v1039
        %1053 = vmatpush.bf16.msra.mxu0 %v1038
        %1054 = vmatmul.bf16.gmra.mxu0 %v737
        %v1055 = vpop.f32.mrf.mxu0
        %v1056 = vadd.f32 %v906, %v1055
        %v1057 = vpop.f32.mrf.mxu0
        %1058 = vdwg.mxu0
        %v1059 = vld [vmem:[%s8] sm:$0xf]
        %v1060 = vld [vmem:[%s8 + $0x4] sm:$0xf]
        %v1061 = vld [vmem:[%s8 + $0x8] sm:$0xf]
        %v1062 = vld [vmem:[%s8 + $0xc] sm:$0xf]
        %v1063 = vld [vmem:[%s8 + $0x10] sm:$0xf]
        %v1064 = vld [vmem:[%s8 + $0x14] sm:$0xf]
        %v1065 = vld [vmem:[%s8 + $0x18] sm:$0xf]
        %v1066 = vld [vmem:[%s8 + $0x1c] sm:$0xf]
        %v1067 = vld [vmem:[%s8 + $0x20] sm:$0xf]
        %v1068 = vld [vmem:[%s8 + $0x24] sm:$0xf]
        %v1069 = vld [vmem:[%s8 + $0x28] sm:$0xf]
        %v1070 = vld [vmem:[%s8 + $0x2c] sm:$0xf]
        %v1071 = vld [vmem:[%s8 + $0x30] sm:$0xf]
        %v1072 = vld [vmem:[%s8 + $0x34] sm:$0xf]
        %v1073 = vld [vmem:[%s8 + $0x38] sm:$0xf]
        %v1074 = vld [vmem:[%s8 + $0x3c] sm:$0xf]
        %v1075 = vld [vmem:[%s8 + $0x40] sm:$0xf]
        %v1076 = vld [vmem:[%s8 + $0x44] sm:$0xf]
        %v1077 = vld [vmem:[%s8 + $0x48] sm:$0xf]
        %v1078 = vld [vmem:[%s8 + $0x4c] sm:$0xf]
        %v1079 = vld [vmem:[%s8 + $0x50] sm:$0xf]
        %v1080 = vld [vmem:[%s8 + $0x54] sm:$0xf]
        %v1081 = vld [vmem:[%s8 + $0x58] sm:$0xf]
        %v1082 = vld [vmem:[%s8 + $0x5c] sm:$0xf]
        %v1083 = vld [vmem:[%s8 + $0x60] sm:$0xf]
        %v1084 = vld [vmem:[%s8 + $0x64] sm:$0xf]
        %v1085 = vld [vmem:[%s8 + $0x68] sm:$0xf]
        %v1086 = vld [vmem:[%s8 + $0x6c] sm:$0xf]
        %v1087 = vld [vmem:[%s8 + $0x70] sm:$0xf]
        %v1088 = vld [vmem:[%s8 + $0x74] sm:$0xf]
        %v1089 = vld [vmem:[%s8 + $0x78] sm:$0xf]
        %v1090 = vld [vmem:[%s8 + $0x7c] sm:$0xf]
        %v1091 = vld [vmem:[%s9] sm:$0x1]
        %v1092 = vld [vmem:[%s9 + $0x1] sm:$0x1]
        %v1093 = vld [vmem:[%s9 + $0x2] sm:$0x1]
        %v1094 = vld [vmem:[%s9 + $0x3] sm:$0x1]
        %v1099 = vperm.slane %v1091, 0
        %v1100 = vperm.slane %v1092, 0
        %v1101 = vperm.slane %v1093, 0
        %v1102 = vperm.slane %v1094, 0
        %v1115 = vunpack.c.l.b16 %v1059
        %v1116 = vunpack.c.l.b16 %v1060
        %v1117 = vunpack.c.l.b16 %v1061
        %v1118 = vunpack.c.l.b16 %v1062
        %v1119 = vunpack.c.l.b16 %v1063
        %v1120 = vunpack.c.l.b16 %v1064
        %v1121 = vunpack.c.l.b16 %v1065
        %v1122 = vunpack.c.l.b16 %v1066
        %v1123 = vpack.c.b16 %v1116, %v1115
        %v1124 = vpack.c.b16 %v1118, %v1117
        %v1125 = vpack.c.b16 %v1120, %v1119
        %v1126 = vpack.c.b16 %v1122, %v1121
        %1131 = vmatpush.bf16.msra.mxu0 0
        %1132 = vmatpush.bf16.msra.mxu0 0
        %1133 = vmatpush.bf16.msra.mxu0 0
        %1134 = vmatpush.bf16.msra.mxu0 0
        %1135 = vmatpush.bf16.msra.mxu0 %v1126
        %1136 = vmatpush.bf16.msra.mxu0 %v1125
        %1137 = vmatpush.bf16.msra.mxu0 %v1124
        %1138 = vmatpush.bf16.msra.mxu0 %v1123
        %1139 = vmatmul.bf16.gmra.mxu0 %v737
        %v1140 = vpop.f32.mrf.mxu0
        %v1141 = vadd.f32 %v1099, %v1140
        %v1142 = vpop.f32.mrf.mxu0
        %1143 = vdwg.mxu0
        %v1152 = vunpack.c.l.b16 %v1067
        %v1153 = vunpack.c.l.b16 %v1068
        %v1154 = vunpack.c.l.b16 %v1069
        %v1155 = vunpack.c.l.b16 %v1070
        %v1156 = vunpack.c.l.b16 %v1071
        %v1157 = vunpack.c.l.b16 %v1072
        %v1158 = vunpack.c.l.b16 %v1073
        %v1159 = vunpack.c.l.b16 %v1074
        %v1160 = vpack.c.b16 %v1153, %v1152
        %v1161 = vpack.c.b16 %v1155, %v1154
        %v1162 = vpack.c.b16 %v1157, %v1156
        %v1163 = vpack.c.b16 %v1159, %v1158
        %1168 = vmatpush.bf16.msra.mxu0 0
        %1169 = vmatpush.bf16.msra.mxu0 0
        %1170 = vmatpush.bf16.msra.mxu0 0
        %1171 = vmatpush.bf16.msra.mxu0 0
        %1172 = vmatpush.bf16.msra.mxu0 %v1163
        %1173 = vmatpush.bf16.msra.mxu0 %v1162
        %1174 = vmatpush.bf16.msra.mxu0 %v1161
        %1175 = vmatpush.bf16.msra.mxu0 %v1160
        %1176 = vmatmul.bf16.gmra.mxu0 %v737
        %v1177 = vpop.f32.mrf.mxu0
        %v1178 = vadd.f32 %v1100, %v1177
        %v1179 = vpop.f32.mrf.mxu0
        %1180 = vdwg.mxu0
        %v1189 = vunpack.c.l.b16 %v1075
        %v1190 = vunpack.c.l.b16 %v1076
        %v1191 = vunpack.c.l.b16 %v1077
        %v1192 = vunpack.c.l.b16 %v1078
        %v1193 = vunpack.c.l.b16 %v1079
        %v1194 = vunpack.c.l.b16 %v1080
        %v1195 = vunpack.c.l.b16 %v1081
        %v1196 = vunpack.c.l.b16 %v1082
        %v1197 = vpack.c.b16 %v1190, %v1189
        %v1198 = vpack.c.b16 %v1192, %v1191
        %v1199 = vpack.c.b16 %v1194, %v1193
        %v1200 = vpack.c.b16 %v1196, %v1195
        %1205 = vmatpush.bf16.msra.mxu0 0
        %1206 = vmatpush.bf16.msra.mxu0 0
        %1207 = vmatpush.bf16.msra.mxu0 0
        %1208 = vmatpush.bf16.msra.mxu0 0
        %1209 = vmatpush.bf16.msra.mxu0 %v1200
        %1210 = vmatpush.bf16.msra.mxu0 %v1199
        %1211 = vmatpush.bf16.msra.mxu0 %v1198
        %1212 = vmatpush.bf16.msra.mxu0 %v1197
        %1213 = vmatmul.bf16.gmra.mxu0 %v737
        %v1214 = vpop.f32.mrf.mxu0
        %v1215 = vadd.f32 %v1101, %v1214
        %v1216 = vpop.f32.mrf.mxu0
        %1217 = vdwg.mxu0
        %v1226 = vunpack.c.l.b16 %v1083
        %v1227 = vunpack.c.l.b16 %v1084
        %v1228 = vunpack.c.l.b16 %v1085
        %v1229 = vunpack.c.l.b16 %v1086
        %v1230 = vunpack.c.l.b16 %v1087
        %v1231 = vunpack.c.l.b16 %v1088
        %v1232 = vunpack.c.l.b16 %v1089
        %v1233 = vunpack.c.l.b16 %v1090
        %v1234 = vpack.c.b16 %v1227, %v1226
        %v1235 = vpack.c.b16 %v1229, %v1228
        %v1236 = vpack.c.b16 %v1231, %v1230
        %v1237 = vpack.c.b16 %v1233, %v1232
        %1242 = vmatpush.bf16.msra.mxu0 0
        %1243 = vmatpush.bf16.msra.mxu0 0
        %1244 = vmatpush.bf16.msra.mxu0 0
        %1245 = vmatpush.bf16.msra.mxu0 0
        %1246 = vmatpush.bf16.msra.mxu0 %v1237
        %1247 = vmatpush.bf16.msra.mxu0 %v1236
        %1248 = vmatpush.bf16.msra.mxu0 %v1235
        %1249 = vmatpush.bf16.msra.mxu0 %v1234
        %1250 = vmatmul.bf16.gmra.mxu0 %v737
        %v1251 = vpop.f32.mrf.mxu0
        %v1252 = vadd.f32 %v1102, %v1251
        %v1253 = vpop.f32.mrf.mxu0
        %1254 = vdwg.mxu0
        %v1255 = vpack.c.bf16 %v749, %v749
        %v1256 = vpack.c.bf16 %v786, %v786
        %v1257 = vpack.c.bf16 %v823, %v823
        %v1258 = vpack.c.bf16 %v860, %v860
        %v1259 = vpack.c.bf16 %v945, %v945
        %v1260 = vpack.c.bf16 %v982, %v982
        %v1261 = vpack.c.bf16 %v1019, %v1019
        %v1262 = vpack.c.bf16 %v1056, %v1056
        %vm1263 = vcmask 130048
        %v1265 = vsel %vm1263, %v1255, 0
        %v1268 = vsel %vm1263, %v1259, 0
        %1270 = vmatpush.bf16.xpose.msra.mxu0 0
        %1271 = vmatpush.bf16.xpose.msra.mxu0 0
        %1272 = vmatpush.bf16.xpose.msra.mxu0 0
        %1273 = vmatpush.bf16.xpose.msra.mxu0 0
        %1274 = vmatpush.bf16.xpose.msra.mxu0 0
        %1275 = vmatpush.bf16.xpose.msra.mxu0 0
        %1276 = vmatpush.bf16.xpose.msra.mxu0 0
        %1277 = vmatpush.bf16.xpose.msra.mxu0 %v1268
        %1278 = vmatmul.bf16.gmra.mxu0 %v1265
        %v1279 = vpop.f32.mrf.mxu0
        %v1280 = vadd.f32 0.0, %v1279
        %v1281 = vpop.f32.mrf.mxu0
        %1282 = vdwg.mxu0
        %v1284 = vsel %vm1263, %v1256, 0
        %v1287 = vsel %vm1263, %v1260, 0
        %1289 = vmatpush.bf16.xpose.msra.mxu0 0
        %1290 = vmatpush.bf16.xpose.msra.mxu0 0
        %1291 = vmatpush.bf16.xpose.msra.mxu0 0
        %1292 = vmatpush.bf16.xpose.msra.mxu0 0
        %1293 = vmatpush.bf16.xpose.msra.mxu0 0
        %1294 = vmatpush.bf16.xpose.msra.mxu0 0
        %1295 = vmatpush.bf16.xpose.msra.mxu0 0
        %1296 = vmatpush.bf16.xpose.msra.mxu0 %v1287
        %1297 = vmatmul.bf16.gmra.mxu0 %v1284
        %v1298 = vpop.f32.mrf.mxu0
        %v1299 = vadd.f32 0.0, %v1298
        %v1300 = vpop.f32.mrf.mxu0
        %1301 = vdwg.mxu0
        %v1303 = vsel %vm1263, %v1257, 0
        %v1306 = vsel %vm1263, %v1261, 0
        %1308 = vmatpush.bf16.xpose.msra.mxu0 0
        %1309 = vmatpush.bf16.xpose.msra.mxu0 0
        %1310 = vmatpush.bf16.xpose.msra.mxu0 0
        %1311 = vmatpush.bf16.xpose.msra.mxu0 0
        %1312 = vmatpush.bf16.xpose.msra.mxu0 0
        %1313 = vmatpush.bf16.xpose.msra.mxu0 0
        %1314 = vmatpush.bf16.xpose.msra.mxu0 0
        %1315 = vmatpush.bf16.xpose.msra.mxu0 %v1306
        %1316 = vmatmul.bf16.gmra.mxu0 %v1303
        %v1317 = vpop.f32.mrf.mxu0
        %v1318 = vadd.f32 0.0, %v1317
        %v1319 = vpop.f32.mrf.mxu0
        %1320 = vdwg.mxu0
        %v1322 = vsel %vm1263, %v1258, 0
        %v1325 = vsel %vm1263, %v1262, 0
        %1327 = vmatpush.bf16.xpose.msra.mxu0 0
        %1328 = vmatpush.bf16.xpose.msra.mxu0 0
        %1329 = vmatpush.bf16.xpose.msra.mxu0 0
        %1330 = vmatpush.bf16.xpose.msra.mxu0 0
        %1331 = vmatpush.bf16.xpose.msra.mxu0 0
        %1332 = vmatpush.bf16.xpose.msra.mxu0 0
        %1333 = vmatpush.bf16.xpose.msra.mxu0 0
        %1334 = vmatpush.bf16.xpose.msra.mxu0 %v1325
        %1335 = vmatmul.bf16.gmra.mxu0 %v1322
        %v1336 = vpop.f32.mrf.mxu0
        %v1337 = vadd.f32 0.0, %v1336
        %v1338 = vpop.f32.mrf.mxu0
        %1339 = vdwg.mxu0
        %v1340 = vmul.f32 %v1280, 0.25
        %v1341 = vmul.f32 %v1299, 0.25
        %v1342 = vmul.f32 %v1318, 0.25
        %v1343 = vmul.f32 %v1337, 0.25
        %v1344 = vadd.f32 %v1340, %v618
        %v1345 = vadd.f32 %v1341, %v619
        %v1346 = vadd.f32 %v1342, %v620
        %v1347 = vadd.f32 %v1343, %v621
        %vm1348 = vcmask 27648
        %v1349 = vsel %vm1348, %v1344, -inf
        %1350 = vmax.xlane.f32.xlu0 %v1349
        %v1351 = vpop.xlane.xlu0 %1350
        %v1352 = vsel %vm1348, %v1345, -inf
        %1353 = vmax.xlane.f32.xlu0 %v1352
        %v1354 = vpop.xlane.xlu0 %1353
        %v1355 = vsel %vm1348, %v1346, -inf
        %1356 = vmax.xlane.f32.xlu0 %v1355
        %v1357 = vpop.xlane.xlu0 %1356
        %v1358 = vsel %vm1348, %v1347, -inf
        %1359 = vmax.xlane.f32.xlu0 %v1358
        %v1360 = vpop.xlane.xlu0 %1359
        %v1361 = vsub.f32 %v1344, %v1351
        %v1362 = vsub.f32 %v1345, %v1354
        %v1363 = vsub.f32 %v1346, %v1357
        %v1364 = vsub.f32 %v1347, %v1360
        %v1365 = vmul.f32 %v1361, 1.442695
        %v1366 = vpow.pop %v1365
        %v1367 = vmul.f32 %v1362, 1.442695
        %v1368 = vpow.pop %v1367
        %v1369 = vmul.f32 %v1363, 1.442695
        %v1370 = vpow.pop %v1369
        %v1371 = vmul.f32 %v1364, 1.442695
        %v1372 = vpow.pop %v1371
        %v1373 = vsel %vm1348, %v1366, 0.0
        %1374 = vadd.xlane.f32.xlu0 %v1373
        %v1375 = vpop.xlane.xlu0 %1374
        %v1376 = vsel %vm1348, %v1368, 0.0
        %1377 = vadd.xlane.f32.xlu0 %v1376
        %v1378 = vpop.xlane.xlu0 %1377
        %v1379 = vsel %vm1348, %v1370, 0.0
        %1380 = vadd.xlane.f32.xlu0 %v1379
        %v1381 = vpop.xlane.xlu0 %1380
        %v1382 = vsel %vm1348, %v1372, 0.0
        %1383 = vadd.xlane.f32.xlu0 %v1382
        %v1384 = vpop.xlane.xlu0 %1383
        %v1385 = vrcp.pop %v1375
        %v1386 = vmul.f32 %v1375, %v1385
        %v1387 = vsub.f32 1.0, %v1386
        %v1388 = vmul.f32 %v1385, %v1387
        %v1389 = vadd.f32 %v1385, %v1388
        %vm1390 = vweird.f32 %v1375
        %vm1391 = vweird.f32 %v1385
        %vm1392 = vmor %vm1390, %vm1391
        %v1393 = vsel %vm1392, %v1385, %v1389
        %v1394 = vand.u32 2147483647, %v1375
        %vm1395 = vcmp.eq.f32.partialorder %v1394, 8.507059e+37
        %v1396 = vand.u32 %v1375, 2147483648
        %v1397 = vor.u32 1.1754944e-38, %v1396
        %v1398 = vsel %vm1395, %v1397, %v1393
        %v1399 = vrcp.pop %v1378
        %v1400 = vmul.f32 %v1378, %v1399
        %v1401 = vsub.f32 1.0, %v1400
        %v1402 = vmul.f32 %v1399, %v1401
        %v1403 = vadd.f32 %v1399, %v1402
        %vm1404 = vweird.f32 %v1378
        %vm1405 = vweird.f32 %v1399
        %vm1406 = vmor %vm1404, %vm1405
        %v1407 = vsel %vm1406, %v1399, %v1403
        %v1408 = vand.u32 2147483647, %v1378
        %vm1409 = vcmp.eq.f32.partialorder %v1408, 8.507059e+37
        %v1410 = vand.u32 %v1378, 2147483648
        %v1411 = vor.u32 1.1754944e-38, %v1410
        %v1412 = vsel %vm1409, %v1411, %v1407
        %v1413 = vrcp.pop %v1381
        %v1414 = vmul.f32 %v1381, %v1413
        %v1415 = vsub.f32 1.0, %v1414
        %v1416 = vmul.f32 %v1413, %v1415
        %v1417 = vadd.f32 %v1413, %v1416
        %vm1418 = vweird.f32 %v1381
        %vm1419 = vweird.f32 %v1413
        %vm1420 = vmor %vm1418, %vm1419
        %v1421 = vsel %vm1420, %v1413, %v1417
        %v1422 = vand.u32 2147483647, %v1381
        %vm1423 = vcmp.eq.f32.partialorder %v1422, 8.507059e+37
        %v1424 = vand.u32 %v1381, 2147483648
        %v1425 = vor.u32 1.1754944e-38, %v1424
        %v1426 = vsel %vm1423, %v1425, %v1421
        %v1427 = vrcp.pop %v1384
        %v1428 = vmul.f32 %v1384, %v1427
        %v1429 = vsub.f32 1.0, %v1428
        %v1430 = vmul.f32 %v1427, %v1429
        %v1431 = vadd.f32 %v1427, %v1430
        %vm1432 = vweird.f32 %v1384
        %vm1433 = vweird.f32 %v1427
        %vm1434 = vmor %vm1432, %vm1433
        %v1435 = vsel %vm1434, %v1427, %v1431
        %v1436 = vand.u32 2147483647, %v1384
        %vm1437 = vcmp.eq.f32.partialorder %v1436, 8.507059e+37
        %v1438 = vand.u32 %v1384, 2147483648
        %v1439 = vor.u32 1.1754944e-38, %v1438
        %v1440 = vsel %vm1437, %v1439, %v1435
        %v1441 = vmul.f32 %v1366, %v1398
        %v1442 = vmul.f32 %v1368, %v1412
        %v1443 = vmul.f32 %v1370, %v1426
        %v1444 = vmul.f32 %v1372, %v1440
        %v1445 = vpack.c.bf16 %v1441, %v1441
        %v1446 = vpack.c.bf16 %v1442, %v1442
        %v1447 = vpack.c.bf16 %v1443, %v1443
        %v1448 = vpack.c.bf16 %v1444, %v1444
        %v1449 = vpack.c.bf16 %v1141, %v1141
        %v1450 = vpack.c.bf16 %v1178, %v1178
        %v1451 = vpack.c.bf16 %v1215, %v1215
        %v1452 = vpack.c.bf16 %v1252, %v1252
        %vm1453 = vcmask 31744
        %v1455 = vsel %vm1453, %v1445, 0
        %vm1457 = vcmask 1041408
        %v1459 = vsel %vm1457, %v1449, 0
        %1461 = vmatpush.bf16.msra.mxu0 0
        %1462 = vmatpush.bf16.msra.mxu0 0
        %1463 = vmatpush.bf16.msra.mxu0 0
        %1464 = vmatpush.bf16.msra.mxu0 0
        %1465 = vmatpush.bf16.msra.mxu0 0
        %1466 = vmatpush.bf16.msra.mxu0 0
        %1467 = vmatpush.bf16.msra.mxu0 0
        %1468 = vmatpush.bf16.msra.mxu0 %v1459
        %1469 = vmatmul.bf16.gmra.mxu0 %v1455
        %v1470 = vpop.f32.mrf.mxu0
        %v1471 = vadd.f32 0.0, %v1470
        %v1472 = vpop.f32.mrf.mxu0
        %1473 = vdwg.mxu0
        %v1475 = vsel %vm1453, %v1446, 0
        %v1478 = vsel %vm1457, %v1450, 0
        %1480 = vmatpush.bf16.msra.mxu0 0
        %1481 = vmatpush.bf16.msra.mxu0 0
        %1482 = vmatpush.bf16.msra.mxu0 0
        %1483 = vmatpush.bf16.msra.mxu0 0
        %1484 = vmatpush.bf16.msra.mxu0 0
        %1485 = vmatpush.bf16.msra.mxu0 0
        %1486 = vmatpush.bf16.msra.mxu0 0
        %1487 = vmatpush.bf16.msra.mxu0 %v1478
        %1488 = vmatmul.bf16.gmra.mxu0 %v1475
        %v1489 = vpop.f32.mrf.mxu0
        %v1490 = vadd.f32 0.0, %v1489
        %v1491 = vpop.f32.mrf.mxu0
        %1492 = vdwg.mxu0
        %v1494 = vsel %vm1453, %v1447, 0
        %v1497 = vsel %vm1457, %v1451, 0
        %1499 = vmatpush.bf16.msra.mxu0 0
        %1500 = vmatpush.bf16.msra.mxu0 0
        %1501 = vmatpush.bf16.msra.mxu0 0
        %1502 = vmatpush.bf16.msra.mxu0 0
        %1503 = vmatpush.bf16.msra.mxu0 0
        %1504 = vmatpush.bf16.msra.mxu0 0
        %1505 = vmatpush.bf16.msra.mxu0 0
        %1506 = vmatpush.bf16.msra.mxu0 %v1497
        %1507 = vmatmul.bf16.gmra.mxu0 %v1494
        %v1508 = vpop.f32.mrf.mxu0
        %v1509 = vadd.f32 0.0, %v1508
        %v1510 = vpop.f32.mrf.mxu0
        %1511 = vdwg.mxu0
        %v1513 = vsel %vm1453, %v1448, 0
        %v1516 = vsel %vm1457, %v1452, 0
        %1518 = vmatpush.bf16.msra.mxu0 0
        %1519 = vmatpush.bf16.msra.mxu0 0
        %1520 = vmatpush.bf16.msra.mxu0 0
        %1521 = vmatpush.bf16.msra.mxu0 0
        %1522 = vmatpush.bf16.msra.mxu0 0
        %1523 = vmatpush.bf16.msra.mxu0 0
        %1524 = vmatpush.bf16.msra.mxu0 0
        %1525 = vmatpush.bf16.msra.mxu0 %v1516
        %1526 = vmatmul.bf16.gmra.mxu0 %v1513
        %v1527 = vpop.f32.mrf.mxu0
        %v1528 = vadd.f32 0.0, %v1527
        %v1529 = vpop.f32.mrf.mxu0
        %1530 = vdwg.mxu0
        %v1531 = vpack.c.bf16 %v1471, %v1471
        %v1532 = vpack.c.bf16 %v1490, %v1490
        %v1533 = vpack.c.bf16 %v1509, %v1509
        %v1534 = vpack.c.bf16 %v1528, %v1528
        %v1535 = vld [vmem:[%s10] sm:$0xf]
        %v1536 = vld [vmem:[%s10 + $0x4] sm:$0xf]
        %v1537 = vld [vmem:[%s10 + $0x8] sm:$0xf]
        %v1538 = vld [vmem:[%s10 + $0xc] sm:$0xf]
        %v1539 = vld [vmem:[%s10 + $0x10] sm:$0xf]
        %v1540 = vld [vmem:[%s10 + $0x14] sm:$0xf]
        %v1541 = vld [vmem:[%s10 + $0x18] sm:$0xf]
        %v1542 = vld [vmem:[%s10 + $0x1c] sm:$0xf]
        %v1545 = vunpack.c.l.b16 %v1535
        %v1546 = vunpack.c.l.b16 %v1536
        %v1547 = vpack.c.b16 %v1546, %v1545
        %v1550 = vsel %vm1263, %v1531, 0
        %1552 = vmatpush.bf16.msra.mxu0 0
        %1553 = vmatpush.bf16.msra.mxu0 0
        %1554 = vmatpush.bf16.msra.mxu0 0
        %1555 = vmatpush.bf16.msra.mxu0 0
        %1556 = vmatpush.bf16.msra.mxu0 0
        %1557 = vmatpush.bf16.msra.mxu0 0
        %1558 = vmatpush.bf16.msra.mxu0 0
        %1559 = vmatpush.bf16.msra.mxu0 %v1547
        %1560 = vmatmul.bf16.gmra.mxu0 %v1550
        %v1561 = vpop.f32.mrf.mxu0
        %v1562 = vadd.f32 0.0, %v1561
        %v1563 = vpop.f32.mrf.mxu0
        %1564 = vdwg.mxu0
        %v1567 = vunpack.c.l.b16 %v1537
        %v1568 = vunpack.c.l.b16 %v1538
        %v1569 = vpack.c.b16 %v1568, %v1567
        %v1572 = vsel %vm1263, %v1532, 0
        %1574 = vmatpush.bf16.msra.mxu0 0
        %1575 = vmatpush.bf16.msra.mxu0 0
        %1576 = vmatpush.bf16.msra.mxu0 0
        %1577 = vmatpush.bf16.msra.mxu0 0
        %1578 = vmatpush.bf16.msra.mxu0 0
        %1579 = vmatpush.bf16.msra.mxu0 0
        %1580 = vmatpush.bf16.msra.mxu0 0
        %1581 = vmatpush.bf16.msra.mxu0 %v1569
        %1582 = vmatmul.bf16.gmra.mxu0 %v1572
        %v1583 = vpop.f32.mrf.mxu0
        %v1584 = vadd.f32 0.0, %v1583
        %v1585 = vpop.f32.mrf.mxu0
        %1586 = vdwg.mxu0
        %v1589 = vunpack.c.l.b16 %v1539
        %v1590 = vunpack.c.l.b16 %v1540
        %v1591 = vpack.c.b16 %v1590, %v1589
        %v1594 = vsel %vm1263, %v1533, 0
        %1596 = vmatpush.bf16.msra.mxu0 0
        %1597 = vmatpush.bf16.msra.mxu0 0
        %1598 = vmatpush.bf16.msra.mxu0 0
        %1599 = vmatpush.bf16.msra.mxu0 0
        %1600 = vmatpush.bf16.msra.mxu0 0
        %1601 = vmatpush.bf16.msra.mxu0 0
        %1602 = vmatpush.bf16.msra.mxu0 0
        %1603 = vmatpush.bf16.msra.mxu0 %v1591
        %1604 = vmatmul.bf16.gmra.mxu0 %v1594
        %v1605 = vpop.f32.mrf.mxu0
        %v1606 = vadd.f32 0.0, %v1605
        %v1607 = vpop.f32.mrf.mxu0
        %1608 = vdwg.mxu0
        %v1611 = vunpack.c.l.b16 %v1541
        %v1612 = vunpack.c.l.b16 %v1542
        %v1613 = vpack.c.b16 %v1612, %v1611
        %v1616 = vsel %vm1263, %v1534, 0
        %1618 = vmatpush.bf16.msra.mxu0 0
        %1619 = vmatpush.bf16.msra.mxu0 0
        %1620 = vmatpush.bf16.msra.mxu0 0
        %1621 = vmatpush.bf16.msra.mxu0 0
        %1622 = vmatpush.bf16.msra.mxu0 0
        %1623 = vmatpush.bf16.msra.mxu0 0
        %1624 = vmatpush.bf16.msra.mxu0 0
        %1625 = vmatpush.bf16.msra.mxu0 %v1613
        %1626 = vmatmul.bf16.gmra.mxu0 %v1616
        %v1627 = vpop.f32.mrf.mxu0
        %v1628 = vadd.f32 0.0, %v1627
        %v1629 = vpop.f32.mrf.mxu0
        %1630 = vdwg.mxu0
        %v1631 = vsel %vm624, %v1562, 0.0
        %v1632 = vsel %vm624, %v1584, 0.0
        %v1633 = vadd.f32 %v1631, %v1632
        %v1634 = vsel %vm624, %v1606, 0.0
        %v1635 = vadd.f32 %v1633, %v1634
        %v1636 = vsel %vm624, %v1628, 0.0
        %v1637 = vadd.f32 %v1635, %v1636
        %v1638 = vadd.f32 %v617, %v1637
        %v1639 = vld [vmem:[%s11] sm:$0x1]
        %v1641 = vperm.slane %v1639, 0
        %v1643 = vadd.f32 %v1638, %v1641
        %v1644 = vld [vmem:[%s12] sm:$0x1]
        %v1645 = vld [vmem:[%s13] sm:$0x1]
        %v1646 = vsel %vm624, %v1643, 0.0
        %1647 = vadd.xlane.f32.xlu0 %v1646
        %v1648 = vpop.xlane.xlu0 %1647
        %v1649 = vmul.f32 %v1648, %v634
        %v1650 = vsub.f32 %v1643, %v1649
        %v1651 = vmul.f32 %v1650, %v1650
        %v1652 = vsel %vm624, %v1651, 0.0
        %1653 = vadd.xlane.f32.xlu0 %v1652
        %v1654 = vpop.xlane.xlu0 %1653
        %v1655 = vmul.f32 %v1654, %v634
        %v1656 = vadd.f32 %v1655, 1e-05
        %v1657 = vrsqrt.pop %v1656
        %v1658 = vmul.f32 %v1657, %v1656
        %v1659 = vmul.f32 %v1658, %v1657
        %v1660 = vmul.f32 0.5, %v1659
        %v1661 = vsub.f32 1.5, %v1660
        %v1662 = vmul.f32 %v1657, %v1661
        %vm1663 = vweird.f32 %v1656
        %vm1664 = vweird.f32 %v1657
        %vm1665 = vmor %vm1663, %vm1664
        %v1666 = vsel %vm1665, %v1657, %v1662
        %v1667 = vmul.f32 %v1650, %v1666
        %v1669 = vperm.slane %v1644, 0
        %v1671 = vmul.f32 %v1667, %v1669
        %v1673 = vperm.slane %v1645, 0
        %v1675 = vadd.f32 %v1671, %v1673
        %v1676 = vpack.c.bf16 %v1675, %v1675
        %v1677 = vld [vmem:[%s14] sm:$0xf]
        %v1678 = vld [vmem:[%s14 + $0x4] sm:$0xf]
        %v1679 = vld [vmem:[%s14 + $0x8] sm:$0xf]
        %v1680 = vld [vmem:[%s14 + $0xc] sm:$0xf]
        %v1681 = vld [vmem:[%s14 + $0x10] sm:$0xf]
        %v1682 = vld [vmem:[%s14 + $0x14] sm:$0xf]
        %v1683 = vld [vmem:[%s14 + $0x18] sm:$0xf]
        %v1684 = vld [vmem:[%s14 + $0x1c] sm:$0xf]
        %v1685 = vld [vmem:[%s15] sm:$0x1]
        %v1687 = vperm.slane %v1685, 0
        %v1697 = vunpack.c.l.b16 %v1677
        %v1698 = vunpack.c.l.b16 %v1678
        %v1699 = vunpack.c.l.b16 %v1679
        %v1700 = vunpack.c.l.b16 %v1680
        %v1701 = vunpack.c.l.b16 %v1681
        %v1702 = vunpack.c.l.b16 %v1682
        %v1703 = vunpack.c.l.b16 %v1683
        %v1704 = vunpack.c.l.b16 %v1684
        %v1705 = vpack.c.b16 %v1698, %v1697
        %v1706 = vpack.c.b16 %v1700, %v1699
        %v1707 = vpack.c.b16 %v1702, %v1701
        %v1708 = vpack.c.b16 %v1704, %v1703
        %v1714 = vsel %vm735, %v1676, 0
        %1716 = vmatpush.bf16.msra.mxu0 0
        %1717 = vmatpush.bf16.msra.mxu0 0
        %1718 = vmatpush.bf16.msra.mxu0 0
        %1719 = vmatpush.bf16.msra.mxu0 0
        %1720 = vmatpush.bf16.msra.mxu0 %v1708
        %1721 = vmatpush.bf16.msra.mxu0 %v1707
        %1722 = vmatpush.bf16.msra.mxu0 %v1706
        %1723 = vmatpush.bf16.msra.mxu0 %v1705
        %1724 = vmatmul.bf16.gmra.mxu0 %v1714
        %v1725 = vpop.f32.mrf.mxu0
        %v1726 = vadd.f32 %v1687, %v1725
        %v1727 = vpop.f32.mrf.mxu0
        %1728 = vdwg.mxu0
        %v1729 = vmul.f32 %v1726, 0.5
        %v1730 = vmul.f32 %v1726, 0.044715
        %v1731 = vmul.f32 %v1730, %v1726
        %v1732 = vmul.f32 %v1731, %v1726
        %v1733 = vadd.f32 %v1726, %v1732
        %v1734 = vmul.f32 %v1733, 0.7978846
        %v1735 = vtanh.pop %v1734
        %v1736 = vadd.f32 %v1735, 1.0
        %v1737 = vmul.f32 %v1729, %v1736
        %v1738 = vpack.c.bf16 %v1737, %v1737
        %v1739 = vld [vmem:[%s16] sm:$0xf]
        %v1740 = vld [vmem:[%s16 + $0x4] sm:$0xf]
        %v1741 = vld [vmem:[%s16 + $0x8] sm:$0xf]
        %v1742 = vld [vmem:[%s16 + $0xc] sm:$0xf]
        %v1743 = vld [vmem:[%s16 + $0x10] sm:$0xf]
        %v1744 = vld [vmem:[%s16 + $0x14] sm:$0xf]
        %v1745 = vld [vmem:[%s16 + $0x18] sm:$0xf]
        %v1746 = vld [vmem:[%s16 + $0x1c] sm:$0xf]
        %v1747 = vld [vmem:[%s16 + $0x20] sm:$0xf]
        %v1748 = vld [vmem:[%s16 + $0x24] sm:$0xf]
        %v1749 = vld [vmem:[%s16 + $0x28] sm:$0xf]
        %v1750 = vld [vmem:[%s16 + $0x2c] sm:$0xf]
        %v1751 = vld [vmem:[%s16 + $0x30] sm:$0xf]
        %v1752 = vld [vmem:[%s16 + $0x34] sm:$0xf]
        %v1753 = vld [vmem:[%s16 + $0x38] sm:$0xf]
        %v1754 = vld [vmem:[%s16 + $0x3c] sm:$0xf]
        %v1755 = vld [vmem:[%s17] sm:$0x1]
        %v1757 = vperm.slane %v1755, 0
        %v1775 = vunpack.c.l.b16 %v1739
        %v1776 = vunpack.c.l.b16 %v1740
        %v1777 = vunpack.c.l.b16 %v1741
        %v1778 = vunpack.c.l.b16 %v1742
        %v1779 = vunpack.c.l.b16 %v1743
        %v1780 = vunpack.c.l.b16 %v1744
        %v1781 = vunpack.c.l.b16 %v1745
        %v1782 = vunpack.c.l.b16 %v1746
        %v1783 = vunpack.c.l.b16 %v1747
        %v1784 = vunpack.c.l.b16 %v1748
        %v1785 = vunpack.c.l.b16 %v1749
        %v1786 = vunpack.c.l.b16 %v1750
        %v1787 = vunpack.c.l.b16 %v1751
        %v1788 = vunpack.c.l.b16 %v1752
        %v1789 = vunpack.c.l.b16 %v1753
        %v1790 = vunpack.c.l.b16 %v1754
        %v1791 = vpack.c.b16 %v1776, %v1775
        %v1792 = vpack.c.b16 %v1778, %v1777
        %v1793 = vpack.c.b16 %v1780, %v1779
        %v1794 = vpack.c.b16 %v1782, %v1781
        %v1795 = vpack.c.b16 %v1784, %v1783
        %v1796 = vpack.c.b16 %v1786, %v1785
        %v1797 = vpack.c.b16 %v1788, %v1787
        %v1798 = vpack.c.b16 %v1790, %v1789
        %1807 = vmatpush.bf16.msra.mxu0 %v1798
        %1808 = vmatpush.bf16.msra.mxu0 %v1797
        %1809 = vmatpush.bf16.msra.mxu0 %v1796
        %1810 = vmatpush.bf16.msra.mxu0 %v1795
        %1811 = vmatpush.bf16.msra.mxu0 %v1794
        %1812 = vmatpush.bf16.msra.mxu0 %v1793
        %1813 = vmatpush.bf16.msra.mxu0 %v1792
        %1814 = vmatpush.bf16.msra.mxu0 %v1791
        %1815 = vmatmul.bf16.gmra.mxu0 %v1738
        %v1816 = vpop.f32.mrf.mxu0
        %v1817 = vadd.f32 %v1757, %v1816
        %v1818 = vpop.f32.mrf.mxu0
        %1819 = vdwg.mxu0
        %v1820 = vadd.f32 %v1643, %v1817
        %1821 = vst.msk [vmem:[%s603] sm:$0xf] %vm624, %v1820
        %s1822 = sand.u32 %s444, 1
        %s1823 = scalar_lea.sflag [#allocation3], %s1822
        %s1824 = sand.u32 %s444, 1
        %s1825 = smul.addr %s1824, 4
        %s1826 = scalar_lea.vmem [#allocation2], %s1825
        // Predicated region
        $region93: #{swin_forward.11} parent=91 // pred_check
          %p1827 = pneg %p454
        $region94: #{swin_forward.11} parent=91 // pred_check_branch
          %1829 = sbr.rel (%p1827) target = $region96
        $region95: #{swin_forward.11} parent=91 // pred_region
          %1831 = vsyncadd %s1823, 0
          %s1832 = sadd.s32 %s37, %s36
          %s1833 = smul.addr %s1832, 4
          %s1834 = scalar_lea.hbm %s18, %s1833
          %s1836 = sshll.u32 %s1826, 4
          %s1837 = int_to_ptr.vmem [resolvable:$true] %s1836
          %s1838 = sshll.u32 %s1834, 4
          %s1839 = int_to_ptr.hbm [resolvable:$true] %s1838
          %1841 = dma.vmem_to_hbm [thread:$0]  %s1837, 64, %s1839, %s1823
        $region96: #{swin_forward.11} parent=91 // pred_fallthru
          _
      $region92: #{swin_forward.11} parent=5 // pred_fallthru
        _
      %p1842 = scmp.le.s32.totalorder 2, %s27
      // Predicated region
      $region97: #{swin_forward.11} parent=5 // pred_check
        %p1843 = pneg %p1842
      $region98: #{swin_forward.11} parent=5 // pred_check_branch
        %1845 = sbr.rel (%p1843) target = $region100
      $region99: #{swin_forward.11} parent=5 // pred_region
        %s1846 = ssub.s32 %s27, 2
        // Predicated region
        $region101: #{swin_forward.11} parent=99 // pred_check
          %p1847 = pneg %p460
        $region102: #{swin_forward.11} parent=99 // pred_check_branch
          %1849 = sbr.rel (%p1847) target = $region104
        $region103: #{swin_forward.11} parent=99 // pred_region
          %s1850 = sand.u32 %s445, 1
          %s1851 = scalar_lea.sflag [#allocation3], %s1850
          %s1852 = sand.u32 %s445, 1
          %s1853 = smul.addr %s1852, 4
          %s1854 = scalar_lea.vmem [#allocation2], %s1853
          %1856 = dma.done %s1851, 64
        $region104: #{swin_forward.11} parent=99 // pred_fallthru
          _
      $region100: #{swin_forward.11} parent=5 // pred_fallthru
        _
    $region6: #{swin_forward.11} parent=1 // loop_footer
      %s31 = sadd.s32 1, %s27
    $region7: #{swin_forward.11} parent=1 // loop_footer_branch
      %26 = sbr.rel target = $region3
    $region8: #{swin_forward.11} parent=1 // loop_exit
      _
    %1857 = vsyncpa [#allocation3], 1
    %s1858 = scalar_lea.sflag [#allocation3], 1
    %1859 = vsyncpa %s1858, 1

// kernel: swin_forward.10
$region0: #{swin_forward.10}
  #allocation0 [shape = 'u32[]', space=smem, size = 0x4, offset = 0x4, fixed_abs, tag = 'smem constant byte address 0x4 - core index']
  #allocation1 [shape = 'u32[72,128]{1,0:T(1,128)}', space=vmem, size = 0x9000, scoped, tag = 'internal scratch']
  %s0 = inlined_call_operand.vmem [shape: f32[2,1,4,64], index: 0, kind: input, shape index: {}]
  %s1 = inlined_call_operand.vmem [shape: f32[1,4,4,4], index: 1, kind: input, shape index: {}]
  %s2 = inlined_call_operand.vmem [shape: f32[1,64], index: 2, kind: input, shape index: {}]
  %s3 = inlined_call_operand.vmem [shape: f32[1,64], index: 3, kind: input, shape index: {}]
  %s4 = inlined_call_operand.vmem [shape: bf16[4,64,16], index: 4, kind: input, shape index: {}]
  %s5 = inlined_call_operand.vmem [shape: f32[4,1,16], index: 5, kind: input, shape index: {}]
  %s6 = inlined_call_operand.vmem [shape: bf16[4,64,16], index: 6, kind: input, shape index: {}]
  %s7 = inlined_call_operand.vmem [shape: f32[4,1,16], index: 7, kind: input, shape index: {}]
  %s8 = inlined_call_operand.vmem [shape: bf16[4,64,16], index: 8, kind: input, shape index: {}]
  %s9 = inlined_call_operand.vmem [shape: f32[4,1,16], index: 9, kind: input, shape index: {}]
  %s10 = inlined_call_operand.vmem [shape: bf16[4,16,64], index: 10, kind: input, shape index: {}]
  %s11 = inlined_call_operand.vmem [shape: f32[1,64], index: 11, kind: input, shape index: {}]
  %s12 = inlined_call_operand.vmem [shape: f32[1,64], index: 12, kind: input, shape index: {}]
  %s13 = inlined_call_operand.vmem [shape: f32[1,64], index: 13, kind: input, shape index: {}]
  %s14 = inlined_call_operand.vmem [shape: bf16[64,128], index: 14, kind: input, shape index: {}]
  %s15 = inlined_call_operand.vmem [shape: f32[1,128], index: 15, kind: input, shape index: {}]
  %s16 = inlined_call_operand.vmem [shape: bf16[128,64], index: 16, kind: input, shape index: {}]
  %s17 = inlined_call_operand.vmem [shape: f32[1,64], index: 17, kind: input, shape index: {}]
  %s18 = inlined_call_operand.vmem [shape: f32[2,1,4,64], index: 18, kind: output, shape index: {}]
  %s19 = sld [smem:[#allocation0]]
  $region105: #{swin_forward.10} parent=0
    _
  %s21 = ssub.s32 1, %s19
  %s22 = scalar_select 0, %s21, %s19
  loop: start=0, step=1, limit=4
  $region2: #{swin_forward.10} parent=0 // loop_pre_header
    _
  $region3: #{swin_forward.10} parent=0 // loop_header
    %s24 = sphi 0, %s28
    %p25 = scmp.ge.s32.totalorder %s24, 4
    %s31 = sphi 0, %s43
    %s32 = sphi 0, %s39
    %s33 = sphi 0, %s31
    %s34 = sphi 0, %s32
    %s35 = sphi 0, %s33
    %s36 = sphi 0, %s34
    %s48 = sphi 0, %s50
    %s51 = sphi 0, %s48
    %s52 = sphi 0, %s51
    %s68 = sphi 0, %s52
    %s74 = sphi 0, %s76
    %s77 = sphi 0, %s74
    %s78 = sphi 0, %s77
    %s94 = sphi 0, %s78
    %s98 = sphi 0, %s98
    %s100 = sphi 0, %s98
    %s101 = sphi 0, %s100
    %s115 = sphi 0, %s101
    %s119 = sphi 0, %s119
    %s121 = sphi 0, %s119
    %s122 = sphi 0, %s121
    %s136 = sphi 0, %s122
    %s140 = sphi 0, %s140
    %s142 = sphi 0, %s140
    %s143 = sphi 0, %s142
    %s157 = sphi 0, %s143
    %s161 = sphi 0, %s161
    %s163 = sphi 0, %s161
    %s164 = sphi 0, %s163
    %s178 = sphi 0, %s164
    %s182 = sphi 0, %s182
    %s184 = sphi 0, %s182
    %s185 = sphi 0, %s184
    %s199 = sphi 0, %s185
    %s203 = sphi 0, %s203
    %s205 = sphi 0, %s203
    %s206 = sphi 0, %s205
    %s220 = sphi 0, %s206
    %s224 = sphi 0, %s224
    %s226 = sphi 0, %s224
    %s227 = sphi 0, %s226
    %s241 = sphi 0, %s227
    %s245 = sphi 0, %s245
    %s247 = sphi 0, %s245
    %s248 = sphi 0, %s247
    %s262 = sphi 0, %s248
    %s266 = sphi 0, %s266
    %s268 = sphi 0, %s266
    %s269 = sphi 0, %s268
    %s283 = sphi 0, %s269
    %s287 = sphi 0, %s287
    %s289 = sphi 0, %s287
    %s290 = sphi 0, %s289
    %s304 = sphi 0, %s290
    %s308 = sphi 0, %s308
    %s310 = sphi 0, %s308
    %s311 = sphi 0, %s310
    %s325 = sphi 0, %s311
    %s329 = sphi 0, %s329
    %s331 = sphi 0, %s329
    %s332 = sphi 0, %s331
    %s346 = sphi 0, %s332
    %s350 = sphi 0, %s350
    %s352 = sphi 0, %s350
    %s353 = sphi 0, %s352
    %s367 = sphi 0, %s353
    %s371 = sphi 0, %s371
    %s373 = sphi 0, %s371
    %s374 = sphi 0, %s373
    %s388 = sphi 0, %s374
    %s392 = sphi 0, %s392
    %s394 = sphi 0, %s392
    %s395 = sphi 0, %s394
    %s409 = sphi 0, %s395
    %s413 = sphi 0, %s413
    %s415 = sphi 0, %s413
    %s416 = sphi 0, %s415
    %s430 = sphi 0, %s416
    %s438 = sphi 0, %s440
    %s441 = sphi 0, %s438
    %s442 = sphi 0, %s441
    %s458 = sphi 0, %s442
  $region4: #{swin_forward.10} parent=0 // loop_header_branch
    %27 = sbr.rel (%p25) target = $region8
  $region5: #{swin_forward.10} parent=0 // loop_body
    %s29 = ssub.s32 %s24, 1
    %s30 = ssub.s32 %s24, 2
    %s37 = sadd.s32 1, %s32
    %p38 = scmp.ge.s32.totalorder %s37, 1
    %s39 = scalar_select %p38, 0, %s37
    %s40 = sadd.s32 1, %s31
    %s41 = scalar_select %p38, %s40, %s31
    %p42 = scmp.ge.s32.totalorder %s41, 2
    %s43 = scalar_select %p42, 0, %s41
    %s44 = ssub.s32 %s31, %s43
    %s45 = ssub.s32 %s32, %s39
    %s46 = sor.u32 %s44, %s45
    %p47 = scmp.eq.s32.totalorder %s46, 0
    %s49 = sadd.s32 %s48, 1
    %s50 = scalar_select %p47, %s48, %s49
    %p53 = pneg %p47
    %p54 = scmp.eq.s32.totalorder %s24, 1
    %p55 = por %p53, %p54
    %p56 = scmp.ne.s32.totalorder %s48, %s51
    %p57 = scmp.eq.s32.totalorder %s24, 0
    %p58 = por %p56, %p57
    %p59 = scmp.ne.s32.totalorder %s48, %s51
    %p60 = scmp.eq.s32.totalorder %s29, 1
    %p61 = por %p59, %p60
    %p62 = scmp.ne.s32.totalorder %s51, %s52
    %p63 = scmp.eq.s32.totalorder %s29, 0
    %p64 = por %p62, %p63
    %p65 = scmp.ne.s32.totalorder %s51, %s52
    %p66 = scmp.eq.s32.totalorder %s30, 1
    %p67 = por %p65, %p66
    %p69 = scmp.ne.s32.totalorder %s52, %s68
    %p70 = scmp.eq.s32.totalorder %s30, 0
    %p71 = por %p69, %p70
    %s72 = ssub.s32 %s32, %s39
    %p73 = scmp.eq.s32.totalorder %s72, 0
    %s75 = sadd.s32 %s74, 1
    %s76 = scalar_select %p73, %s74, %s75
    %p79 = pneg %p73
    %p80 = scmp.eq.s32.totalorder %s24, 1
    %p81 = por %p79, %p80
    %p82 = scmp.ne.s32.totalorder %s74, %s77
    %p83 = scmp.eq.s32.totalorder %s24, 0
    %p84 = por %p82, %p83
    %p85 = scmp.ne.s32.totalorder %s74, %s77
    %p86 = scmp.eq.s32.totalorder %s29, 1
    %p87 = por %p85, %p86
    %p88 = scmp.ne.s32.totalorder %s77, %s78
    %p89 = scmp.eq.s32.totalorder %s29, 0
    %p90 = por %p88, %p89
    %p91 = scmp.ne.s32.totalorder %s77, %s78
    %p92 = scmp.eq.s32.totalorder %s30, 1
    %p93 = por %p91, %p92
    %p95 = scmp.ne.s32.totalorder %s78, %s94
    %p96 = scmp.eq.s32.totalorder %s30, 0
    %p97 = por %p95, %p96
    %s99 = sadd.s32 %s98, 1
    %p102 = scmp.eq.s32.totalorder %s24, 1
    %p103 = scmp.ne.s32.totalorder %s98, %s100
    %p104 = scmp.eq.s32.totalorder %s24, 0
    %p105 = por %p103, %p104
    %p106 = scmp.ne.s32.totalorder %s98, %s100
    %p107 = scmp.eq.s32.totalorder %s29, 1
    %p108 = por %p106, %p107
    %p109 = scmp.ne.s32.totalorder %s100, %s101
    %p110 = scmp.eq.s32.totalorder %s29, 0
    %p111 = por %p109, %p110
    %p112 = scmp.ne.s32.totalorder %s100, %s101
    %p113 = scmp.eq.s32.totalorder %s30, 1
    %p114 = por %p112, %p113
    %p116 = scmp.ne.s32.totalorder %s101, %s115
    %p117 = scmp.eq.s32.totalorder %s30, 0
    %p118 = por %p116, %p117
    %s120 = sadd.s32 %s119, 1
    %p123 = scmp.eq.s32.totalorder %s24, 1
    %p124 = scmp.ne.s32.totalorder %s119, %s121
    %p125 = scmp.eq.s32.totalorder %s24, 0
    %p126 = por %p124, %p125
    %p127 = scmp.ne.s32.totalorder %s119, %s121
    %p128 = scmp.eq.s32.totalorder %s29, 1
    %p129 = por %p127, %p128
    %p130 = scmp.ne.s32.totalorder %s121, %s122
    %p131 = scmp.eq.s32.totalorder %s29, 0
    %p132 = por %p130, %p131
    %p133 = scmp.ne.s32.totalorder %s121, %s122
    %p134 = scmp.eq.s32.totalorder %s30, 1
    %p135 = por %p133, %p134
    %p137 = scmp.ne.s32.totalorder %s122, %s136
    %p138 = scmp.eq.s32.totalorder %s30, 0
    %p139 = por %p137, %p138
    %s141 = sadd.s32 %s140, 1
    %p144 = scmp.eq.s32.totalorder %s24, 1
    %p145 = scmp.ne.s32.totalorder %s140, %s142
    %p146 = scmp.eq.s32.totalorder %s24, 0
    %p147 = por %p145, %p146
    %p148 = scmp.ne.s32.totalorder %s140, %s142
    %p149 = scmp.eq.s32.totalorder %s29, 1
    %p150 = por %p148, %p149
    %p151 = scmp.ne.s32.totalorder %s142, %s143
    %p152 = scmp.eq.s32.totalorder %s29, 0
    %p153 = por %p151, %p152
    %p154 = scmp.ne.s32.totalorder %s142, %s143
    %p155 = scmp.eq.s32.totalorder %s30, 1
    %p156 = por %p154, %p155
    %p158 = scmp.ne.s32.totalorder %s143, %s157
    %p159 = scmp.eq.s32.totalorder %s30, 0
    %p160 = por %p158, %p159
    %s162 = sadd.s32 %s161, 1
    %p165 = scmp.eq.s32.totalorder %s24, 1
    %p166 = scmp.ne.s32.totalorder %s161, %s163
    %p167 = scmp.eq.s32.totalorder %s24, 0
    %p168 = por %p166, %p167
    %p169 = scmp.ne.s32.totalorder %s161, %s163
    %p170 = scmp.eq.s32.totalorder %s29, 1
    %p171 = por %p169, %p170
    %p172 = scmp.ne.s32.totalorder %s163, %s164
    %p173 = scmp.eq.s32.totalorder %s29, 0
    %p174 = por %p172, %p173
    %p175 = scmp.ne.s32.totalorder %s163, %s164
    %p176 = scmp.eq.s32.totalorder %s30, 1
    %p177 = por %p175, %p176
    %p179 = scmp.ne.s32.totalorder %s164, %s178
    %p180 = scmp.eq.s32.totalorder %s30, 0
    %p181 = por %p179, %p180
    %s183 = sadd.s32 %s182, 1
    %p186 = scmp.eq.s32.totalorder %s24, 1
    %p187 = scmp.ne.s32.totalorder %s182, %s184
    %p188 = scmp.eq.s32.totalorder %s24, 0
    %p189 = por %p187, %p188
    %p190 = scmp.ne.s32.totalorder %s182, %s184
    %p191 = scmp.eq.s32.totalorder %s29, 1
    %p192 = por %p190, %p191
    %p193 = scmp.ne.s32.totalorder %s184, %s185
    %p194 = scmp.eq.s32.totalorder %s29, 0
    %p195 = por %p193, %p194
    %p196 = scmp.ne.s32.totalorder %s184, %s185
    %p197 = scmp.eq.s32.totalorder %s30, 1
    %p198 = por %p196, %p197
    %p200 = scmp.ne.s32.totalorder %s185, %s199
    %p201 = scmp.eq.s32.totalorder %s30, 0
    %p202 = por %p200, %p201
    %s204 = sadd.s32 %s203, 1
    %p207 = scmp.eq.s32.totalorder %s24, 1
    %p208 = scmp.ne.s32.totalorder %s203, %s205
    %p209 = scmp.eq.s32.totalorder %s24, 0
    %p210 = por %p208, %p209
    %p211 = scmp.ne.s32.totalorder %s203, %s205
    %p212 = scmp.eq.s32.totalorder %s29, 1
    %p213 = por %p211, %p212
    %p214 = scmp.ne.s32.totalorder %s205, %s206
    %p215 = scmp.eq.s32.totalorder %s29, 0
    %p216 = por %p214, %p215
    %p217 = scmp.ne.s32.totalorder %s205, %s206
    %p218 = scmp.eq.s32.totalorder %s30, 1
    %p219 = por %p217, %p218
    %p221 = scmp.ne.s32.totalorder %s206, %s220
    %p222 = scmp.eq.s32.totalorder %s30, 0
    %p223 = por %p221, %p222
    %s225 = sadd.s32 %s224, 1
    %p228 = scmp.eq.s32.totalorder %s24, 1
    %p229 = scmp.ne.s32.totalorder %s224, %s226
    %p230 = scmp.eq.s32.totalorder %s24, 0
    %p231 = por %p229, %p230
    %p232 = scmp.ne.s32.totalorder %s224, %s226
    %p233 = scmp.eq.s32.totalorder %s29, 1
    %p234 = por %p232, %p233
    %p235 = scmp.ne.s32.totalorder %s226, %s227
    %p236 = scmp.eq.s32.totalorder %s29, 0
    %p237 = por %p235, %p236
    %p238 = scmp.ne.s32.totalorder %s226, %s227
    %p239 = scmp.eq.s32.totalorder %s30, 1
    %p240 = por %p238, %p239
    %p242 = scmp.ne.s32.totalorder %s227, %s241
    %p243 = scmp.eq.s32.totalorder %s30, 0
    %p244 = por %p242, %p243
    %s246 = sadd.s32 %s245, 1
    %p249 = scmp.eq.s32.totalorder %s24, 1
    %p250 = scmp.ne.s32.totalorder %s245, %s247
    %p251 = scmp.eq.s32.totalorder %s24, 0
    %p252 = por %p250, %p251
    %p253 = scmp.ne.s32.totalorder %s245, %s247
    %p254 = scmp.eq.s32.totalorder %s29, 1
    %p255 = por %p253, %p254
    %p256 = scmp.ne.s32.totalorder %s247, %s248
    %p257 = scmp.eq.s32.totalorder %s29, 0
    %p258 = por %p256, %p257
    %p259 = scmp.ne.s32.totalorder %s247, %s248
    %p260 = scmp.eq.s32.totalorder %s30, 1
    %p261 = por %p259, %p260
    %p263 = scmp.ne.s32.totalorder %s248, %s262
    %p264 = scmp.eq.s32.totalorder %s30, 0
    %p265 = por %p263, %p264
    %s267 = sadd.s32 %s266, 1
    %p270 = scmp.eq.s32.totalorder %s24, 1
    %p271 = scmp.ne.s32.totalorder %s266, %s268
    %p272 = scmp.eq.s32.totalorder %s24, 0
    %p273 = por %p271, %p272
    %p274 = scmp.ne.s32.totalorder %s266, %s268
    %p275 = scmp.eq.s32.totalorder %s29, 1
    %p276 = por %p274, %p275
    %p277 = scmp.ne.s32.totalorder %s268, %s269
    %p278 = scmp.eq.s32.totalorder %s29, 0
    %p279 = por %p277, %p278
    %p280 = scmp.ne.s32.totalorder %s268, %s269
    %p281 = scmp.eq.s32.totalorder %s30, 1
    %p282 = por %p280, %p281
    %p284 = scmp.ne.s32.totalorder %s269, %s283
    %p285 = scmp.eq.s32.totalorder %s30, 0
    %p286 = por %p284, %p285
    %s288 = sadd.s32 %s287, 1
    %p291 = scmp.eq.s32.totalorder %s24, 1
    %p292 = scmp.ne.s32.totalorder %s287, %s289
    %p293 = scmp.eq.s32.totalorder %s24, 0
    %p294 = por %p292, %p293
    %p295 = scmp.ne.s32.totalorder %s287, %s289
    %p296 = scmp.eq.s32.totalorder %s29, 1
    %p297 = por %p295, %p296
    %p298 = scmp.ne.s32.totalorder %s289, %s290
    %p299 = scmp.eq.s32.totalorder %s29, 0
    %p300 = por %p298, %p299
    %p301 = scmp.ne.s32.totalorder %s289, %s290
    %p302 = scmp.eq.s32.totalorder %s30, 1
    %p303 = por %p301, %p302
    %p305 = scmp.ne.s32.totalorder %s290, %s304
    %p306 = scmp.eq.s32.totalorder %s30, 0
    %p307 = por %p305, %p306
    %s309 = sadd.s32 %s308, 1
    %p312 = scmp.eq.s32.totalorder %s24, 1
    %p313 = scmp.ne.s32.totalorder %s308, %s310
    %p314 = scmp.eq.s32.totalorder %s24, 0
    %p315 = por %p313, %p314
    %p316 = scmp.ne.s32.totalorder %s308, %s310
    %p317 = scmp.eq.s32.totalorder %s29, 1
    %p318 = por %p316, %p317
    %p319 = scmp.ne.s32.totalorder %s310, %s311
    %p320 = scmp.eq.s32.totalorder %s29, 0
    %p321 = por %p319, %p320
    %p322 = scmp.ne.s32.totalorder %s310, %s311
    %p323 = scmp.eq.s32.totalorder %s30, 1
    %p324 = por %p322, %p323
    %p326 = scmp.ne.s32.totalorder %s311, %s325
    %p327 = scmp.eq.s32.totalorder %s30, 0
    %p328 = por %p326, %p327
    %s330 = sadd.s32 %s329, 1
    %p333 = scmp.eq.s32.totalorder %s24, 1
    %p334 = scmp.ne.s32.totalorder %s329, %s331
    %p335 = scmp.eq.s32.totalorder %s24, 0
    %p336 = por %p334, %p335
    %p337 = scmp.ne.s32.totalorder %s329, %s331
    %p338 = scmp.eq.s32.totalorder %s29, 1
    %p339 = por %p337, %p338
    %p340 = scmp.ne.s32.totalorder %s331, %s332
    %p341 = scmp.eq.s32.totalorder %s29, 0
    %p342 = por %p340, %p341
    %p343 = scmp.ne.s32.totalorder %s331, %s332
    %p344 = scmp.eq.s32.totalorder %s30, 1
    %p345 = por %p343, %p344
    %p347 = scmp.ne.s32.totalorder %s332, %s346
    %p348 = scmp.eq.s32.totalorder %s30, 0
    %p349 = por %p347, %p348
    %s351 = sadd.s32 %s350, 1
    %p354 = scmp.eq.s32.totalorder %s24, 1
    %p355 = scmp.ne.s32.totalorder %s350, %s352
    %p356 = scmp.eq.s32.totalorder %s24, 0
    %p357 = por %p355, %p356
    %p358 = scmp.ne.s32.totalorder %s350, %s352
    %p359 = scmp.eq.s32.totalorder %s29, 1
    %p360 = por %p358, %p359
    %p361 = scmp.ne.s32.totalorder %s352, %s353
    %p362 = scmp.eq.s32.totalorder %s29, 0
    %p363 = por %p361, %p362
    %p364 = scmp.ne.s32.totalorder %s352, %s353
    %p365 = scmp.eq.s32.totalorder %s30, 1
    %p366 = por %p364, %p365
    %p368 = scmp.ne.s32.totalorder %s353, %s367
    %p369 = scmp.eq.s32.totalorder %s30, 0
    %p370 = por %p368, %p369
    %s372 = sadd.s32 %s371, 1
    %p375 = scmp.eq.s32.totalorder %s24, 1
    %p376 = scmp.ne.s32.totalorder %s371, %s373
    %p377 = scmp.eq.s32.totalorder %s24, 0
    %p378 = por %p376, %p377
    %p379 = scmp.ne.s32.totalorder %s371, %s373
    %p380 = scmp.eq.s32.totalorder %s29, 1
    %p381 = por %p379, %p380
    %p382 = scmp.ne.s32.totalorder %s373, %s374
    %p383 = scmp.eq.s32.totalorder %s29, 0
    %p384 = por %p382, %p383
    %p385 = scmp.ne.s32.totalorder %s373, %s374
    %p386 = scmp.eq.s32.totalorder %s30, 1
    %p387 = por %p385, %p386
    %p389 = scmp.ne.s32.totalorder %s374, %s388
    %p390 = scmp.eq.s32.totalorder %s30, 0
    %p391 = por %p389, %p390
    %s393 = sadd.s32 %s392, 1
    %p396 = scmp.eq.s32.totalorder %s24, 1
    %p397 = scmp.ne.s32.totalorder %s392, %s394
    %p398 = scmp.eq.s32.totalorder %s24, 0
    %p399 = por %p397, %p398
    %p400 = scmp.ne.s32.totalorder %s392, %s394
    %p401 = scmp.eq.s32.totalorder %s29, 1
    %p402 = por %p400, %p401
    %p403 = scmp.ne.s32.totalorder %s394, %s395
    %p404 = scmp.eq.s32.totalorder %s29, 0
    %p405 = por %p403, %p404
    %p406 = scmp.ne.s32.totalorder %s394, %s395
    %p407 = scmp.eq.s32.totalorder %s30, 1
    %p408 = por %p406, %p407
    %p410 = scmp.ne.s32.totalorder %s395, %s409
    %p411 = scmp.eq.s32.totalorder %s30, 0
    %p412 = por %p410, %p411
    %s414 = sadd.s32 %s413, 1
    %p417 = scmp.eq.s32.totalorder %s24, 1
    %p418 = scmp.ne.s32.totalorder %s413, %s415
    %p419 = scmp.eq.s32.totalorder %s24, 0
    %p420 = por %p418, %p419
    %p421 = scmp.ne.s32.totalorder %s413, %s415
    %p422 = scmp.eq.s32.totalorder %s29, 1
    %p423 = por %p421, %p422
    %p424 = scmp.ne.s32.totalorder %s415, %s416
    %p425 = scmp.eq.s32.totalorder %s29, 0
    %p426 = por %p424, %p425
    %p427 = scmp.ne.s32.totalorder %s415, %s416
    %p428 = scmp.eq.s32.totalorder %s30, 1
    %p429 = por %p427, %p428
    %p431 = scmp.ne.s32.totalorder %s416, %s430
    %p432 = scmp.eq.s32.totalorder %s30, 0
    %p433 = por %p431, %p432
    %s434 = ssub.s32 %s31, %s43
    %s435 = ssub.s32 %s32, %s39
    %s436 = sor.u32 %s434, %s435
    %p437 = scmp.eq.s32.totalorder %s436, 0
    %s439 = sadd.s32 %s438, 1
    %s440 = scalar_select %p437, %s438, %s439
    %p443 = pneg %p437
    %p444 = scmp.eq.s32.totalorder %s24, 1
    %p445 = por %p443, %p444
    %p446 = scmp.ne.s32.totalorder %s438, %s441
    %p447 = scmp.eq.s32.totalorder %s24, 0
    %p448 = por %p446, %p447
    %p449 = scmp.ne.s32.totalorder %s438, %s441
    %p450 = scmp.eq.s32.totalorder %s29, 1
    %p451 = por %p449, %p450
    %p452 = scmp.ne.s32.totalorder %s441, %s442
    %p453 = scmp.eq.s32.totalorder %s29, 0
    %p454 = por %p452, %p453
    %p455 = scmp.ne.s32.totalorder %s441, %s442
    %p456 = scmp.eq.s32.totalorder %s30, 1
    %p457 = por %p455, %p456
    %p459 = scmp.ne.s32.totalorder %s442, %s458
    %p460 = scmp.eq.s32.totalorder %s30, 0
    %p461 = por %p459, %p460
    %p462 = scmp.le.s32.totalorder 1, %s24
    %p463 = scmp.lt.s32.totalorder %s24, 3
    %p464 = pnand %p462, %p463
    %p465 = pneg %p464
    // Predicated region
    $region9: #{swin_forward.10} parent=5 // pred_check
      _
    $region10: #{swin_forward.10} parent=5 // pred_check_branch
      %467 = sbr.rel (%p464) target = $region12
    $region11: #{swin_forward.10} parent=5 // pred_region
      %s468 = ssub.s32 %s24, 1
      // Predicated region
      $region13: #{swin_forward.10} parent=11 // pred_check
        %p469 = pneg %p90
      $region14: #{swin_forward.10} parent=11 // pred_check_branch
        %471 = sbr.rel (%p469) target = $region16
      $region15: #{swin_forward.10} parent=11 // pred_region
        %p472 = scmp.lt.s32.totalorder %s34, 0
        %s473 = scalar_select %p472, %s34, 0
        %s474 = smul.addr %s473, 4
        %s475 = smul.addr %s474, 4
        %s476 = scalar_lea.vmem %s1, %s475
      $region16: #{swin_forward.10} parent=11 // pred_fallthru
        _
      // Predicated region
      $region17: #{swin_forward.10} parent=11 // pred_check
        %p477 = pneg %p111
      $region18: #{swin_forward.10} parent=11 // pred_check_branch
        %479 = sbr.rel (%p477) target = $region20
      $region19: #{swin_forward.10} parent=11 // pred_region
        _
      $region20: #{swin_forward.10} parent=11 // pred_fallthru
        _
      // Predicated region
      $region21: #{swin_forward.10} parent=11 // pred_check
        %p480 = pneg %p132
      $region22: #{swin_forward.10} parent=11 // pred_check_branch
        %482 = sbr.rel (%p480) target = $region24
      $region23: #{swin_forward.10} parent=11 // pred_region
        _
      $region24: #{swin_forward.10} parent=11 // pred_fallthru
        _
      // Predicated region
      $region25: #{swin_forward.10} parent=11 // pred_check
        %p483 = pneg %p153
      $region26: #{swin_forward.10} parent=11 // pred_check_branch
        %485 = sbr.rel (%p483) target = $region28
      $region27: #{swin_forward.10} parent=11 // pred_region
        _
      $region28: #{swin_forward.10} parent=11 // pred_fallthru
        _
      // Predicated region
      $region29: #{swin_forward.10} parent=11 // pred_check
        %p486 = pneg %p174
      $region30: #{swin_forward.10} parent=11 // pred_check_branch
        %488 = sbr.rel (%p486) target = $region32
      $region31: #{swin_forward.10} parent=11 // pred_region
        _
      $region32: #{swin_forward.10} parent=11 // pred_fallthru
        _
      // Predicated region
      $region33: #{swin_forward.10} parent=11 // pred_check
        %p489 = pneg %p195
      $region34: #{swin_forward.10} parent=11 // pred_check_branch
        %491 = sbr.rel (%p489) target = $region36
      $region35: #{swin_forward.10} parent=11 // pred_region
        _
      $region36: #{swin_forward.10} parent=11 // pred_fallthru
        _
      // Predicated region
      $region37: #{swin_forward.10} parent=11 // pred_check
        %p492 = pneg %p216
      $region38: #{swin_forward.10} parent=11 // pred_check_branch
        %494 = sbr.rel (%p492) target = $region40
      $region39: #{swin_forward.10} parent=11 // pred_region
        _
      $region40: #{swin_forward.10} parent=11 // pred_fallthru
        _
      // Predicated region
      $region41: #{swin_forward.10} parent=11 // pred_check
        %p495 = pneg %p237
      $region42: #{swin_forward.10} parent=11 // pred_check_branch
        %497 = sbr.rel (%p495) target = $region44
      $region43: #{swin_forward.10} parent=11 // pred_region
        _
      $region44: #{swin_forward.10} parent=11 // pred_fallthru
        _
      // Predicated region
      $region45: #{swin_forward.10} parent=11 // pred_check
        %p498 = pneg %p258
      $region46: #{swin_forward.10} parent=11 // pred_check_branch
        %500 = sbr.rel (%p498) target = $region48
      $region47: #{swin_forward.10} parent=11 // pred_region
        _
      $region48: #{swin_forward.10} parent=11 // pred_fallthru
        _
      // Predicated region
      $region49: #{swin_forward.10} parent=11 // pred_check
        %p501 = pneg %p279
      $region50: #{swin_forward.10} parent=11 // pred_check_branch
        %503 = sbr.rel (%p501) target = $region52
      $region51: #{swin_forward.10} parent=11 // pred_region
        _
      $region52: #{swin_forward.10} parent=11 // pred_fallthru
        _
      // Predicated region
      $region53: #{swin_forward.10} parent=11 // pred_check
        %p504 = pneg %p300
      $region54: #{swin_forward.10} parent=11 // pred_check_branch
        %506 = sbr.rel (%p504) target = $region56
      $region55: #{swin_forward.10} parent=11 // pred_region
        _
      $region56: #{swin_forward.10} parent=11 // pred_fallthru
        _
      // Predicated region
      $region57: #{swin_forward.10} parent=11 // pred_check
        %p507 = pneg %p321
      $region58: #{swin_forward.10} parent=11 // pred_check_branch
        %509 = sbr.rel (%p507) target = $region60
      $region59: #{swin_forward.10} parent=11 // pred_region
        _
      $region60: #{swin_forward.10} parent=11 // pred_fallthru
        _
      // Predicated region
      $region61: #{swin_forward.10} parent=11 // pred_check
        %p510 = pneg %p342
      $region62: #{swin_forward.10} parent=11 // pred_check_branch
        %512 = sbr.rel (%p510) target = $region64
      $region63: #{swin_forward.10} parent=11 // pred_region
        _
      $region64: #{swin_forward.10} parent=11 // pred_fallthru
        _
      // Predicated region
      $region65: #{swin_forward.10} parent=11 // pred_check
        %p513 = pneg %p363
      $region66: #{swin_forward.10} parent=11 // pred_check_branch
        %515 = sbr.rel (%p513) target = $region68
      $region67: #{swin_forward.10} parent=11 // pred_region
        _
      $region68: #{swin_forward.10} parent=11 // pred_fallthru
        _
      // Predicated region
      $region69: #{swin_forward.10} parent=11 // pred_check
        %p516 = pneg %p384
      $region70: #{swin_forward.10} parent=11 // pred_check_branch
        %518 = sbr.rel (%p516) target = $region72
      $region71: #{swin_forward.10} parent=11 // pred_region
        _
      $region72: #{swin_forward.10} parent=11 // pred_fallthru
        _
      // Predicated region
      $region73: #{swin_forward.10} parent=11 // pred_check
        %p519 = pneg %p405
      $region74: #{swin_forward.10} parent=11 // pred_check_branch
        %521 = sbr.rel (%p519) target = $region76
      $region75: #{swin_forward.10} parent=11 // pred_region
        _
      $region76: #{swin_forward.10} parent=11 // pred_fallthru
        _
      // Predicated region
      $region77: #{swin_forward.10} parent=11 // pred_check
        %p522 = pneg %p426
      $region78: #{swin_forward.10} parent=11 // pred_check_branch
        %524 = sbr.rel (%p522) target = $region80
      $region79: #{swin_forward.10} parent=11 // pred_region
        _
      $region80: #{swin_forward.10} parent=11 // pred_fallthru
        _
    $region12: #{swin_forward.10} parent=5 // pred_fallthru
      _
    %p525 = scmp.lt.s32.totalorder %s24, 2
    // Predicated region
    $region81: #{swin_forward.10} parent=5 // pred_check
      %p526 = pneg %p525
    $region82: #{swin_forward.10} parent=5 // pred_check_branch
      %528 = sbr.rel (%p526) target = $region84
    $region83: #{swin_forward.10} parent=5 // pred_region
      // Predicated region
      $region85: #{swin_forward.10} parent=83 // pred_check
        %p529 = pneg %p58
      $region86: #{swin_forward.10} parent=83 // pred_check_branch
        %531 = sbr.rel (%p529) target = $region88
      $region87: #{swin_forward.10} parent=83 // pred_region
        %p532 = scmp.lt.s32.totalorder %s31, 1
        %s533 = scalar_select %p532, %s31, 1
        %p534 = scmp.lt.s32.totalorder %s32, 0
        %s535 = scalar_select %p534, %s32, 0
        %s536 = sadd.s32 %s535, %s533
        %s537 = smul.addr %s536, 4
        %s538 = scalar_lea.vmem %s0, %s537
      $region88: #{swin_forward.10} parent=83 // pred_fallthru
        _
    $region84: #{swin_forward.10} parent=5 // pred_fallthru
      _
    %p539 = scmp.le.s32.totalorder 1, %s24
    %p540 = scmp.lt.s32.totalorder %s24, 3
    %p541 = pnand %p539, %p540
    %p542 = pneg %p541
    // Predicated region
    $region89: #{swin_forward.10} parent=5 // pred_check
      _
    $region90: #{swin_forward.10} parent=5 // pred_check_branch
      %544 = sbr.rel (%p541) target = $region92
    $region91: #{swin_forward.10} parent=5 // pred_region
      %s545 = ssub.s32 %s24, 1
      %p546 = scmp.lt.s32.totalorder %s33, 1
      %s547 = scalar_select %p546, %s33, 1
      %p548 = scmp.lt.s32.totalorder %s34, 0
      %s549 = scalar_select %p548, %s34, 0
      %s550 = sadd.s32 %s549, %s547
      %s551 = smul.addr %s550, 4
      %s552 = scalar_lea.vmem %s0, %s551
      %p553 = pneg %p64
      %p554 = pneg %p61
      %p555 = scmp.lt.s32.totalorder %s34, 0
      %s556 = scalar_select %p555, %s34, 0
      %s557 = smul.addr %s556, 4
      %s558 = smul.addr %s557, 4
      %s559 = scalar_lea.vmem %s1, %s558
      %p560 = pneg %p90
      %p561 = pneg %p87
      %p562 = pneg %p111
      %p563 = pneg %p108
      %p564 = pneg %p132
      %p565 = pneg %p129
      %p566 = pneg %p153
      %p567 = pneg %p150
      %p568 = pneg %p174
      %p569 = pneg %p171
      %p570 = pneg %p195
      %p571 = pneg %p192
      %p572 = pneg %p216
      %p573 = pneg %p213
      %p574 = pneg %p237
      %p575 = pneg %p234
      %p576 = pneg %p258
      %p577 = pneg %p255
      %p578 = pneg %p279
      %p579 = pneg %p276
      %p580 = pneg %p300
      %p581 = pneg %p297
      %p582 = pneg %p321
      %p583 = pneg %p318
      %p584 = pneg %p342
      %p585 = pneg %p339
      %p586 = pneg %p363
      %p587 = pneg %p360
      %p588 = pneg %p384
      %p589 = pneg %p381
      %p590 = pneg %p405
      %p591 = pneg %p402
      %p592 = pneg %p426
      %p593 = pneg %p423
      %p594 = pneg %p454
      %p595 = pneg %p451
      %p596 = scmp.lt.s32.totalorder %s33, 1
      %s597 = scalar_select %p596, %s33, 1
      %p598 = scmp.lt.s32.totalorder %s34, 0
      %s599 = scalar_select %p598, %s34, 0
      %s600 = sadd.s32 %s599, %s597
      %s601 = smul.addr %s600, 4
      %s602 = scalar_lea.vmem %s18, %s601
      %p603 = scmp.lt.s32.totalorder %s33, 1
      %s604 = scalar_select %p603, %s33, 1
      %p605 = scmp.lt.s32.totalorder %s34, 0
      %s606 = scalar_select %p605, %s34, 0
      %s607 = sadd.s32 %s606, %s604
      %s608 = smul.addr %s607, 4
      %s609 = scalar_lea.vmem %s0, %s608
      %p610 = scmp.lt.s32.totalorder %s34, 0
      %s611 = scalar_select %p610, %s34, 0
      %s612 = smul.addr %s611, 4
      %s613 = smul.addr %s612, 4
      %s614 = scalar_lea.vmem %s1, %s613
      %p615 = scmp.lt.s32.totalorder %s33, 1
      %s616 = scalar_select %p615, %s33, 1
      %p617 = scmp.lt.s32.totalorder %s34, 0
      %s618 = scalar_select %p617, %s34, 0
      %s619 = sadd.s32 %s618, %s616
      %s620 = smul.addr %s619, 4
      %s621 = scalar_lea.vmem %s18, %s620
      %v623 = vld [vmem:[%s609] sm:$0xf]
      %v624 = vld [vmem:[%s614] sm:$0xf]
      %v625 = vld [vmem:[%s614 + $0x4] sm:$0xf]
      %v626 = vld [vmem:[%s614 + $0x8] sm:$0xf]
      %v627 = vld [vmem:[%s614 + $0xc] sm:$0xf]
      %v628 = vld [vmem:[%s2] sm:$0x1]
      %v629 = vld [vmem:[%s3] sm:$0x1]
      %vm630 = vcmask 519168
      %v631 = vsel %vm630, %v623, 0.0
      %632 = vadd.xlane.f32.xlu0 %v631
      %v633 = vpop.xlane.xlu0 %632
      %v634 = vrcp.pop 64.0
      %v635 = vmul.f32 64.0, %v634
      %v636 = vsub.f32 1.0, %v635
      %v637 = vmul.f32 %v634, %v636
      %v638 = vadd.f32 %v634, %v637
      %vm639 = vweird.f32 %v634
      %v640 = vsel %vm639, %v634, %v638
      %v641 = vmul.f32 %v633, %v640
      %v642 = vsub.f32 %v623, %v641
      %v643 = vmul.f32 %v642, %v642
      %v644 = vsel %vm630, %v643, 0.0
      %645 = vadd.xlane.f32.xlu0 %v644
      %v646 = vpop.xlane.xlu0 %645
      %v647 = vmul.f32 %v646, %v640
      %v648 = vadd.f32 %v647, 1e-05
      %v649 = vrsqrt.pop %v648
      %v650 = vmul.f32 %v649, %v648
      %v651 = vmul.f32 %v650, %v649
      %v652 = vmul.f32 0.5, %v651
      %v653 = vsub.f32 1.5, %v652
      %v654 = vmul.f32 %v649, %v653
      %vm655 = vweird.f32 %v648
      %vm656 = vweird.f32 %v649
      %vm657 = vmor %vm655, %vm656
      %v658 = vsel %vm657, %v649, %v654
      %v659 = vmul.f32 %v642, %v658
      %v661 = vperm.slane %v628, 0
      %v663 = vmul.f32 %v659, %v661
      %v665 = vperm.slane %v629, 0
      %v667 = vadd.f32 %v663, %v665
      %v668 = vpack.c.bf16 %v667, %v667
      %v669 = vld [vmem:[%s4] sm:$0xf]
      %v670 = vld [vmem:[%s4 + $0x4] sm:$0xf]
      %v671 = vld [vmem:[%s4 + $0x8] sm:$0xf]
      %v672 = vld [vmem:[%s4 + $0xc] sm:$0xf]
      %v673 = vld [vmem:[%s4 + $0x10] sm:$0xf]
      %v674 = vld [vmem:[%s4 + $0x14] sm:$0xf]
      %v675 = vld [vmem:[%s4 + $0x18] sm:$0xf]
      %v676 = vld [vmem:[%s4 + $0x1c] sm:$0xf]
      %v677 = vld [vmem:[%s4 + $0x20] sm:$0xf]
      %v678 = vld [vmem:[%s4 + $0x24] sm:$0xf]
      %v679 = vld [vmem:[%s4 + $0x28] sm:$0xf]
      %v680 = vld [vmem:[%s4 + $0x2c] sm:$0xf]
      %v681 = vld [vmem:[%s4 + $0x30] sm:$0xf]
      %v682 = vld [vmem:[%s4 + $0x34] sm:$0xf]
      %v683 = vld [vmem:[%s4 + $0x38] sm:$0xf]
      %v684 = vld [vmem:[%s4 + $0x3c] sm:$0xf]
      %v685 = vld [vmem:[%s4 + $0x40] sm:$0xf]
      %v686 = vld [vmem:[%s4 + $0x44] sm:$0xf]
      %v687 = vld [vmem:[%s4 + $0x48] sm:$0xf]
      %v688 = vld [vmem:[%s4 + $0x4c] sm:$0xf]
      %v689 = vld [vmem:[%s4 + $0x50] sm:$0xf]
      %v690 = vld [vmem:[%s4 + $0x54] sm:$0xf]
      %v691 = vld [vmem:[%s4 + $0x58] sm:$0xf]
      %v692 = vld [vmem:[%s4 + $0x5c] sm:$0xf]
      %v693 = vld [vmem:[%s4 + $0x60] sm:$0xf]
      %v694 = vld [vmem:[%s4 + $0x64] sm:$0xf]
      %v695 = vld [vmem:[%s4 + $0x68] sm:$0xf]
      %v696 = vld [vmem:[%s4 + $0x6c] sm:$0xf]
      %v697 = vld [vmem:[%s4 + $0x70] sm:$0xf]
      %v698 = vld [vmem:[%s4 + $0x74] sm:$0xf]
      %v699 = vld [vmem:[%s4 + $0x78] sm:$0xf]
      %v700 = vld [vmem:[%s4 + $0x7c] sm:$0xf]
      %v701 = vld [vmem:[%s5] sm:$0x1]
      %v702 = vld [vmem:[%s5 + $0x1] sm:$0x1]
      %v703 = vld [vmem:[%s5 + $0x2] sm:$0x1]
      %v704 = vld [vmem:[%s5 + $0x3] sm:$0x1]
      %v709 = vperm.slane %v701, 0
      %v710 = vperm.slane %v702, 0
      %v711 = vperm.slane %v703, 0
      %v712 = vperm.slane %v704, 0
      %v725 = vunpack.c.l.b16 %v669
      %v726 = vunpack.c.l.b16 %v670
      %v727 = vunpack.c.l.b16 %v671
      %v728 = vunpack.c.l.b16 %v672
      %v729 = vunpack.c.l.b16 %v673
      %v730 = vunpack.c.l.b16 %v674
      %v731 = vunpack.c.l.b16 %v675
      %v732 = vunpack.c.l.b16 %v676
      %v733 = vpack.c.b16 %v726, %v725
      %v734 = vpack.c.b16 %v728, %v727
      %v735 = vpack.c.b16 %v730, %v729
      %v736 = vpack.c.b16 %v732, %v731
      %vm741 = vcmask 523264
      %v743 = vsel %vm741, %v668, 0
      %745 = vmatpush.bf16.msra.mxu0 0
      %746 = vmatpush.bf16.msra.mxu0 0
      %747 = vmatpush.bf16.msra.mxu0 0
      %748 = vmatpush.bf16.msra.mxu0 0
      %749 = vmatpush.bf16.msra.mxu0 %v736
      %750 = vmatpush.bf16.msra.mxu0 %v735
      %751 = vmatpush.bf16.msra.mxu0 %v734
      %752 = vmatpush.bf16.msra.mxu0 %v733
      %753 = vmatmul.bf16.gmra.mxu0 %v743
      %v754 = vpop.f32.mrf.mxu0
      %v755 = vadd.f32 %v709, %v754
      %v756 = vpop.f32.mrf.mxu0
      %757 = vdwg.mxu0
      %v766 = vunpack.c.l.b16 %v677
      %v767 = vunpack.c.l.b16 %v678
      %v768 = vunpack.c.l.b16 %v679
      %v769 = vunpack.c.l.b16 %v680
      %v770 = vunpack.c.l.b16 %v681
      %v771 = vunpack.c.l.b16 %v682
      %v772 = vunpack.c.l.b16 %v683
      %v773 = vunpack.c.l.b16 %v684
      %v774 = vpack.c.b16 %v767, %v766
      %v775 = vpack.c.b16 %v769, %v768
      %v776 = vpack.c.b16 %v771, %v770
      %v777 = vpack.c.b16 %v773, %v772
      %782 = vmatpush.bf16.msra.mxu0 0
      %783 = vmatpush.bf16.msra.mxu0 0
      %784 = vmatpush.bf16.msra.mxu0 0
      %785 = vmatpush.bf16.msra.mxu0 0
      %786 = vmatpush.bf16.msra.mxu0 %v777
      %787 = vmatpush.bf16.msra.mxu0 %v776
      %788 = vmatpush.bf16.msra.mxu0 %v775
      %789 = vmatpush.bf16.msra.mxu0 %v774
      %790 = vmatmul.bf16.gmra.mxu0 %v743
      %v791 = vpop.f32.mrf.mxu0
      %v792 = vadd.f32 %v710, %v791
      %v793 = vpop.f32.mrf.mxu0
      %794 = vdwg.mxu0
      %v803 = vunpack.c.l.b16 %v685
      %v804 = vunpack.c.l.b16 %v686
      %v805 = vunpack.c.l.b16 %v687
      %v806 = vunpack.c.l.b16 %v688
      %v807 = vunpack.c.l.b16 %v689
      %v808 = vunpack.c.l.b16 %v690
      %v809 = vunpack.c.l.b16 %v691
      %v810 = vunpack.c.l.b16 %v692
      %v811 = vpack.c.b16 %v804, %v803
      %v812 = vpack.c.b16 %v806, %v805
      %v813 = vpack.c.b16 %v808, %v807
      %v814 = vpack.c.b16 %v810, %v809
      %819 = vmatpush.bf16.msra.mxu0 0
      %820 = vmatpush.bf16.msra.mxu0 0
      %821 = vmatpush.bf16.msra.mxu0 0
      %822 = vmatpush.bf16.msra.mxu0 0
      %823 = vmatpush.bf16.msra.mxu0 %v814
      %824 = vmatpush.bf16.msra.mxu0 %v813
      %825 = vmatpush.bf16.msra.mxu0 %v812
      %826 = vmatpush.bf16.msra.mxu0 %v811
      %827 = vmatmul.bf16.gmra.mxu0 %v743
      %v828 = vpop.f32.mrf.mxu0
      %v829 = vadd.f32 %v711, %v828
      %v830 = vpop.f32.mrf.mxu0
      %831 = vdwg.mxu0
      %v840 = vunpack.c.l.b16 %v693
      %v841 = vunpack.c.l.b16 %v694
      %v842 = vunpack.c.l.b16 %v695
      %v843 = vunpack.c.l.b16 %v696
      %v844 = vunpack.c.l.b16 %v697
      %v845 = vunpack.c.l.b16 %v698
      %v846 = vunpack.c.l.b16 %v699
      %v847 = vunpack.c.l.b16 %v700
      %v848 = vpack.c.b16 %v841, %v840
      %v849 = vpack.c.b16 %v843, %v842
      %v850 = vpack.c.b16 %v845, %v844
      %v851 = vpack.c.b16 %v847, %v846
      %856 = vmatpush.bf16.msra.mxu0 0
      %857 = vmatpush.bf16.msra.mxu0 0
      %858 = vmatpush.bf16.msra.mxu0 0
      %859 = vmatpush.bf16.msra.mxu0 0
      %860 = vmatpush.bf16.msra.mxu0 %v851
      %861 = vmatpush.bf16.msra.mxu0 %v850
      %862 = vmatpush.bf16.msra.mxu0 %v849
      %863 = vmatpush.bf16.msra.mxu0 %v848
      %864 = vmatmul.bf16.gmra.mxu0 %v743
      %v865 = vpop.f32.mrf.mxu0
      %v866 = vadd.f32 %v712, %v865
      %v867 = vpop.f32.mrf.mxu0
      %868 = vdwg.mxu0
      %v869 = vld [vmem:[%s6] sm:$0xf]
      %v870 = vld [vmem:[%s6 + $0x4] sm:$0xf]
      %v871 = vld [vmem:[%s6 + $0x8] sm:$0xf]
      %v872 = vld [vmem:[%s6 + $0xc] sm:$0xf]
      %v873 = vld [vmem:[%s6 + $0x10] sm:$0xf]
      %v874 = vld [vmem:[%s6 + $0x14] sm:$0xf]
      %v875 = vld [vmem:[%s6 + $0x18] sm:$0xf]
      %v876 = vld [vmem:[%s6 + $0x1c] sm:$0xf]
      %v877 = vld [vmem:[%s6 + $0x20] sm:$0xf]
      %v878 = vld [vmem:[%s6 + $0x24] sm:$0xf]
      %v879 = vld [vmem:[%s6 + $0x28] sm:$0xf]
      %v880 = vld [vmem:[%s6 + $0x2c] sm:$0xf]
      %v881 = vld [vmem:[%s6 + $0x30] sm:$0xf]
      %v882 = vld [vmem:[%s6 + $0x34] sm:$0xf]
      %v883 = vld [vmem:[%s6 + $0x38] sm:$0xf]
      %v884 = vld [vmem:[%s6 + $0x3c] sm:$0xf]
      %v885 = vld [vmem:[%s6 + $0x40] sm:$0xf]
      %v886 = vld [vmem:[%s6 + $0x44] sm:$0xf]
      %v887 = vld [vmem:[%s6 + $0x48] sm:$0xf]
      %v888 = vld [vmem:[%s6 + $0x4c] sm:$0xf]
      %v889 = vld [vmem:[%s6 + $0x50] sm:$0xf]
      %v890 = vld [vmem:[%s6 + $0x54] sm:$0xf]
      %v891 = vld [vmem:[%s6 + $0x58] sm:$0xf]
      %v892 = vld [vmem:[%s6 + $0x5c] sm:$0xf]
      %v893 = vld [vmem:[%s6 + $0x60] sm:$0xf]
      %v894 = vld [vmem:[%s6 + $0x64] sm:$0xf]
      %v895 = vld [vmem:[%s6 + $0x68] sm:$0xf]
      %v896 = vld [vmem:[%s6 + $0x6c] sm:$0xf]
      %v897 = vld [vmem:[%s6 + $0x70] sm:$0xf]
      %v898 = vld [vmem:[%s6 + $0x74] sm:$0xf]
      %v899 = vld [vmem:[%s6 + $0x78] sm:$0xf]
      %v900 = vld [vmem:[%s6 + $0x7c] sm:$0xf]
      %v901 = vld [vmem:[%s7] sm:$0x1]
      %v902 = vld [vmem:[%s7 + $0x1] sm:$0x1]
      %v903 = vld [vmem:[%s7 + $0x2] sm:$0x1]
      %v904 = vld [vmem:[%s7 + $0x3] sm:$0x1]
      %v909 = vperm.slane %v901, 0
      %v910 = vperm.slane %v902, 0
      %v911 = vperm.slane %v903, 0
      %v912 = vperm.slane %v904, 0
      %v925 = vunpack.c.l.b16 %v869
      %v926 = vunpack.c.l.b16 %v870
      %v927 = vunpack.c.l.b16 %v871
      %v928 = vunpack.c.l.b16 %v872
      %v929 = vunpack.c.l.b16 %v873
      %v930 = vunpack.c.l.b16 %v874
      %v931 = vunpack.c.l.b16 %v875
      %v932 = vunpack.c.l.b16 %v876
      %v933 = vpack.c.b16 %v926, %v925
      %v934 = vpack.c.b16 %v928, %v927
      %v935 = vpack.c.b16 %v930, %v929
      %v936 = vpack.c.b16 %v932, %v931
      %941 = vmatpush.bf16.msra.mxu0 0
      %942 = vmatpush.bf16.msra.mxu0 0
      %943 = vmatpush.bf16.msra.mxu0 0
      %944 = vmatpush.bf16.msra.mxu0 0
      %945 = vmatpush.bf16.msra.mxu0 %v936
      %946 = vmatpush.bf16.msra.mxu0 %v935
      %947 = vmatpush.bf16.msra.mxu0 %v934
      %948 = vmatpush.bf16.msra.mxu0 %v933
      %949 = vmatmul.bf16.gmra.mxu0 %v743
      %v950 = vpop.f32.mrf.mxu0
      %v951 = vadd.f32 %v909, %v950
      %v952 = vpop.f32.mrf.mxu0
      %953 = vdwg.mxu0
      %v962 = vunpack.c.l.b16 %v877
      %v963 = vunpack.c.l.b16 %v878
      %v964 = vunpack.c.l.b16 %v879
      %v965 = vunpack.c.l.b16 %v880
      %v966 = vunpack.c.l.b16 %v881
      %v967 = vunpack.c.l.b16 %v882
      %v968 = vunpack.c.l.b16 %v883
      %v969 = vunpack.c.l.b16 %v884
      %v970 = vpack.c.b16 %v963, %v962
      %v971 = vpack.c.b16 %v965, %v964
      %v972 = vpack.c.b16 %v967, %v966
      %v973 = vpack.c.b16 %v969, %v968
      %978 = vmatpush.bf16.msra.mxu0 0
      %979 = vmatpush.bf16.msra.mxu0 0
      %980 = vmatpush.bf16.msra.mxu0 0
      %981 = vmatpush.bf16.msra.mxu0 0
      %982 = vmatpush.bf16.msra.mxu0 %v973
      %983 = vmatpush.bf16.msra.mxu0 %v972
      %984 = vmatpush.bf16.msra.mxu0 %v971
      %985 = vmatpush.bf16.msra.mxu0 %v970
      %986 = vmatmul.bf16.gmra.mxu0 %v743
      %v987 = vpop.f32.mrf.mxu0
      %v988 = vadd.f32 %v910, %v987
      %v989 = vpop.f32.mrf.mxu0
      %990 = vdwg.mxu0
      %v999 = vunpack.c.l.b16 %v885
      %v1000 = vunpack.c.l.b16 %v886
      %v1001 = vunpack.c.l.b16 %v887
      %v1002 = vunpack.c.l.b16 %v888
      %v1003 = vunpack.c.l.b16 %v889
      %v1004 = vunpack.c.l.b16 %v890
      %v1005 = vunpack.c.l.b16 %v891
      %v1006 = vunpack.c.l.b16 %v892
      %v1007 = vpack.c.b16 %v1000, %v999
      %v1008 = vpack.c.b16 %v1002, %v1001
      %v1009 = vpack.c.b16 %v1004, %v1003
      %v1010 = vpack.c.b16 %v1006, %v1005
      %1015 = vmatpush.bf16.msra.mxu0 0
      %1016 = vmatpush.bf16.msra.mxu0 0
      %1017 = vmatpush.bf16.msra.mxu0 0
      %1018 = vmatpush.bf16.msra.mxu0 0
      %1019 = vmatpush.bf16.msra.mxu0 %v1010
      %1020 = vmatpush.bf16.msra.mxu0 %v1009
      %1021 = vmatpush.bf16.msra.mxu0 %v1008
      %1022 = vmatpush.bf16.msra.mxu0 %v1007
      %1023 = vmatmul.bf16.gmra.mxu0 %v743
      %v1024 = vpop.f32.mrf.mxu0
      %v1025 = vadd.f32 %v911, %v1024
      %v1026 = vpop.f32.mrf.mxu0
      %1027 = vdwg.mxu0
      %v1036 = vunpack.c.l.b16 %v893
      %v1037 = vunpack.c.l.b16 %v894
      %v1038 = vunpack.c.l.b16 %v895
      %v1039 = vunpack.c.l.b16 %v896
      %v1040 = vunpack.c.l.b16 %v897
      %v1041 = vunpack.c.l.b16 %v898
      %v1042 = vunpack.c.l.b16 %v899
      %v1043 = vunpack.c.l.b16 %v900
      %v1044 = vpack.c.b16 %v1037, %v1036
      %v1045 = vpack.c.b16 %v1039, %v1038
      %v1046 = vpack.c.b16 %v1041, %v1040
      %v1047 = vpack.c.b16 %v1043, %v1042
      %1052 = vmatpush.bf16.msra.mxu0 0
      %1053 = vmatpush.bf16.msra.mxu0 0
      %1054 = vmatpush.bf16.msra.mxu0 0
      %1055 = vmatpush.bf16.msra.mxu0 0
      %1056 = vmatpush.bf16.msra.mxu0 %v1047
      %1057 = vmatpush.bf16.msra.mxu0 %v1046
      %1058 = vmatpush.bf16.msra.mxu0 %v1045
      %1059 = vmatpush.bf16.msra.mxu0 %v1044
      %1060 = vmatmul.bf16.gmra.mxu0 %v743
      %v1061 = vpop.f32.mrf.mxu0
      %v1062 = vadd.f32 %v912, %v1061
      %v1063 = vpop.f32.mrf.mxu0
      %1064 = vdwg.mxu0
      %v1065 = vld [vmem:[%s8] sm:$0xf]
      %v1066 = vld [vmem:[%s8 + $0x4] sm:$0xf]
      %v1067 = vld [vmem:[%s8 + $0x8] sm:$0xf]
      %v1068 = vld [vmem:[%s8 + $0xc] sm:$0xf]
      %v1069 = vld [vmem:[%s8 + $0x10] sm:$0xf]
      %v1070 = vld [vmem:[%s8 + $0x14] sm:$0xf]
      %v1071 = vld [vmem:[%s8 + $0x18] sm:$0xf]
      %v1072 = vld [vmem:[%s8 + $0x1c] sm:$0xf]
      %v1073 = vld [vmem:[%s8 + $0x20] sm:$0xf]
      %v1074 = vld [vmem:[%s8 + $0x24] sm:$0xf]
      %v1075 = vld [vmem:[%s8 + $0x28] sm:$0xf]
      %v1076 = vld [vmem:[%s8 + $0x2c] sm:$0xf]
      %v1077 = vld [vmem:[%s8 + $0x30] sm:$0xf]
      %v1078 = vld [vmem:[%s8 + $0x34] sm:$0xf]
      %v1079 = vld [vmem:[%s8 + $0x38] sm:$0xf]
      %v1080 = vld [vmem:[%s8 + $0x3c] sm:$0xf]
      %v1081 = vld [vmem:[%s8 + $0x40] sm:$0xf]
      %v1082 = vld [vmem:[%s8 + $0x44] sm:$0xf]
      %v1083 = vld [vmem:[%s8 + $0x48] sm:$0xf]
      %v1084 = vld [vmem:[%s8 + $0x4c] sm:$0xf]
      %v1085 = vld [vmem:[%s8 + $0x50] sm:$0xf]
      %v1086 = vld [vmem:[%s8 + $0x54] sm:$0xf]
      %v1087 = vld [vmem:[%s8 + $0x58] sm:$0xf]
      %v1088 = vld [vmem:[%s8 + $0x5c] sm:$0xf]
      %v1089 = vld [vmem:[%s8 + $0x60] sm:$0xf]
      %v1090 = vld [vmem:[%s8 + $0x64] sm:$0xf]
      %v1091 = vld [vmem:[%s8 + $0x68] sm:$0xf]
      %v1092 = vld [vmem:[%s8 + $0x6c] sm:$0xf]
      %v1093 = vld [vmem:[%s8 + $0x70] sm:$0xf]
      %v1094 = vld [vmem:[%s8 + $0x74] sm:$0xf]
      %v1095 = vld [vmem:[%s8 + $0x78] sm:$0xf]
      %v1096 = vld [vmem:[%s8 + $0x7c] sm:$0xf]
      %v1097 = vld [vmem:[%s9] sm:$0x1]
      %v1098 = vld [vmem:[%s9 + $0x1] sm:$0x1]
      %v1099 = vld [vmem:[%s9 + $0x2] sm:$0x1]
      %v1100 = vld [vmem:[%s9 + $0x3] sm:$0x1]
      %v1105 = vperm.slane %v1097, 0
      %v1106 = vperm.slane %v1098, 0
      %v1107 = vperm.slane %v1099, 0
      %v1108 = vperm.slane %v1100, 0
      %v1121 = vunpack.c.l.b16 %v1065
      %v1122 = vunpack.c.l.b16 %v1066
      %v1123 = vunpack.c.l.b16 %v1067
      %v1124 = vunpack.c.l.b16 %v1068
      %v1125 = vunpack.c.l.b16 %v1069
      %v1126 = vunpack.c.l.b16 %v1070
      %v1127 = vunpack.c.l.b16 %v1071
      %v1128 = vunpack.c.l.b16 %v1072
      %v1129 = vpack.c.b16 %v1122, %v1121
      %v1130 = vpack.c.b16 %v1124, %v1123
      %v1131 = vpack.c.b16 %v1126, %v1125
      %v1132 = vpack.c.b16 %v1128, %v1127
      %1137 = vmatpush.bf16.msra.mxu0 0
      %1138 = vmatpush.bf16.msra.mxu0 0
      %1139 = vmatpush.bf16.msra.mxu0 0
      %1140 = vmatpush.bf16.msra.mxu0 0
      %1141 = vmatpush.bf16.msra.mxu0 %v1132
      %1142 = vmatpush.bf16.msra.mxu0 %v1131
      %1143 = vmatpush.bf16.msra.mxu0 %v1130
      %1144 = vmatpush.bf16.msra.mxu0 %v1129
      %1145 = vmatmul.bf16.gmra.mxu0 %v743
      %v1146 = vpop.f32.mrf.mxu0
      %v1147 = vadd.f32 %v1105, %v1146
      %v1148 = vpop.f32.mrf.mxu0
      %1149 = vdwg.mxu0
      %v1158 = vunpack.c.l.b16 %v1073
      %v1159 = vunpack.c.l.b16 %v1074
      %v1160 = vunpack.c.l.b16 %v1075
      %v1161 = vunpack.c.l.b16 %v1076
      %v1162 = vunpack.c.l.b16 %v1077
      %v1163 = vunpack.c.l.b16 %v1078
      %v1164 = vunpack.c.l.b16 %v1079
      %v1165 = vunpack.c.l.b16 %v1080
      %v1166 = vpack.c.b16 %v1159, %v1158
      %v1167 = vpack.c.b16 %v1161, %v1160
      %v1168 = vpack.c.b16 %v1163, %v1162
      %v1169 = vpack.c.b16 %v1165, %v1164
      %1174 = vmatpush.bf16.msra.mxu0 0
      %1175 = vmatpush.bf16.msra.mxu0 0
      %1176 = vmatpush.bf16.msra.mxu0 0
      %1177 = vmatpush.bf16.msra.mxu0 0
      %1178 = vmatpush.bf16.msra.mxu0 %v1169
      %1179 = vmatpush.bf16.msra.mxu0 %v1168
      %1180 = vmatpush.bf16.msra.mxu0 %v1167
      %1181 = vmatpush.bf16.msra.mxu0 %v1166
      %1182 = vmatmul.bf16.gmra.mxu0 %v743
      %v1183 = vpop.f32.mrf.mxu0
      %v1184 = vadd.f32 %v1106, %v1183
      %v1185 = vpop.f32.mrf.mxu0
      %1186 = vdwg.mxu0
      %v1195 = vunpack.c.l.b16 %v1081
      %v1196 = vunpack.c.l.b16 %v1082
      %v1197 = vunpack.c.l.b16 %v1083
      %v1198 = vunpack.c.l.b16 %v1084
      %v1199 = vunpack.c.l.b16 %v1085
      %v1200 = vunpack.c.l.b16 %v1086
      %v1201 = vunpack.c.l.b16 %v1087
      %v1202 = vunpack.c.l.b16 %v1088
      %v1203 = vpack.c.b16 %v1196, %v1195
      %v1204 = vpack.c.b16 %v1198, %v1197
      %v1205 = vpack.c.b16 %v1200, %v1199
      %v1206 = vpack.c.b16 %v1202, %v1201
      %1211 = vmatpush.bf16.msra.mxu0 0
      %1212 = vmatpush.bf16.msra.mxu0 0
      %1213 = vmatpush.bf16.msra.mxu0 0
      %1214 = vmatpush.bf16.msra.mxu0 0
      %1215 = vmatpush.bf16.msra.mxu0 %v1206
      %1216 = vmatpush.bf16.msra.mxu0 %v1205
      %1217 = vmatpush.bf16.msra.mxu0 %v1204
      %1218 = vmatpush.bf16.msra.mxu0 %v1203
      %1219 = vmatmul.bf16.gmra.mxu0 %v743
      %v1220 = vpop.f32.mrf.mxu0
      %v1221 = vadd.f32 %v1107, %v1220
      %v1222 = vpop.f32.mrf.mxu0
      %1223 = vdwg.mxu0
      %v1232 = vunpack.c.l.b16 %v1089
      %v1233 = vunpack.c.l.b16 %v1090
      %v1234 = vunpack.c.l.b16 %v1091
      %v1235 = vunpack.c.l.b16 %v1092
      %v1236 = vunpack.c.l.b16 %v1093
      %v1237 = vunpack.c.l.b16 %v1094
      %v1238 = vunpack.c.l.b16 %v1095
      %v1239 = vunpack.c.l.b16 %v1096
      %v1240 = vpack.c.b16 %v1233, %v1232
      %v1241 = vpack.c.b16 %v1235, %v1234
      %v1242 = vpack.c.b16 %v1237, %v1236
      %v1243 = vpack.c.b16 %v1239, %v1238
      %1248 = vmatpush.bf16.msra.mxu0 0
      %1249 = vmatpush.bf16.msra.mxu0 0
      %1250 = vmatpush.bf16.msra.mxu0 0
      %1251 = vmatpush.bf16.msra.mxu0 0
      %1252 = vmatpush.bf16.msra.mxu0 %v1243
      %1253 = vmatpush.bf16.msra.mxu0 %v1242
      %1254 = vmatpush.bf16.msra.mxu0 %v1241
      %1255 = vmatpush.bf16.msra.mxu0 %v1240
      %1256 = vmatmul.bf16.gmra.mxu0 %v743
      %v1257 = vpop.f32.mrf.mxu0
      %v1258 = vadd.f32 %v1108, %v1257
      %v1259 = vpop.f32.mrf.mxu0
      %1260 = vdwg.mxu0
      %v1261 = vpack.c.bf16 %v755, %v755
      %v1262 = vpack.c.bf16 %v792, %v792
      %v1263 = vpack.c.bf16 %v829, %v829
      %v1264 = vpack.c.bf16 %v866, %v866
      %v1265 = vpack.c.bf16 %v951, %v951
      %v1266 = vpack.c.bf16 %v988, %v988
      %v1267 = vpack.c.bf16 %v1025, %v1025
      %v1268 = vpack.c.bf16 %v1062, %v1062
      %vm1269 = vcmask 130048
      %v1271 = vsel %vm1269, %v1261, 0
      %v1274 = vsel %vm1269, %v1265, 0
      %1276 = vmatpush.bf16.xpose.msra.mxu0 0
      %1277 = vmatpush.bf16.xpose.msra.mxu0 0
      %1278 = vmatpush.bf16.xpose.msra.mxu0 0
      %1279 = vmatpush.bf16.xpose.msra.mxu0 0
      %1280 = vmatpush.bf16.xpose.msra.mxu0 0
      %1281 = vmatpush.bf16.xpose.msra.mxu0 0
      %1282 = vmatpush.bf16.xpose.msra.mxu0 0
      %1283 = vmatpush.bf16.xpose.msra.mxu0 %v1274
      %1284 = vmatmul.bf16.gmra.mxu0 %v1271
      %v1285 = vpop.f32.mrf.mxu0
      %v1286 = vadd.f32 0.0, %v1285
      %v1287 = vpop.f32.mrf.mxu0
      %1288 = vdwg.mxu0
      %v1290 = vsel %vm1269, %v1262, 0
      %v1293 = vsel %vm1269, %v1266, 0
      %1295 = vmatpush.bf16.xpose.msra.mxu0 0
      %1296 = vmatpush.bf16.xpose.msra.mxu0 0
      %1297 = vmatpush.bf16.xpose.msra.mxu0 0
      %1298 = vmatpush.bf16.xpose.msra.mxu0 0
      %1299 = vmatpush.bf16.xpose.msra.mxu0 0
      %1300 = vmatpush.bf16.xpose.msra.mxu0 0
      %1301 = vmatpush.bf16.xpose.msra.mxu0 0
      %1302 = vmatpush.bf16.xpose.msra.mxu0 %v1293
      %1303 = vmatmul.bf16.gmra.mxu0 %v1290
      %v1304 = vpop.f32.mrf.mxu0
      %v1305 = vadd.f32 0.0, %v1304
      %v1306 = vpop.f32.mrf.mxu0
      %1307 = vdwg.mxu0
      %v1309 = vsel %vm1269, %v1263, 0
      %v1312 = vsel %vm1269, %v1267, 0
      %1314 = vmatpush.bf16.xpose.msra.mxu0 0
      %1315 = vmatpush.bf16.xpose.msra.mxu0 0
      %1316 = vmatpush.bf16.xpose.msra.mxu0 0
      %1317 = vmatpush.bf16.xpose.msra.mxu0 0
      %1318 = vmatpush.bf16.xpose.msra.mxu0 0
      %1319 = vmatpush.bf16.xpose.msra.mxu0 0
      %1320 = vmatpush.bf16.xpose.msra.mxu0 0
      %1321 = vmatpush.bf16.xpose.msra.mxu0 %v1312
      %1322 = vmatmul.bf16.gmra.mxu0 %v1309
      %v1323 = vpop.f32.mrf.mxu0
      %v1324 = vadd.f32 0.0, %v1323
      %v1325 = vpop.f32.mrf.mxu0
      %1326 = vdwg.mxu0
      %v1328 = vsel %vm1269, %v1264, 0
      %v1331 = vsel %vm1269, %v1268, 0
      %1333 = vmatpush.bf16.xpose.msra.mxu0 0
      %1334 = vmatpush.bf16.xpose.msra.mxu0 0
      %1335 = vmatpush.bf16.xpose.msra.mxu0 0
      %1336 = vmatpush.bf16.xpose.msra.mxu0 0
      %1337 = vmatpush.bf16.xpose.msra.mxu0 0
      %1338 = vmatpush.bf16.xpose.msra.mxu0 0
      %1339 = vmatpush.bf16.xpose.msra.mxu0 0
      %1340 = vmatpush.bf16.xpose.msra.mxu0 %v1331
      %1341 = vmatmul.bf16.gmra.mxu0 %v1328
      %v1342 = vpop.f32.mrf.mxu0
      %v1343 = vadd.f32 0.0, %v1342
      %v1344 = vpop.f32.mrf.mxu0
      %1345 = vdwg.mxu0
      %v1346 = vmul.f32 %v1286, 0.25
      %v1347 = vmul.f32 %v1305, 0.25
      %v1348 = vmul.f32 %v1324, 0.25
      %v1349 = vmul.f32 %v1343, 0.25
      %v1350 = vadd.f32 %v1346, %v624
      %v1351 = vadd.f32 %v1347, %v625
      %v1352 = vadd.f32 %v1348, %v626
      %v1353 = vadd.f32 %v1349, %v627
      %vm1354 = vcmask 27648
      %v1355 = vsel %vm1354, %v1350, -inf
      %1356 = vmax.xlane.f32.xlu0 %v1355
      %v1357 = vpop.xlane.xlu0 %1356
      %v1358 = vsel %vm1354, %v1351, -inf
      %1359 = vmax.xlane.f32.xlu0 %v1358
      %v1360 = vpop.xlane.xlu0 %1359
      %v1361 = vsel %vm1354, %v1352, -inf
      %1362 = vmax.xlane.f32.xlu0 %v1361
      %v1363 = vpop.xlane.xlu0 %1362
      %v1364 = vsel %vm1354, %v1353, -inf
      %1365 = vmax.xlane.f32.xlu0 %v1364
      %v1366 = vpop.xlane.xlu0 %1365
      %v1367 = vsub.f32 %v1350, %v1357
      %v1368 = vsub.f32 %v1351, %v1360
      %v1369 = vsub.f32 %v1352, %v1363
      %v1370 = vsub.f32 %v1353, %v1366
      %v1371 = vmul.f32 %v1367, 1.442695
      %v1372 = vpow.pop %v1371
      %v1373 = vmul.f32 %v1368, 1.442695
      %v1374 = vpow.pop %v1373
      %v1375 = vmul.f32 %v1369, 1.442695
      %v1376 = vpow.pop %v1375
      %v1377 = vmul.f32 %v1370, 1.442695
      %v1378 = vpow.pop %v1377
      %v1379 = vsel %vm1354, %v1372, 0.0
      %1380 = vadd.xlane.f32.xlu0 %v1379
      %v1381 = vpop.xlane.xlu0 %1380
      %v1382 = vsel %vm1354, %v1374, 0.0
      %1383 = vadd.xlane.f32.xlu0 %v1382
      %v1384 = vpop.xlane.xlu0 %1383
      %v1385 = vsel %vm1354, %v1376, 0.0
      %1386 = vadd.xlane.f32.xlu0 %v1385
      %v1387 = vpop.xlane.xlu0 %1386
      %v1388 = vsel %vm1354, %v1378, 0.0
      %1389 = vadd.xlane.f32.xlu0 %v1388
      %v1390 = vpop.xlane.xlu0 %1389
      %v1391 = vrcp.pop %v1381
      %v1392 = vmul.f32 %v1381, %v1391
      %v1393 = vsub.f32 1.0, %v1392
      %v1394 = vmul.f32 %v1391, %v1393
      %v1395 = vadd.f32 %v1391, %v1394
      %vm1396 = vweird.f32 %v1381
      %vm1397 = vweird.f32 %v1391
      %vm1398 = vmor %vm1396, %vm1397
      %v1399 = vsel %vm1398, %v1391, %v1395
      %v1400 = vand.u32 2147483647, %v1381
      %vm1401 = vcmp.eq.f32.partialorder %v1400, 8.507059e+37
      %v1402 = vand.u32 %v1381, 2147483648
      %v1403 = vor.u32 1.1754944e-38, %v1402
      %v1404 = vsel %vm1401, %v1403, %v1399
      %v1405 = vrcp.pop %v1384
      %v1406 = vmul.f32 %v1384, %v1405
      %v1407 = vsub.f32 1.0, %v1406
      %v1408 = vmul.f32 %v1405, %v1407
      %v1409 = vadd.f32 %v1405, %v1408
      %vm1410 = vweird.f32 %v1384
      %vm1411 = vweird.f32 %v1405
      %vm1412 = vmor %vm1410, %vm1411
      %v1413 = vsel %vm1412, %v1405, %v1409
      %v1414 = vand.u32 2147483647, %v1384
      %vm1415 = vcmp.eq.f32.partialorder %v1414, 8.507059e+37
      %v1416 = vand.u32 %v1384, 2147483648
      %v1417 = vor.u32 1.1754944e-38, %v1416
      %v1418 = vsel %vm1415, %v1417, %v1413
      %v1419 = vrcp.pop %v1387
      %v1420 = vmul.f32 %v1387, %v1419
      %v1421 = vsub.f32 1.0, %v1420
      %v1422 = vmul.f32 %v1419, %v1421
      %v1423 = vadd.f32 %v1419, %v1422
      %vm1424 = vweird.f32 %v1387
      %vm1425 = vweird.f32 %v1419
      %vm1426 = vmor %vm1424, %vm1425
      %v1427 = vsel %vm1426, %v1419, %v1423
      %v1428 = vand.u32 2147483647, %v1387
      %vm1429 = vcmp.eq.f32.partialorder %v1428, 8.507059e+37
      %v1430 = vand.u32 %v1387, 2147483648
      %v1431 = vor.u32 1.1754944e-38, %v1430
      %v1432 = vsel %vm1429, %v1431, %v1427
      %v1433 = vrcp.pop %v1390
      %v1434 = vmul.f32 %v1390, %v1433
      %v1435 = vsub.f32 1.0, %v1434
      %v1436 = vmul.f32 %v1433, %v1435
      %v1437 = vadd.f32 %v1433, %v1436
      %vm1438 = vweird.f32 %v1390
      %vm1439 = vweird.f32 %v1433
      %vm1440 = vmor %vm1438, %vm1439
      %v1441 = vsel %vm1440, %v1433, %v1437
      %v1442 = vand.u32 2147483647, %v1390
      %vm1443 = vcmp.eq.f32.partialorder %v1442, 8.507059e+37
      %v1444 = vand.u32 %v1390, 2147483648
      %v1445 = vor.u32 1.1754944e-38, %v1444
      %v1446 = vsel %vm1443, %v1445, %v1441
      %v1447 = vmul.f32 %v1372, %v1404
      %v1448 = vmul.f32 %v1374, %v1418
      %v1449 = vmul.f32 %v1376, %v1432
      %v1450 = vmul.f32 %v1378, %v1446
      %v1451 = vpack.c.bf16 %v1447, %v1447
      %v1452 = vpack.c.bf16 %v1448, %v1448
      %v1453 = vpack.c.bf16 %v1449, %v1449
      %v1454 = vpack.c.bf16 %v1450, %v1450
      %v1455 = vpack.c.bf16 %v1147, %v1147
      %v1456 = vpack.c.bf16 %v1184, %v1184
      %v1457 = vpack.c.bf16 %v1221, %v1221
      %v1458 = vpack.c.bf16 %v1258, %v1258
      %vm1459 = vcmask 31744
      %v1461 = vsel %vm1459, %v1451, 0
      %vm1463 = vcmask 1041408
      %v1465 = vsel %vm1463, %v1455, 0
      %1467 = vmatpush.bf16.msra.mxu0 0
      %1468 = vmatpush.bf16.msra.mxu0 0
      %1469 = vmatpush.bf16.msra.mxu0 0
      %1470 = vmatpush.bf16.msra.mxu0 0
      %1471 = vmatpush.bf16.msra.mxu0 0
      %1472 = vmatpush.bf16.msra.mxu0 0
      %1473 = vmatpush.bf16.msra.mxu0 0
      %1474 = vmatpush.bf16.msra.mxu0 %v1465
      %1475 = vmatmul.bf16.gmra.mxu0 %v1461
      %v1476 = vpop.f32.mrf.mxu0
      %v1477 = vadd.f32 0.0, %v1476
      %v1478 = vpop.f32.mrf.mxu0
      %1479 = vdwg.mxu0
      %v1481 = vsel %vm1459, %v1452, 0
      %v1484 = vsel %vm1463, %v1456, 0
      %1486 = vmatpush.bf16.msra.mxu0 0
      %1487 = vmatpush.bf16.msra.mxu0 0
      %1488 = vmatpush.bf16.msra.mxu0 0
      %1489 = vmatpush.bf16.msra.mxu0 0
      %1490 = vmatpush.bf16.msra.mxu0 0
      %1491 = vmatpush.bf16.msra.mxu0 0
      %1492 = vmatpush.bf16.msra.mxu0 0
      %1493 = vmatpush.bf16.msra.mxu0 %v1484
      %1494 = vmatmul.bf16.gmra.mxu0 %v1481
      %v1495 = vpop.f32.mrf.mxu0
      %v1496 = vadd.f32 0.0, %v1495
      %v1497 = vpop.f32.mrf.mxu0
      %1498 = vdwg.mxu0
      %v1500 = vsel %vm1459, %v1453, 0
      %v1503 = vsel %vm1463, %v1457, 0
      %1505 = vmatpush.bf16.msra.mxu0 0
      %1506 = vmatpush.bf16.msra.mxu0 0
      %1507 = vmatpush.bf16.msra.mxu0 0
      %1508 = vmatpush.bf16.msra.mxu0 0
      %1509 = vmatpush.bf16.msra.mxu0 0
      %1510 = vmatpush.bf16.msra.mxu0 0
      %1511 = vmatpush.bf16.msra.mxu0 0
      %1512 = vmatpush.bf16.msra.mxu0 %v1503
      %1513 = vmatmul.bf16.gmra.mxu0 %v1500
      %v1514 = vpop.f32.mrf.mxu0
      %v1515 = vadd.f32 0.0, %v1514
      %v1516 = vpop.f32.mrf.mxu0
      %1517 = vdwg.mxu0
      %v1519 = vsel %vm1459, %v1454, 0
      %v1522 = vsel %vm1463, %v1458, 0
      %1524 = vmatpush.bf16.msra.mxu0 0
      %1525 = vmatpush.bf16.msra.mxu0 0
      %1526 = vmatpush.bf16.msra.mxu0 0
      %1527 = vmatpush.bf16.msra.mxu0 0
      %1528 = vmatpush.bf16.msra.mxu0 0
      %1529 = vmatpush.bf16.msra.mxu0 0
      %1530 = vmatpush.bf16.msra.mxu0 0
      %1531 = vmatpush.bf16.msra.mxu0 %v1522
      %1532 = vmatmul.bf16.gmra.mxu0 %v1519
      %v1533 = vpop.f32.mrf.mxu0
      %v1534 = vadd.f32 0.0, %v1533
      %v1535 = vpop.f32.mrf.mxu0
      %1536 = vdwg.mxu0
      %v1537 = vpack.c.bf16 %v1477, %v1477
      %v1538 = vpack.c.bf16 %v1496, %v1496
      %v1539 = vpack.c.bf16 %v1515, %v1515
      %v1540 = vpack.c.bf16 %v1534, %v1534
      %v1541 = vld [vmem:[%s10] sm:$0xf]
      %v1542 = vld [vmem:[%s10 + $0x4] sm:$0xf]
      %v1543 = vld [vmem:[%s10 + $0x8] sm:$0xf]
      %v1544 = vld [vmem:[%s10 + $0xc] sm:$0xf]
      %v1545 = vld [vmem:[%s10 + $0x10] sm:$0xf]
      %v1546 = vld [vmem:[%s10 + $0x14] sm:$0xf]
      %v1547 = vld [vmem:[%s10 + $0x18] sm:$0xf]
      %v1548 = vld [vmem:[%s10 + $0x1c] sm:$0xf]
      %v1551 = vunpack.c.l.b16 %v1541
      %v1552 = vunpack.c.l.b16 %v1542
      %v1553 = vpack.c.b16 %v1552, %v1551
      %v1556 = vsel %vm1269, %v1537, 0
      %1558 = vmatpush.bf16.msra.mxu0 0
      %1559 = vmatpush.bf16.msra.mxu0 0
      %1560 = vmatpush.bf16.msra.mxu0 0
      %1561 = vmatpush.bf16.msra.mxu0 0
      %1562 = vmatpush.bf16.msra.mxu0 0
      %1563 = vmatpush.bf16.msra.mxu0 0
      %1564 = vmatpush.bf16.msra.mxu0 0
      %1565 = vmatpush.bf16.msra.mxu0 %v1553
      %1566 = vmatmul.bf16.gmra.mxu0 %v1556
      %v1567 = vpop.f32.mrf.mxu0
      %v1568 = vadd.f32 0.0, %v1567
      %v1569 = vpop.f32.mrf.mxu0
      %1570 = vdwg.mxu0
      %v1573 = vunpack.c.l.b16 %v1543
      %v1574 = vunpack.c.l.b16 %v1544
      %v1575 = vpack.c.b16 %v1574, %v1573
      %v1578 = vsel %vm1269, %v1538, 0
      %1580 = vmatpush.bf16.msra.mxu0 0
      %1581 = vmatpush.bf16.msra.mxu0 0
      %1582 = vmatpush.bf16.msra.mxu0 0
      %1583 = vmatpush.bf16.msra.mxu0 0
      %1584 = vmatpush.bf16.msra.mxu0 0
      %1585 = vmatpush.bf16.msra.mxu0 0
      %1586 = vmatpush.bf16.msra.mxu0 0
      %1587 = vmatpush.bf16.msra.mxu0 %v1575
      %1588 = vmatmul.bf16.gmra.mxu0 %v1578
      %v1589 = vpop.f32.mrf.mxu0
      %v1590 = vadd.f32 0.0, %v1589
      %v1591 = vpop.f32.mrf.mxu0
      %1592 = vdwg.mxu0
      %v1595 = vunpack.c.l.b16 %v1545
      %v1596 = vunpack.c.l.b16 %v1546
      %v1597 = vpack.c.b16 %v1596, %v1595
      %v1600 = vsel %vm1269, %v1539, 0
      %1602 = vmatpush.bf16.msra.mxu0 0
      %1603 = vmatpush.bf16.msra.mxu0 0
      %1604 = vmatpush.bf16.msra.mxu0 0
      %1605 = vmatpush.bf16.msra.mxu0 0
      %1606 = vmatpush.bf16.msra.mxu0 0
      %1607 = vmatpush.bf16.msra.mxu0 0
      %1608 = vmatpush.bf16.msra.mxu0 0
      %1609 = vmatpush.bf16.msra.mxu0 %v1597
      %1610 = vmatmul.bf16.gmra.mxu0 %v1600
      %v1611 = vpop.f32.mrf.mxu0
      %v1612 = vadd.f32 0.0, %v1611
      %v1613 = vpop.f32.mrf.mxu0
      %1614 = vdwg.mxu0
      %v1617 = vunpack.c.l.b16 %v1547
      %v1618 = vunpack.c.l.b16 %v1548
      %v1619 = vpack.c.b16 %v1618, %v1617
      %v1622 = vsel %vm1269, %v1540, 0
      %1624 = vmatpush.bf16.msra.mxu0 0
      %1625 = vmatpush.bf16.msra.mxu0 0
      %1626 = vmatpush.bf16.msra.mxu0 0
      %1627 = vmatpush.bf16.msra.mxu0 0
      %1628 = vmatpush.bf16.msra.mxu0 0
      %1629 = vmatpush.bf16.msra.mxu0 0
      %1630 = vmatpush.bf16.msra.mxu0 0
      %1631 = vmatpush.bf16.msra.mxu0 %v1619
      %1632 = vmatmul.bf16.gmra.mxu0 %v1622
      %v1633 = vpop.f32.mrf.mxu0
      %v1634 = vadd.f32 0.0, %v1633
      %v1635 = vpop.f32.mrf.mxu0
      %1636 = vdwg.mxu0
      %v1637 = vsel %vm630, %v1568, 0.0
      %v1638 = vsel %vm630, %v1590, 0.0
      %v1639 = vadd.f32 %v1637, %v1638
      %v1640 = vsel %vm630, %v1612, 0.0
      %v1641 = vadd.f32 %v1639, %v1640
      %v1642 = vsel %vm630, %v1634, 0.0
      %v1643 = vadd.f32 %v1641, %v1642
      %v1644 = vadd.f32 %v623, %v1643
      %v1645 = vld [vmem:[%s11] sm:$0x1]
      %v1647 = vperm.slane %v1645, 0
      %v1649 = vadd.f32 %v1644, %v1647
      %v1650 = vld [vmem:[%s12] sm:$0x1]
      %v1651 = vld [vmem:[%s13] sm:$0x1]
      %v1652 = vsel %vm630, %v1649, 0.0
      %1653 = vadd.xlane.f32.xlu0 %v1652
      %v1654 = vpop.xlane.xlu0 %1653
      %v1655 = vmul.f32 %v1654, %v640
      %v1656 = vsub.f32 %v1649, %v1655
      %v1657 = vmul.f32 %v1656, %v1656
      %v1658 = vsel %vm630, %v1657, 0.0
      %1659 = vadd.xlane.f32.xlu0 %v1658
      %v1660 = vpop.xlane.xlu0 %1659
      %v1661 = vmul.f32 %v1660, %v640
      %v1662 = vadd.f32 %v1661, 1e-05
      %v1663 = vrsqrt.pop %v1662
      %v1664 = vmul.f32 %v1663, %v1662
      %v1665 = vmul.f32 %v1664, %v1663
      %v1666 = vmul.f32 0.5, %v1665
      %v1667 = vsub.f32 1.5, %v1666
      %v1668 = vmul.f32 %v1663, %v1667
      %vm1669 = vweird.f32 %v1662
      %vm1670 = vweird.f32 %v1663
      %vm1671 = vmor %vm1669, %vm1670
      %v1672 = vsel %vm1671, %v1663, %v1668
      %v1673 = vmul.f32 %v1656, %v1672
      %v1675 = vperm.slane %v1650, 0
      %v1677 = vmul.f32 %v1673, %v1675
      %v1679 = vperm.slane %v1651, 0
      %v1681 = vadd.f32 %v1677, %v1679
      %v1682 = vpack.c.bf16 %v1681, %v1681
      %v1683 = vld [vmem:[%s14] sm:$0xf]
      %v1684 = vld [vmem:[%s14 + $0x4] sm:$0xf]
      %v1685 = vld [vmem:[%s14 + $0x8] sm:$0xf]
      %v1686 = vld [vmem:[%s14 + $0xc] sm:$0xf]
      %v1687 = vld [vmem:[%s14 + $0x10] sm:$0xf]
      %v1688 = vld [vmem:[%s14 + $0x14] sm:$0xf]
      %v1689 = vld [vmem:[%s14 + $0x18] sm:$0xf]
      %v1690 = vld [vmem:[%s14 + $0x1c] sm:$0xf]
      %v1691 = vld [vmem:[%s15] sm:$0x1]
      %v1693 = vperm.slane %v1691, 0
      %v1703 = vunpack.c.l.b16 %v1683
      %v1704 = vunpack.c.l.b16 %v1684
      %v1705 = vunpack.c.l.b16 %v1685
      %v1706 = vunpack.c.l.b16 %v1686
      %v1707 = vunpack.c.l.b16 %v1687
      %v1708 = vunpack.c.l.b16 %v1688
      %v1709 = vunpack.c.l.b16 %v1689
      %v1710 = vunpack.c.l.b16 %v1690
      %v1711 = vpack.c.b16 %v1704, %v1703
      %v1712 = vpack.c.b16 %v1706, %v1705
      %v1713 = vpack.c.b16 %v1708, %v1707
      %v1714 = vpack.c.b16 %v1710, %v1709
      %v1720 = vsel %vm741, %v1682, 0
      %1722 = vmatpush.bf16.msra.mxu0 0
      %1723 = vmatpush.bf16.msra.mxu0 0
      %1724 = vmatpush.bf16.msra.mxu0 0
      %1725 = vmatpush.bf16.msra.mxu0 0
      %1726 = vmatpush.bf16.msra.mxu0 %v1714
      %1727 = vmatpush.bf16.msra.mxu0 %v1713
      %1728 = vmatpush.bf16.msra.mxu0 %v1712
      %1729 = vmatpush.bf16.msra.mxu0 %v1711
      %1730 = vmatmul.bf16.gmra.mxu0 %v1720
      %v1731 = vpop.f32.mrf.mxu0
      %v1732 = vadd.f32 %v1693, %v1731
      %v1733 = vpop.f32.mrf.mxu0
      %1734 = vdwg.mxu0
      %v1735 = vmul.f32 %v1732, 0.5
      %v1736 = vmul.f32 %v1732, 0.044715
      %v1737 = vmul.f32 %v1736, %v1732
      %v1738 = vmul.f32 %v1737, %v1732
      %v1739 = vadd.f32 %v1732, %v1738
      %v1740 = vmul.f32 %v1739, 0.7978846
      %v1741 = vtanh.pop %v1740
      %v1742 = vadd.f32 %v1741, 1.0
      %v1743 = vmul.f32 %v1735, %v1742
      %v1744 = vpack.c.bf16 %v1743, %v1743
      %v1745 = vld [vmem:[%s16] sm:$0xf]
      %v1746 = vld [vmem:[%s16 + $0x4] sm:$0xf]
      %v1747 = vld [vmem:[%s16 + $0x8] sm:$0xf]
      %v1748 = vld [vmem:[%s16 + $0xc] sm:$0xf]
      %v1749 = vld [vmem:[%s16 + $0x10] sm:$0xf]
      %v1750 = vld [vmem:[%s16 + $0x14] sm:$0xf]
      %v1751 = vld [vmem:[%s16 + $0x18] sm:$0xf]
      %v1752 = vld [vmem:[%s16 + $0x1c] sm:$0xf]
      %v1753 = vld [vmem:[%s16 + $0x20] sm:$0xf]
      %v1754 = vld [vmem:[%s16 + $0x24] sm:$0xf]
      %v1755 = vld [vmem:[%s16 + $0x28] sm:$0xf]
      %v1756 = vld [vmem:[%s16 + $0x2c] sm:$0xf]
      %v1757 = vld [vmem:[%s16 + $0x30] sm:$0xf]
      %v1758 = vld [vmem:[%s16 + $0x34] sm:$0xf]
      %v1759 = vld [vmem:[%s16 + $0x38] sm:$0xf]
      %v1760 = vld [vmem:[%s16 + $0x3c] sm:$0xf]
      %v1761 = vld [vmem:[%s17] sm:$0x1]
      %v1763 = vperm.slane %v1761, 0
      %v1781 = vunpack.c.l.b16 %v1745
      %v1782 = vunpack.c.l.b16 %v1746
      %v1783 = vunpack.c.l.b16 %v1747
      %v1784 = vunpack.c.l.b16 %v1748
      %v1785 = vunpack.c.l.b16 %v1749
      %v1786 = vunpack.c.l.b16 %v1750
      %v1787 = vunpack.c.l.b16 %v1751
      %v1788 = vunpack.c.l.b16 %v1752
      %v1789 = vunpack.c.l.b16 %v1753
      %v1790 = vunpack.c.l.b16 %v1754
      %v1791 = vunpack.c.l.b16 %v1755
      %v1792 = vunpack.c.l.b16 %v1756
      %v1793 = vunpack.c.l.b16 %v1757
      %v1794 = vunpack.c.l.b16 %v1758
      %v1795 = vunpack.c.l.b16 %v1759
      %v1796 = vunpack.c.l.b16 %v1760
      %v1797 = vpack.c.b16 %v1782, %v1781
      %v1798 = vpack.c.b16 %v1784, %v1783
      %v1799 = vpack.c.b16 %v1786, %v1785
      %v1800 = vpack.c.b16 %v1788, %v1787
      %v1801 = vpack.c.b16 %v1790, %v1789
      %v1802 = vpack.c.b16 %v1792, %v1791
      %v1803 = vpack.c.b16 %v1794, %v1793
      %v1804 = vpack.c.b16 %v1796, %v1795
      %1813 = vmatpush.bf16.msra.mxu0 %v1804
      %1814 = vmatpush.bf16.msra.mxu0 %v1803
      %1815 = vmatpush.bf16.msra.mxu0 %v1802
      %1816 = vmatpush.bf16.msra.mxu0 %v1801
      %1817 = vmatpush.bf16.msra.mxu0 %v1800
      %1818 = vmatpush.bf16.msra.mxu0 %v1799
      %1819 = vmatpush.bf16.msra.mxu0 %v1798
      %1820 = vmatpush.bf16.msra.mxu0 %v1797
      %1821 = vmatmul.bf16.gmra.mxu0 %v1744
      %v1822 = vpop.f32.mrf.mxu0
      %v1823 = vadd.f32 %v1763, %v1822
      %v1824 = vpop.f32.mrf.mxu0
      %1825 = vdwg.mxu0
      %v1826 = vadd.f32 %v1649, %v1823
      %1827 = vst.msk [vmem:[%s621] sm:$0xf] %vm630, %v1826
      %p1828 = scmp.lt.s32.totalorder %s33, 1
      %s1829 = scalar_select %p1828, %s33, 1
      %p1830 = scmp.lt.s32.totalorder %s34, 0
      %s1831 = scalar_select %p1830, %s34, 0
      %s1832 = sadd.s32 %s1831, %s1829
      %s1833 = smul.addr %s1832, 4
      %s1834 = scalar_lea.vmem %s18, %s1833
      // Predicated region
      $region93: #{swin_forward.10} parent=91 // pred_check
        %p1835 = pneg %p451
      $region94: #{swin_forward.10} parent=91 // pred_check_branch
        %1837 = sbr.rel (%p1835) target = $region96
      $region95: #{swin_forward.10} parent=91 // pred_region
        _
      $region96: #{swin_forward.10} parent=91 // pred_fallthru
        _
    $region92: #{swin_forward.10} parent=5 // pred_fallthru
      _
    %p1838 = scmp.le.s32.totalorder 2, %s24
    // Predicated region
    $region97: #{swin_forward.10} parent=5 // pred_check
      %p1839 = pneg %p1838
    $region98: #{swin_forward.10} parent=5 // pred_check_branch
      %1841 = sbr.rel (%p1839) target = $region100
    $region99: #{swin_forward.10} parent=5 // pred_region
      %s1842 = ssub.s32 %s24, 2
      // Predicated region
      $region101: #{swin_forward.10} parent=99 // pred_check
        %p1843 = pneg %p457
      $region102: #{swin_forward.10} parent=99 // pred_check_branch
        %1845 = sbr.rel (%p1843) target = $region104
      $region103: #{swin_forward.10} parent=99 // pred_region
        %p1846 = scmp.lt.s32.totalorder %s35, 1
        %s1847 = scalar_select %p1846, %s35, 1
        %p1848 = scmp.lt.s32.totalorder %s36, 0
        %s1849 = scalar_select %p1848, %s36, 0
        %s1850 = sadd.s32 %s1849, %s1847
        %s1851 = smul.addr %s1850, 4
        %s1852 = scalar_lea.vmem %s18, %s1851
      $region104: #{swin_forward.10} parent=99 // pred_fallthru
        _
    $region100: #{swin_forward.10} parent=5 // pred_fallthru
      _
  $region6: #{swin_forward.10} parent=0 // loop_footer
    %s28 = sadd.s32 1, %s24
  $region7: #{swin_forward.10} parent=0 // loop_footer_branch
    %23 = sbr.rel target = $region3
  $region8: #{swin_forward.10} parent=0 // loop_exit
    _

</llo_original>
